<compile_context>
chip_gen: v5e
topology: v5e:2x2
jax: 0.10.0
libtpu: 0.0.40
codegen_flags: <defaults>
</compile_context>

<pallas_src>
import math
import functools

import jax
import jax.numpy as jnp
from jax.experimental import pallas as pl
from jax.experimental.pallas import tpu as pltpu


def _gelu_tanh(x):
    # nn.GELU(approximate='tanh')
    return 0.5 * x * (1.0 + jnp.tanh(math.sqrt(2.0 / math.pi)
                                     * (x + 0.044715 * x * x * x)))


def _layer_norm(v, g, b, eps=1e-5):
    mu = jnp.mean(v, axis=-1, keepdims=True)
    var = jnp.mean(jnp.square(v - mu), axis=-1, keepdims=True)
    return (v - mu) * jax.lax.rsqrt(var + eps) * g + b


def block_kernel(x_ref,
                 ln1_g_ref, ln1_b_ref,
                 wq_ref, wk_ref, wv_ref,
                 bq_ref, bk_ref, bv_ref,
                 w_aproj_ref, b_aproj_ref,
                 ln2_g_ref, ln2_b_ref,
                 w_fc_ref, b_fc_ref,
                 w_mproj_ref, b_mproj_ref,
                 o_ref,
                 xn_scr, k_scr, v_scr,
                 *, n_head, tq):
    f32 = jnp.float32
    bf16 = jnp.bfloat16
    NEG = -1e30

    qt = pl.program_id(1)
    T, C = x_ref.shape[1], x_ref.shape[2]
    hd = C // n_head
    scale = 1.0 / math.sqrt(hd)

    # ---- once per batch row (qt == 0): ln_1 + K/V for the whole sequence ----
    @pl.when(qt == 0)
    def _():
        xn_full = _layer_norm(x_ref[0], ln1_g_ref[0], ln1_b_ref[0]).astype(bf16)
        xn_scr[...] = xn_full
        for h in range(n_head):                    # unrolled; plain 2-D matmuls
            k_h = jnp.dot(xn_full, wk_ref[h], preferred_element_type=f32) + bk_ref[h]
            v_h = jnp.dot(xn_full, wv_ref[h], preferred_element_type=f32) + bv_ref[h]
            k_scr[h] = k_h.astype(bf16)
            v_scr[h] = v_h.astype(bf16)

    # ---------------- this step's tq-row query tile ----------------
    q0 = pl.multiple_of(qt * tq, tq)
    x_tile = x_ref[0, pl.ds(q0, tq), :]            # (tq, C) f32, for residual
    xn_tile = xn_scr[pl.ds(q0, tq), :]             # (tq, C) bf16, ln_1 output

    # Causal mask against global positions (built once, reused for all heads).
    row = jax.lax.broadcasted_iota(jnp.int32, (tq, T), 0) + q0
    col = jax.lax.broadcasted_iota(jnp.int32, (tq, T), 1)
    causal = row >= col

    # Attention + output projection, accumulated per head into a (tq, C) tile.
    y = jnp.zeros((tq, C), f32)
    for h in range(n_head):
        q_h = (jnp.dot(xn_tile, wq_ref[h], preferred_element_type=f32)
               + bq_ref[h]).astype(bf16)                                   # (tq, hd)
        s = jnp.einsum('td,sd->ts', q_h, k_scr[h],
                       preferred_element_type=f32) * scale                 # (tq, T)
        s = jnp.where(causal, s, NEG)
        e = jnp.exp(s - jnp.max(s, axis=-1, keepdims=True))
        l = jnp.sum(e, axis=-1, keepdims=True)                             # (tq, 1)
        pv = jnp.dot(e.astype(bf16), v_scr[h],
                     preferred_element_type=f32)                           # (tq, hd)
        pv = pv * pl.reciprocal(l, approx=True)      # normalize AFTER p@v
        y = y + jnp.dot(pv.astype(bf16), w_aproj_ref[h],
                        preferred_element_type=f32)                        # (tq, C)

    x1 = x_tile + (y + b_aproj_ref[0])               # residual 1

    # ---------------- ln_2 + MLP (full-width MXU matmuls) ----------------
    x1n = _layer_norm(x1, ln2_g_ref[0], ln2_b_ref[0])
    h_fc = jnp.dot(x1n.astype(bf16), w_fc_ref[...],
                   preferred_element_type=f32) + b_fc_ref[0]               # (tq, 4C)
    h_act = _gelu_tanh(h_fc)
    m_out = jnp.dot(h_act.astype(bf16), w_mproj_ref[...],
                    preferred_element_type=f32) + b_mproj_ref[0]           # (tq, C)

    o_ref[0] = (x1 + m_out).astype(o_ref.dtype)      # residual 2


def prepare_block_params(params, n_head):
    """One-time bf16 cast + per-head weight split (keep OUTSIDE the hot path).

    params (all f32, PyTorch Block layout, linear weights stored (in, out)):
      (ln1_g(1,C), ln1_b(1,C), c_attn_W(C,3C), c_attn_b(1,3C), attn_proj_W(C,C),
       attn_proj_b(1,C), ln2_g(1,C), ln2_b(1,C), c_fc_W(C,4C), c_fc_b(1,4C),
       mlp_proj_W(4C,C), mlp_proj_b(1,C))."""
    (g1, b1, wqkv, bqkv, wap, bap, g2, b2, wfc, bfc, wmp, bmp) = params
    C = g1.shape[-1]
    hd = C // n_head
    bf16 = jnp.bfloat16

    def w_heads(w):       # (C, C) -> (H, C, hd) bf16
        return w.reshape(C, n_head, hd).transpose(1, 0, 2).astype(bf16)

    def b_heads(b):       # (1, C) -> (H, 1, hd) f32 (biases only touch the VPU)
        return b.reshape(n_head, 1, hd)

    wq, wk, wv = wqkv[:, :C], wqkv[:, C:2 * C], wqkv[:, 2 * C:]
    bq, bk, bv = bqkv[:, :C], bqkv[:, C:2 * C], bqkv[:, 2 * C:]

    return (g1, b1,
            w_heads(wq), w_heads(wk), w_heads(wv),
            b_heads(bq), b_heads(bk), b_heads(bv),
            wap.reshape(n_head, hd, C).astype(bf16), bap,
            g2, b2,
            wfc.astype(bf16), bfc,
            wmp.astype(bf16), bmp)


def gpt2_block(x, prepared_params, n_head, block_q=None):
    B, T, C = x.shape
    assert C % n_head == 0
    hd = C // n_head
    if block_q is None:
        block_q = T if T <= 256 else 256
    tq = block_q
    assert T % tq == 0 and (tq % 8 == 0 or tq == T), (T, tq)
    n_qt = T // tq

    kernel = functools.partial(block_kernel, n_head=n_head, tq=tq)

    def rep(shape):
        # Grid-resident weight/bias: constant index_map + single-buffered
        # (no point double-buffering a block whose index never changes).
        nd = len(shape)
        return pl.BlockSpec(shape, lambda b, q, _n=nd: (0,) * _n,
                            pipeline_mode=pl.Buffered(1))

    in_specs = [
        pl.BlockSpec((1, T, C), lambda b, q: (b, 0, 0)),    # x (full seq per batch)
        rep((1, C)), rep((1, C)),                           # ln_1 gamma / beta
        rep((n_head, C, hd)), rep((n_head, C, hd)), rep((n_head, C, hd)),  # wq/wk/wv
        rep((n_head, 1, hd)), rep((n_head, 1, hd)), rep((n_head, 1, hd)),  # bq/bk/bv
        rep((n_head, hd, C)), rep((1, C)),                  # attn c_proj W (per head)/b
        rep((1, C)), rep((1, C)),                           # ln_2 gamma / beta
        rep((C, 4 * C)), rep((1, 4 * C)),                   # mlp c_fc W / b
        rep((4 * C, C)), rep((1, C)),                       # mlp c_proj W / b
    ]

    return pl.pallas_call(
        kernel,
        out_shape=jax.ShapeDtypeStruct((B, T, C), x.dtype),
        grid_spec=pltpu.PrefetchScalarGridSpec(
            num_scalar_prefetch=0,
            grid=(B, n_qt),
            in_specs=in_specs,
            out_specs=pl.BlockSpec((1, tq, C), lambda b, q: (b, q, 0)),
            scratch_shapes=[
                pltpu.VMEM((T, C), jnp.bfloat16),            # ln_1(x), full sequence
                pltpu.VMEM((n_head, T, hd), jnp.bfloat16),   # K heads
                pltpu.VMEM((n_head, T, hd), jnp.bfloat16),   # V heads
            ],
        ),
        compiler_params=pltpu.CompilerParams(
            # batch rows independent (megacore); q-tiles reuse per-batch K/V
            # scratch -> sequential.
            dimension_semantics=("parallel", "arbitrary"),
            vmem_limit_bytes=48 * 1024 * 1024,
        ),
    )(x, *prepared_params)


def ref_block(x, params, n_head, matmul_dtype=jnp.float32):
    """Pure-JAX reference. matmul_dtype=bf16 mirrors the kernel's mixed
    precision (bf16 matmul operands, f32 accumulation); f32 gives the exact
    PyTorch-module semantics."""
    (g1, b1, wqkv, bqkv, wap, bap, g2, b2, wfc, bfc, wmp, bmp) = params
    B, T, C = x.shape
    hd = C // n_head
    f32 = jnp.float32

    def mm(a, w):
        return jnp.einsum('...k,kn->...n', a.astype(matmul_dtype),
                          w.astype(matmul_dtype), preferred_element_type=f32)

    xn = _layer_norm(x, g1[0], b1[0])
    qkv = mm(xn, wqkv) + bqkv[0]
    q, k, v = jnp.split(qkv, 3, axis=-1)

    def heads(t):
        return t.reshape(B, T, n_head, hd).transpose(0, 2, 1, 3)

    q, k, v = heads(q), heads(k), heads(v)
    att = jnp.einsum('bhtd,bhsd->bhts', q.astype(matmul_dtype),
                     k.astype(matmul_dtype),
                     preferred_element_type=f32) * (1.0 / math.sqrt(hd))
    mask = jnp.tril(jnp.ones((T, T), bool))
    att = jnp.where(mask, att, -1e30)
    p = jax.nn.softmax(att, axis=-1)
    y = jnp.einsum('bhts,bhsd->bhtd', p.astype(matmul_dtype),
                   v.astype(matmul_dtype), preferred_element_type=f32)
    y = y.transpose(0, 2, 1, 3).reshape(B, T, C)
    y = mm(y, wap) + bap[0]
    x1 = x + y

    h = mm(_layer_norm(x1, g2[0], b2[0]), wfc) + bfc[0]
    h = _gelu_tanh(h)
    return x1 + mm(h, wmp) + bmp[0]


if __name__ == "__main__":
    # Small but representative config: lane-dense C=128, n_head=4 (hd=32),
    # T=16 split into two q-row tiles (tq=8) to exercise the T-tiled grid.
    B, T, C, n_head = 2, 16, 128, 4

    key = jax.random.PRNGKey(0)
    ks = jax.random.split(key, 12)
    std = 0.02

    x = jax.random.normal(ks[0], (B, T, C), jnp.float32)
    params = (
        1.0 + 0.1 * jax.random.normal(ks[1], (1, C), jnp.float32),   # ln_1 gamma
        0.1 * jax.random.normal(ks[2], (1, C), jnp.float32),         # ln_1 beta
        std * jax.random.normal(ks[3], (C, 3 * C), jnp.float32),     # c_attn W
        std * jax.random.normal(ks[4], (1, 3 * C), jnp.float32),     # c_attn b
        std * jax.random.normal(ks[5], (C, C), jnp.float32),         # attn c_proj W
        std * jax.random.normal(ks[6], (1, C), jnp.float32),         # attn c_proj b
        1.0 + 0.1 * jax.random.normal(ks[7], (1, C), jnp.float32),   # ln_2 gamma
        0.1 * jax.random.normal(ks[8], (1, C), jnp.float32),         # ln_2 beta
        std * jax.random.normal(ks[9], (C, 4 * C), jnp.float32),     # c_fc W
        std * jax.random.normal(ks[10], (1, 4 * C), jnp.float32),    # c_fc b
        std * jax.random.normal(ks[11], (4 * C, C), jnp.float32),    # mlp c_proj W
        jnp.zeros((1, C), jnp.float32),                              # mlp c_proj b
    )

    prepared = jax.tree_util.tree_map(jax.block_until_ready,
                                      prepare_block_params(params, n_head))

    out = jax.block_until_ready(gpt2_block(x, prepared, n_head, block_q=8))
    assert out.shape == (B, T, C) and out.dtype == jnp.float32

    # Check vs. a reference using the same bf16-matmul / f32-accum recipe.
    # (approx reciprocal + post-p@v normalization add ~1e-3 relative error.)
    ref_bf = ref_block(x, params, n_head, matmul_dtype=jnp.bfloat16)
    err_bf = float(jnp.max(jnp.abs(out - ref_bf)))
    assert jnp.allclose(out, ref_bf, atol=1e-2, rtol=1e-2), \
        f"bf16-ref max abs err {err_bf}"

    # Looser sanity check vs. the exact f32 semantics of the PyTorch module.
    ref32 = ref_block(x, params, n_head, matmul_dtype=jnp.float32)
    err32 = float(jnp.max(jnp.abs(out - ref32)))
    assert jnp.allclose(out, ref32, atol=3e-2, rtol=3e-2), \
        f"f32-ref max abs err {err32}"

    print("KERNEL_OK")
</pallas_src>

<mosaic_0001>
module attributes {stable_mosaic.version = 11 : i64} {
  func.func @block_kernel(%arg0: i32, %arg1: i32, %arg2: memref<1x16x128xf32, #tpu.memory_space<vmem>>, %arg3: memref<1x128xf32, #tpu.memory_space<vmem>>, %arg4: memref<1x128xf32, #tpu.memory_space<vmem>>, %arg5: memref<4x128x32xbf16, #tpu.memory_space<vmem>>, %arg6: memref<4x128x32xbf16, #tpu.memory_space<vmem>>, %arg7: memref<4x128x32xbf16, #tpu.memory_space<vmem>>, %arg8: memref<4x1x32xf32, #tpu.memory_space<vmem>>, %arg9: memref<4x1x32xf32, #tpu.memory_space<vmem>>, %arg10: memref<4x1x32xf32, #tpu.memory_space<vmem>>, %arg11: memref<4x32x128xbf16, #tpu.memory_space<vmem>>, %arg12: memref<1x128xf32, #tpu.memory_space<vmem>>, %arg13: memref<1x128xf32, #tpu.memory_space<vmem>>, %arg14: memref<1x128xf32, #tpu.memory_space<vmem>>, %arg15: memref<128x512xbf16, #tpu.memory_space<vmem>>, %arg16: memref<1x512xf32, #tpu.memory_space<vmem>>, %arg17: memref<512x128xbf16, #tpu.memory_space<vmem>>, %arg18: memref<1x128xf32, #tpu.memory_space<vmem>>, %arg19: memref<1x8x128xf32, #tpu.memory_space<vmem>>, %arg20: memref<16x128xbf16, #tpu.memory_space<vmem>>, %arg21: memref<4x16x32xbf16, #tpu.memory_space<vmem>>, %arg22: memref<4x16x32xbf16, #tpu.memory_space<vmem>>) attributes {dimension_semantics = [#tpu.dimension_semantics<parallel>, #tpu.dimension_semantics<arbitrary>], iteration_bounds = array<i64: 2, 2>, scalar_prefetch = 0 : i64, scratch_operands = 3 : i64, tpu.core_type = #tpu.core_type<tc>, window_params = [{transform_indices = @transform_0, window_bounds = array<i64: 1, 16, 128>}, {pipeline_mode = #tpu.pipeline_mode<synchronous>, transform_indices = @transform_1, window_bounds = array<i64: 1, 128>}, {pipeline_mode = #tpu.pipeline_mode<synchronous>, transform_indices = @transform_2, window_bounds = array<i64: 1, 128>}, {pipeline_mode = #tpu.pipeline_mode<synchronous>, transform_indices = @transform_3, window_bounds = array<i64: 4, 128, 32>}, {pipeline_mode = #tpu.pipeline_mode<synchronous>, transform_indices = @transform_4, window_bounds = array<i64: 4, 128, 32>}, {pipeline_mode = #tpu.pipeline_mode<synchronous>, transform_indices = @transform_5, window_bounds = array<i64: 4, 128, 32>}, {pipeline_mode = #tpu.pipeline_mode<synchronous>, transform_indices = @transform_6, window_bounds = array<i64: 4, 1, 32>}, {pipeline_mode = #tpu.pipeline_mode<synchronous>, transform_indices = @transform_7, window_bounds = array<i64: 4, 1, 32>}, {pipeline_mode = #tpu.pipeline_mode<synchronous>, transform_indices = @transform_8, window_bounds = array<i64: 4, 1, 32>}, {pipeline_mode = #tpu.pipeline_mode<synchronous>, transform_indices = @transform_9, window_bounds = array<i64: 4, 32, 128>}, {pipeline_mode = #tpu.pipeline_mode<synchronous>, transform_indices = @transform_10, window_bounds = array<i64: 1, 128>}, {pipeline_mode = #tpu.pipeline_mode<synchronous>, transform_indices = @transform_11, window_bounds = array<i64: 1, 128>}, {pipeline_mode = #tpu.pipeline_mode<synchronous>, transform_indices = @transform_12, window_bounds = array<i64: 1, 128>}, {pipeline_mode = #tpu.pipeline_mode<synchronous>, transform_indices = @transform_13, window_bounds = array<i64: 128, 512>}, {pipeline_mode = #tpu.pipeline_mode<synchronous>, transform_indices = @transform_14, window_bounds = array<i64: 1, 512>}, {pipeline_mode = #tpu.pipeline_mode<synchronous>, transform_indices = @transform_15, window_bounds = array<i64: 512, 128>}, {pipeline_mode = #tpu.pipeline_mode<synchronous>, transform_indices = @transform_16, window_bounds = array<i64: 1, 128>}, {transform_indices = @transform_17, window_bounds = array<i64: 1, 8, 128>}]} {
    %c0_i32 = arith.constant 0 : i32
    %0 = arith.cmpi eq, %arg1, %c0_i32 : i32
    %1 = arith.extui %0 : i1 to i32
    %c0_i32_0 = arith.constant 0 : i32
    %2 = arith.cmpi ne, %1, %c0_i32_0 : i32
    scf.if %2 {
      %c0_120 = arith.constant 0 : index
      %c0_121 = arith.constant 0 : index
      %c0_122 = arith.constant 0 : index
      %219 = vector.load %arg2[%c0_120, %c0_121, %c0_122] : memref<1x16x128xf32, #tpu.memory_space<vmem>>, vector<1x16x128xf32>
      %220 = vector.shape_cast %219 : vector<1x16x128xf32> to vector<16x128xf32>
      %c0_123 = arith.constant 0 : index
      %c0_124 = arith.constant 0 : index
      %221 = vector.load %arg3[%c0_123, %c0_124] : memref<1x128xf32, #tpu.memory_space<vmem>>, vector<1x128xf32>
      %222 = vector.shape_cast %221 : vector<1x128xf32> to vector<128xf32>
      %c0_125 = arith.constant 0 : index
      %c0_126 = arith.constant 0 : index
      %223 = vector.load %arg4[%c0_125, %c0_126] : memref<1x128xf32, #tpu.memory_space<vmem>>, vector<1x128xf32>
      %224 = vector.shape_cast %223 : vector<1x128xf32> to vector<128xf32>
      %cst_127 = arith.constant dense<0.000000e+00> : vector<16xf32>
      %225 = vector.multi_reduction <add>, %220, %cst_127 [1] : vector<16x128xf32> to vector<16xf32>
      %226 = vector.shape_cast %225 : vector<16xf32> to vector<16x1xf32>
      %cst_128 = arith.constant 1.280000e+02 : f32
      %227 = vector.broadcast %cst_128 : f32 to vector<16x1xf32>
      %228 = arith.divf %226, %227 : vector<16x1xf32>
      %229 = vector.broadcast %228 : vector<16x1xf32> to vector<16x128xf32>
      %230 = arith.subf %220, %229 : vector<16x128xf32>
      %231 = arith.mulf %230, %230 : vector<16x128xf32>
      %cst_129 = arith.constant dense<0.000000e+00> : vector<16xf32>
      %232 = vector.multi_reduction <add>, %231, %cst_129 [1] : vector<16x128xf32> to vector<16xf32>
      %233 = vector.shape_cast %232 : vector<16xf32> to vector<16x1xf32>
      %cst_130 = arith.constant 1.280000e+02 : f32
      %234 = vector.broadcast %cst_130 : f32 to vector<16x1xf32>
      %235 = arith.divf %233, %234 : vector<16x1xf32>
      %236 = vector.broadcast %228 : vector<16x1xf32> to vector<16x128xf32>
      %237 = arith.subf %220, %236 : vector<16x128xf32>
      %cst_131 = arith.constant 9.99999974E-6 : f32
      %238 = vector.broadcast %cst_131 : f32 to vector<16x1xf32>
      %239 = arith.addf %235, %238 : vector<16x1xf32>
      %240 = math.rsqrt %239 : vector<16x1xf32>
      %241 = vector.broadcast %240 : vector<16x1xf32> to vector<16x128xf32>
      %242 = arith.mulf %237, %241 : vector<16x128xf32>
      %243 = vector.shape_cast %222 : vector<128xf32> to vector<1x128xf32>
      %244 = vector.broadcast %243 : vector<1x128xf32> to vector<16x128xf32>
      %245 = arith.mulf %242, %244 : vector<16x128xf32>
      %246 = vector.shape_cast %224 : vector<128xf32> to vector<1x128xf32>
      %247 = vector.broadcast %246 : vector<1x128xf32> to vector<16x128xf32>
      %248 = arith.addf %245, %247 : vector<16x128xf32>
      %249 = arith.truncf %248 : vector<16x128xf32> to vector<16x128xbf16>
      %c0_132 = arith.constant 0 : index
      %c0_133 = arith.constant 0 : index
      %250 = vector.load %arg20[%c0_132, %c0_133] : memref<16x128xbf16, #tpu.memory_space<vmem>>, vector<16x128xbf16>
      tpu.vector_store %arg20[%c0_132, %c0_133], %249 {strides = array<i32>} : memref<16x128xbf16, #tpu.memory_space<vmem>>, vector<16x128xbf16>,
      %c0_134 = arith.constant 0 : index
      %c0_135 = arith.constant 0 : index
      %c0_136 = arith.constant 0 : index
      %251 = vector.load %arg6[%c0_134, %c0_135, %c0_136] : memref<4x128x32xbf16, #tpu.memory_space<vmem>>, vector<1x128x32xbf16>
      %252 = vector.shape_cast %251 : vector<1x128x32xbf16> to vector<128x32xbf16>
      %cst_137 = arith.constant dense<0.000000e+00> : vector<16x32xf32>
      %253 = tpu.matmul %249, %252, %cst_137 {dimension_numbers = #tpu.dot_dimension_numbers<[1], [0], [0], [1], [0, 0, 1, 1], [], []>} : vector<16x128xbf16>, vector<128x32xbf16>, vector<16x32xf32> -> vector<16x32xf32>
      %c0_138 = arith.constant 0 : index
      %c0_139 = arith.constant 0 : index
      %c0_140 = arith.constant 0 : index
      %254 = vector.load %arg9[%c0_138, %c0_139, %c0_140] : memref<4x1x32xf32, #tpu.memory_space<vmem>>, vector<1x1x32xf32>
      %255 = vector.shape_cast %254 : vector<1x1x32xf32> to vector<1x32xf32>
      %256 = vector.broadcast %255 : vector<1x32xf32> to vector<16x32xf32>
      %257 = arith.addf %253, %256 : vector<16x32xf32>
      %c0_141 = arith.constant 0 : index
      %c0_142 = arith.constant 0 : index
      %c0_143 = arith.constant 0 : index
      %258 = vector.load %arg7[%c0_141, %c0_142, %c0_143] : memref<4x128x32xbf16, #tpu.memory_space<vmem>>, vector<1x128x32xbf16>
      %259 = vector.shape_cast %258 : vector<1x128x32xbf16> to vector<128x32xbf16>
      %cst_144 = arith.constant dense<0.000000e+00> : vector<16x32xf32>
      %260 = tpu.matmul %249, %259, %cst_144 {dimension_numbers = #tpu.dot_dimension_numbers<[1], [0], [0], [1], [0, 0, 1, 1], [], []>} : vector<16x128xbf16>, vector<128x32xbf16>, vector<16x32xf32> -> vector<16x32xf32>
      %c0_145 = arith.constant 0 : index
      %c0_146 = arith.constant 0 : index
      %c0_147 = arith.constant 0 : index
      %261 = vector.load %arg10[%c0_145, %c0_146, %c0_147] : memref<4x1x32xf32, #tpu.memory_space<vmem>>, vector<1x1x32xf32>
      %262 = vector.shape_cast %261 : vector<1x1x32xf32> to vector<1x32xf32>
      %263 = vector.broadcast %262 : vector<1x32xf32> to vector<16x32xf32>
      %264 = arith.addf %260, %263 : vector<16x32xf32>
      %265 = arith.truncf %257 : vector<16x32xf32> to vector<16x32xbf16>
      %c0_148 = arith.constant 0 : index
      %c0_149 = arith.constant 0 : index
      %c0_150 = arith.constant 0 : index
      %266 = vector.load %arg21[%c0_148, %c0_149, %c0_150] : memref<4x16x32xbf16, #tpu.memory_space<vmem>>, vector<1x16x32xbf16>
      %267 = vector.shape_cast %266 : vector<1x16x32xbf16> to vector<16x32xbf16>
      %268 = vector.shape_cast %265 : vector<16x32xbf16> to vector<1x16x32xbf16>
      tpu.vector_store %arg21[%c0_148, %c0_149, %c0_150], %268 {strides = array<i32>} : memref<4x16x32xbf16, #tpu.memory_space<vmem>>, vector<1x16x32xbf16>,
      %269 = arith.truncf %264 : vector<16x32xf32> to vector<16x32xbf16>
      %c0_151 = arith.constant 0 : index
      %c0_152 = arith.constant 0 : index
      %c0_153 = arith.constant 0 : index
      %270 = vector.load %arg22[%c0_151, %c0_152, %c0_153] : memref<4x16x32xbf16, #tpu.memory_space<vmem>>, vector<1x16x32xbf16>
      %271 = vector.shape_cast %270 : vector<1x16x32xbf16> to vector<16x32xbf16>
      %272 = vector.shape_cast %269 : vector<16x32xbf16> to vector<1x16x32xbf16>
      tpu.vector_store %arg22[%c0_151, %c0_152, %c0_153], %272 {strides = array<i32>} : memref<4x16x32xbf16, #tpu.memory_space<vmem>>, vector<1x16x32xbf16>,
      %c1_154 = arith.constant 1 : index
      %c0_155 = arith.constant 0 : index
      %c0_156 = arith.constant 0 : index
      %273 = vector.load %arg6[%c1_154, %c0_155, %c0_156] : memref<4x128x32xbf16, #tpu.memory_space<vmem>>, vector<1x128x32xbf16>
      %274 = vector.shape_cast %273 : vector<1x128x32xbf16> to vector<128x32xbf16>
      %cst_157 = arith.constant dense<0.000000e+00> : vector<16x32xf32>
      %275 = tpu.matmul %249, %274, %cst_157 {dimension_numbers = #tpu.dot_dimension_numbers<[1], [0], [0], [1], [0, 0, 1, 1], [], []>} : vector<16x128xbf16>, vector<128x32xbf16>, vector<16x32xf32> -> vector<16x32xf32>
      %c1_158 = arith.constant 1 : index
      %c0_159 = arith.constant 0 : index
      %c0_160 = arith.constant 0 : index
      %276 = vector.load %arg9[%c1_158, %c0_159, %c0_160] : memref<4x1x32xf32, #tpu.memory_space<vmem>>, vector<1x1x32xf32>
      %277 = vector.shape_cast %276 : vector<1x1x32xf32> to vector<1x32xf32>
      %278 = vector.broadcast %277 : vector<1x32xf32> to vector<16x32xf32>
      %279 = arith.addf %275, %278 : vector<16x32xf32>
      %c1_161 = arith.constant 1 : index
      %c0_162 = arith.constant 0 : index
      %c0_163 = arith.constant 0 : index
      %280 = vector.load %arg7[%c1_161, %c0_162, %c0_163] : memref<4x128x32xbf16, #tpu.memory_space<vmem>>, vector<1x128x32xbf16>
      %281 = vector.shape_cast %280 : vector<1x128x32xbf16> to vector<128x32xbf16>
      %cst_164 = arith.constant dense<0.000000e+00> : vector<16x32xf32>
      %282 = tpu.matmul %249, %281, %cst_164 {dimension_numbers = #tpu.dot_dimension_numbers<[1], [0], [0], [1], [0, 0, 1, 1], [], []>} : vector<16x128xbf16>, vector<128x32xbf16>, vector<16x32xf32> -> vector<16x32xf32>
      %c1_165 = arith.constant 1 : index
      %c0_166 = arith.constant 0 : index
      %c0_167 = arith.constant 0 : index
      %283 = vector.load %arg10[%c1_165, %c0_166, %c0_167] : memref<4x1x32xf32, #tpu.memory_space<vmem>>, vector<1x1x32xf32>
      %284 = vector.shape_cast %283 : vector<1x1x32xf32> to vector<1x32xf32>
      %285 = vector.broadcast %284 : vector<1x32xf32> to vector<16x32xf32>
      %286 = arith.addf %282, %285 : vector<16x32xf32>
      %287 = arith.truncf %279 : vector<16x32xf32> to vector<16x32xbf16>
      %c1_168 = arith.constant 1 : index
      %c0_169 = arith.constant 0 : index
      %c0_170 = arith.constant 0 : index
      %288 = vector.load %arg21[%c1_168, %c0_169, %c0_170] : memref<4x16x32xbf16, #tpu.memory_space<vmem>>, vector<1x16x32xbf16>
      %289 = vector.shape_cast %288 : vector<1x16x32xbf16> to vector<16x32xbf16>
      %290 = vector.shape_cast %287 : vector<16x32xbf16> to vector<1x16x32xbf16>
      tpu.vector_store %arg21[%c1_168, %c0_169, %c0_170], %290 {strides = array<i32>} : memref<4x16x32xbf16, #tpu.memory_space<vmem>>, vector<1x16x32xbf16>,
      %291 = arith.truncf %286 : vector<16x32xf32> to vector<16x32xbf16>
      %c1_171 = arith.constant 1 : index
      %c0_172 = arith.constant 0 : index
      %c0_173 = arith.constant 0 : index
      %292 = vector.load %arg22[%c1_171, %c0_172, %c0_173] : memref<4x16x32xbf16, #tpu.memory_space<vmem>>, vector<1x16x32xbf16>
      %293 = vector.shape_cast %292 : vector<1x16x32xbf16> to vector<16x32xbf16>
      %294 = vector.shape_cast %291 : vector<16x32xbf16> to vector<1x16x32xbf16>
      tpu.vector_store %arg22[%c1_171, %c0_172, %c0_173], %294 {strides = array<i32>} : memref<4x16x32xbf16, #tpu.memory_space<vmem>>, vector<1x16x32xbf16>,
      %c2_174 = arith.constant 2 : index
      %c0_175 = arith.constant 0 : index
      %c0_176 = arith.constant 0 : index
      %295 = vector.load %arg6[%c2_174, %c0_175, %c0_176] : memref<4x128x32xbf16, #tpu.memory_space<vmem>>, vector<1x128x32xbf16>
      %296 = vector.shape_cast %295 : vector<1x128x32xbf16> to vector<128x32xbf16>
      %cst_177 = arith.constant dense<0.000000e+00> : vector<16x32xf32>
      %297 = tpu.matmul %249, %296, %cst_177 {dimension_numbers = #tpu.dot_dimension_numbers<[1], [0], [0], [1], [0, 0, 1, 1], [], []>} : vector<16x128xbf16>, vector<128x32xbf16>, vector<16x32xf32> -> vector<16x32xf32>
      %c2_178 = arith.constant 2 : index
      %c0_179 = arith.constant 0 : index
      %c0_180 = arith.constant 0 : index
      %298 = vector.load %arg9[%c2_178, %c0_179, %c0_180] : memref<4x1x32xf32, #tpu.memory_space<vmem>>, vector<1x1x32xf32>
      %299 = vector.shape_cast %298 : vector<1x1x32xf32> to vector<1x32xf32>
      %300 = vector.broadcast %299 : vector<1x32xf32> to vector<16x32xf32>
      %301 = arith.addf %297, %300 : vector<16x32xf32>
      %c2_181 = arith.constant 2 : index
      %c0_182 = arith.constant 0 : index
      %c0_183 = arith.constant 0 : index
      %302 = vector.load %arg7[%c2_181, %c0_182, %c0_183] : memref<4x128x32xbf16, #tpu.memory_space<vmem>>, vector<1x128x32xbf16>
      %303 = vector.shape_cast %302 : vector<1x128x32xbf16> to vector<128x32xbf16>
      %cst_184 = arith.constant dense<0.000000e+00> : vector<16x32xf32>
      %304 = tpu.matmul %249, %303, %cst_184 {dimension_numbers = #tpu.dot_dimension_numbers<[1], [0], [0], [1], [0, 0, 1, 1], [], []>} : vector<16x128xbf16>, vector<128x32xbf16>, vector<16x32xf32> -> vector<16x32xf32>
      %c2_185 = arith.constant 2 : index
      %c0_186 = arith.constant 0 : index
      %c0_187 = arith.constant 0 : index
      %305 = vector.load %arg10[%c2_185, %c0_186, %c0_187] : memref<4x1x32xf32, #tpu.memory_space<vmem>>, vector<1x1x32xf32>
      %306 = vector.shape_cast %305 : vector<1x1x32xf32> to vector<1x32xf32>
      %307 = vector.broadcast %306 : vector<1x32xf32> to vector<16x32xf32>
      %308 = arith.addf %304, %307 : vector<16x32xf32>
      %309 = arith.truncf %301 : vector<16x32xf32> to vector<16x32xbf16>
      %c2_188 = arith.constant 2 : index
      %c0_189 = arith.constant 0 : index
      %c0_190 = arith.constant 0 : index
      %310 = vector.load %arg21[%c2_188, %c0_189, %c0_190] : memref<4x16x32xbf16, #tpu.memory_space<vmem>>, vector<1x16x32xbf16>
      %311 = vector.shape_cast %310 : vector<1x16x32xbf16> to vector<16x32xbf16>
      %312 = vector.shape_cast %309 : vector<16x32xbf16> to vector<1x16x32xbf16>
      tpu.vector_store %arg21[%c2_188, %c0_189, %c0_190], %312 {strides = array<i32>} : memref<4x16x32xbf16, #tpu.memory_space<vmem>>, vector<1x16x32xbf16>,
      %313 = arith.truncf %308 : vector<16x32xf32> to vector<16x32xbf16>
      %c2_191 = arith.constant 2 : index
      %c0_192 = arith.constant 0 : index
      %c0_193 = arith.constant 0 : index
      %314 = vector.load %arg22[%c2_191, %c0_192, %c0_193] : memref<4x16x32xbf16, #tpu.memory_space<vmem>>, vector<1x16x32xbf16>
      %315 = vector.shape_cast %314 : vector<1x16x32xbf16> to vector<16x32xbf16>
      %316 = vector.shape_cast %313 : vector<16x32xbf16> to vector<1x16x32xbf16>
      tpu.vector_store %arg22[%c2_191, %c0_192, %c0_193], %316 {strides = array<i32>} : memref<4x16x32xbf16, #tpu.memory_space<vmem>>, vector<1x16x32xbf16>,
      %c3_194 = arith.constant 3 : index
      %c0_195 = arith.constant 0 : index
      %c0_196 = arith.constant 0 : index
      %317 = vector.load %arg6[%c3_194, %c0_195, %c0_196] : memref<4x128x32xbf16, #tpu.memory_space<vmem>>, vector<1x128x32xbf16>
      %318 = vector.shape_cast %317 : vector<1x128x32xbf16> to vector<128x32xbf16>
      %cst_197 = arith.constant dense<0.000000e+00> : vector<16x32xf32>
      %319 = tpu.matmul %249, %318, %cst_197 {dimension_numbers = #tpu.dot_dimension_numbers<[1], [0], [0], [1], [0, 0, 1, 1], [], []>} : vector<16x128xbf16>, vector<128x32xbf16>, vector<16x32xf32> -> vector<16x32xf32>
      %c3_198 = arith.constant 3 : index
      %c0_199 = arith.constant 0 : index
      %c0_200 = arith.constant 0 : index
      %320 = vector.load %arg9[%c3_198, %c0_199, %c0_200] : memref<4x1x32xf32, #tpu.memory_space<vmem>>, vector<1x1x32xf32>
      %321 = vector.shape_cast %320 : vector<1x1x32xf32> to vector<1x32xf32>
      %322 = vector.broadcast %321 : vector<1x32xf32> to vector<16x32xf32>
      %323 = arith.addf %319, %322 : vector<16x32xf32>
      %c3_201 = arith.constant 3 : index
      %c0_202 = arith.constant 0 : index
      %c0_203 = arith.constant 0 : index
      %324 = vector.load %arg7[%c3_201, %c0_202, %c0_203] : memref<4x128x32xbf16, #tpu.memory_space<vmem>>, vector<1x128x32xbf16>
      %325 = vector.shape_cast %324 : vector<1x128x32xbf16> to vector<128x32xbf16>
      %cst_204 = arith.constant dense<0.000000e+00> : vector<16x32xf32>
      %326 = tpu.matmul %249, %325, %cst_204 {dimension_numbers = #tpu.dot_dimension_numbers<[1], [0], [0], [1], [0, 0, 1, 1], [], []>} : vector<16x128xbf16>, vector<128x32xbf16>, vector<16x32xf32> -> vector<16x32xf32>
      %c3_205 = arith.constant 3 : index
      %c0_206 = arith.constant 0 : index
      %c0_207 = arith.constant 0 : index
      %327 = vector.load %arg10[%c3_205, %c0_206, %c0_207] : memref<4x1x32xf32, #tpu.memory_space<vmem>>, vector<1x1x32xf32>
      %328 = vector.shape_cast %327 : vector<1x1x32xf32> to vector<1x32xf32>
      %329 = vector.broadcast %328 : vector<1x32xf32> to vector<16x32xf32>
      %330 = arith.addf %326, %329 : vector<16x32xf32>
      %331 = arith.truncf %323 : vector<16x32xf32> to vector<16x32xbf16>
      %c3_208 = arith.constant 3 : index
      %c0_209 = arith.constant 0 : index
      %c0_210 = arith.constant 0 : index
      %332 = vector.load %arg21[%c3_208, %c0_209, %c0_210] : memref<4x16x32xbf16, #tpu.memory_space<vmem>>, vector<1x16x32xbf16>
      %333 = vector.shape_cast %332 : vector<1x16x32xbf16> to vector<16x32xbf16>
      %334 = vector.shape_cast %331 : vector<16x32xbf16> to vector<1x16x32xbf16>
      tpu.vector_store %arg21[%c3_208, %c0_209, %c0_210], %334 {strides = array<i32>} : memref<4x16x32xbf16, #tpu.memory_space<vmem>>, vector<1x16x32xbf16>,
      %335 = arith.truncf %330 : vector<16x32xf32> to vector<16x32xbf16>
      %c3_211 = arith.constant 3 : index
      %c0_212 = arith.constant 0 : index
      %c0_213 = arith.constant 0 : index
      %336 = vector.load %arg22[%c3_211, %c0_212, %c0_213] : memref<4x16x32xbf16, #tpu.memory_space<vmem>>, vector<1x16x32xbf16>
      %337 = vector.shape_cast %336 : vector<1x16x32xbf16> to vector<16x32xbf16>
      %338 = vector.shape_cast %335 : vector<16x32xbf16> to vector<1x16x32xbf16>
      tpu.vector_store %arg22[%c3_211, %c0_212, %c0_213], %338 {strides = array<i32>} : memref<4x16x32xbf16, #tpu.memory_space<vmem>>, vector<1x16x32xbf16>,
    } else {
    }
    %c8_i32 = arith.constant 8 : i32
    %3 = arith.muli %arg1, %c8_i32 : i32
    %4 = tpu.assume_multiple %3, 8 : i32
    %c0 = arith.constant 0 : index
    %5 = arith.index_cast %4 : i32 to index
    %c0_1 = arith.constant 0 : index
    %6 = vector.load %arg2[%c0, %5, %c0_1] : memref<1x16x128xf32, #tpu.memory_space<vmem>>, vector<1x8x128xf32>
    %7 = vector.shape_cast %6 : vector<1x8x128xf32> to vector<8x128xf32>
    %8 = arith.index_cast %4 : i32 to index
    %c0_2 = arith.constant 0 : index
    %9 = vector.load %arg20[%8, %c0_2] : memref<16x128xbf16, #tpu.memory_space<vmem>>, vector<8x128xbf16>
    %10 = tpu.iota {dimensions = array<i32: 0>} : vector<8x16xi32>
    %11 = vector.broadcast %4 : i32 to vector<8x16xi32>
    %12 = arith.addi %10, %11 : vector<8x16xi32>
    %13 = tpu.iota {dimensions = array<i32: 1>} : vector<8x16xi32>
    %14 = arith.cmpi sge, %12, %13 : vector<8x16xi32>
    %cst = arith.constant 0.000000e+00 : f32
    %15 = vector.broadcast %cst : f32 to vector<8x128xf32>
    %c0_3 = arith.constant 0 : index
    %c0_4 = arith.constant 0 : index
    %c0_5 = arith.constant 0 : index
    %16 = vector.load %arg5[%c0_3, %c0_4, %c0_5] : memref<4x128x32xbf16, #tpu.memory_space<vmem>>, vector<1x128x32xbf16>
    %17 = vector.shape_cast %16 : vector<1x128x32xbf16> to vector<128x32xbf16>
    %cst_6 = arith.constant dense<0.000000e+00> : vector<8x32xf32>
    %18 = tpu.matmul %9, %17, %cst_6 {dimension_numbers = #tpu.dot_dimension_numbers<[1], [0], [0], [1], [0, 0, 1, 1], [], []>} : vector<8x128xbf16>, vector<128x32xbf16>, vector<8x32xf32> -> vector<8x32xf32>
    %c0_7 = arith.constant 0 : index
    %c0_8 = arith.constant 0 : index
    %c0_9 = arith.constant 0 : index
    %19 = vector.load %arg8[%c0_7, %c0_8, %c0_9] : memref<4x1x32xf32, #tpu.memory_space<vmem>>, vector<1x1x32xf32>
    %20 = vector.shape_cast %19 : vector<1x1x32xf32> to vector<1x32xf32>
    %21 = vector.broadcast %20 : vector<1x32xf32> to vector<8x32xf32>
    %22 = arith.addf %18, %21 : vector<8x32xf32>
    %23 = arith.truncf %22 : vector<8x32xf32> to vector<8x32xbf16>
    %c0_10 = arith.constant 0 : index
    %c0_11 = arith.constant 0 : index
    %c0_12 = arith.constant 0 : index
    %24 = vector.load %arg21[%c0_10, %c0_11, %c0_12] : memref<4x16x32xbf16, #tpu.memory_space<vmem>>, vector<1x16x32xbf16>
    %25 = vector.shape_cast %24 : vector<1x16x32xbf16> to vector<16x32xbf16>
    "tpu.trace_start"() <{level = 10 : i32, message = "td,sd->ts"}> : () -> ()
    %cst_13 = arith.constant dense<0.000000e+00> : vector<8x16xf32>
    %26 = tpu.matmul %23, %25, %cst_13 {dimension_numbers = #tpu.dot_dimension_numbers<[1], [1], [0], [0], [0, 0, 1, 0], [], []>} : vector<8x32xbf16>, vector<16x32xbf16>, vector<8x16xf32> -> vector<8x16xf32>
    "tpu.trace_stop"() : () -> ()
    %cst_14 = arith.constant 0.176776692 : f32
    %27 = vector.broadcast %cst_14 : f32 to vector<8x16xf32>
    %28 = arith.mulf %26, %27 : vector<8x16xf32>
    %cst_15 = arith.constant -1.000000e+30 : f32
    %29 = vector.broadcast %cst_15 : f32 to vector<8x16xf32>
    %30 = arith.select %14, %28, %29 : vector<8x16xi1>, vector<8x16xf32>
    %cst_16 = arith.constant dense<0xFF800000> : vector<8xf32>
    %31 = vector.multi_reduction <maximumf>, %30, %cst_16 [1] : vector<8x16xf32> to vector<8xf32>
    %32 = vector.shape_cast %31 : vector<8xf32> to vector<8x1xf32>
    %33 = vector.broadcast %32 : vector<8x1xf32> to vector<8x16xf32>
    %34 = arith.subf %30, %33 : vector<8x16xf32>
    %35 = math.exp %34 : vector<8x16xf32>
    %cst_17 = arith.constant dense<0.000000e+00> : vector<8xf32>
    %36 = vector.multi_reduction <add>, %35, %cst_17 [1] : vector<8x16xf32> to vector<8xf32>
    %37 = vector.shape_cast %36 : vector<8xf32> to vector<8x1xf32>
    %38 = arith.truncf %35 : vector<8x16xf32> to vector<8x16xbf16>
    %c0_18 = arith.constant 0 : index
    %c0_19 = arith.constant 0 : index
    %c0_20 = arith.constant 0 : index
    %39 = vector.load %arg22[%c0_18, %c0_19, %c0_20] : memref<4x16x32xbf16, #tpu.memory_space<vmem>>, vector<1x16x32xbf16>
    %40 = vector.shape_cast %39 : vector<1x16x32xbf16> to vector<16x32xbf16>
    %cst_21 = arith.constant dense<0.000000e+00> : vector<8x32xf32>
    %41 = tpu.matmul %38, %40, %cst_21 {dimension_numbers = #tpu.dot_dimension_numbers<[1], [0], [0], [1], [0, 0, 1, 1], [], []>} : vector<8x16xbf16>, vector<16x32xbf16>, vector<8x32xf32> -> vector<8x32xf32>
    %42 = tpu.reciprocal %37 {approx = true} : vector<8x1xf32> -> vector<8x1xf32>
    %43 = vector.broadcast %42 : vector<8x1xf32> to vector<8x32xf32>
    %44 = arith.mulf %41, %43 : vector<8x32xf32>
    %45 = arith.truncf %44 : vector<8x32xf32> to vector<8x32xbf16>
    %c0_22 = arith.constant 0 : index
    %c0_23 = arith.constant 0 : index
    %c0_24 = arith.constant 0 : index
    %46 = vector.load %arg11[%c0_22, %c0_23, %c0_24] : memref<4x32x128xbf16, #tpu.memory_space<vmem>>, vector<1x32x128xbf16>
    %47 = vector.shape_cast %46 : vector<1x32x128xbf16> to vector<32x128xbf16>
    %cst_25 = arith.constant dense<0.000000e+00> : vector<8x128xf32>
    %48 = tpu.matmul %45, %47, %cst_25 {dimension_numbers = #tpu.dot_dimension_numbers<[1], [0], [0], [1], [0, 0, 1, 1], [], []>} : vector<8x32xbf16>, vector<32x128xbf16>, vector<8x128xf32> -> vector<8x128xf32>
    %49 = arith.addf %15, %48 : vector<8x128xf32>
    %c1 = arith.constant 1 : index
    %c0_26 = arith.constant 0 : index
    %c0_27 = arith.constant 0 : index
    %50 = vector.load %arg5[%c1, %c0_26, %c0_27] : memref<4x128x32xbf16, #tpu.memory_space<vmem>>, vector<1x128x32xbf16>
    %51 = vector.shape_cast %50 : vector<1x128x32xbf16> to vector<128x32xbf16>
    %cst_28 = arith.constant dense<0.000000e+00> : vector<8x32xf32>
    %52 = tpu.matmul %9, %51, %cst_28 {dimension_numbers = #tpu.dot_dimension_numbers<[1], [0], [0], [1], [0, 0, 1, 1], [], []>} : vector<8x128xbf16>, vector<128x32xbf16>, vector<8x32xf32> -> vector<8x32xf32>
    %c1_29 = arith.constant 1 : index
    %c0_30 = arith.constant 0 : index
    %c0_31 = arith.constant 0 : index
    %53 = vector.load %arg8[%c1_29, %c0_30, %c0_31] : memref<4x1x32xf32, #tpu.memory_space<vmem>>, vector<1x1x32xf32>
    %54 = vector.shape_cast %53 : vector<1x1x32xf32> to vector<1x32xf32>
    %55 = vector.broadcast %54 : vector<1x32xf32> to vector<8x32xf32>
    %56 = arith.addf %52, %55 : vector<8x32xf32>
    %57 = arith.truncf %56 : vector<8x32xf32> to vector<8x32xbf16>
    %c1_32 = arith.constant 1 : index
    %c0_33 = arith.constant 0 : index
    %c0_34 = arith.constant 0 : index
    %58 = vector.load %arg21[%c1_32, %c0_33, %c0_34] : memref<4x16x32xbf16, #tpu.memory_space<vmem>>, vector<1x16x32xbf16>
    %59 = vector.shape_cast %58 : vector<1x16x32xbf16> to vector<16x32xbf16>
    "tpu.trace_start"() <{level = 10 : i32, message = "td,sd->ts"}> : () -> ()
    %cst_35 = arith.constant dense<0.000000e+00> : vector<8x16xf32>
    %60 = tpu.matmul %57, %59, %cst_35 {dimension_numbers = #tpu.dot_dimension_numbers<[1], [1], [0], [0], [0, 0, 1, 0], [], []>} : vector<8x32xbf16>, vector<16x32xbf16>, vector<8x16xf32> -> vector<8x16xf32>
    "tpu.trace_stop"() : () -> ()
    %cst_36 = arith.constant 0.176776692 : f32
    %61 = vector.broadcast %cst_36 : f32 to vector<8x16xf32>
    %62 = arith.mulf %60, %61 : vector<8x16xf32>
    %cst_37 = arith.constant -1.000000e+30 : f32
    %63 = vector.broadcast %cst_37 : f32 to vector<8x16xf32>
    %64 = arith.select %14, %62, %63 : vector<8x16xi1>, vector<8x16xf32>
    %cst_38 = arith.constant dense<0xFF800000> : vector<8xf32>
    %65 = vector.multi_reduction <maximumf>, %64, %cst_38 [1] : vector<8x16xf32> to vector<8xf32>
    %66 = vector.shape_cast %65 : vector<8xf32> to vector<8x1xf32>
    %67 = vector.broadcast %66 : vector<8x1xf32> to vector<8x16xf32>
    %68 = arith.subf %64, %67 : vector<8x16xf32>
    %69 = math.exp %68 : vector<8x16xf32>
    %cst_39 = arith.constant dense<0.000000e+00> : vector<8xf32>
    %70 = vector.multi_reduction <add>, %69, %cst_39 [1] : vector<8x16xf32> to vector<8xf32>
    %71 = vector.shape_cast %70 : vector<8xf32> to vector<8x1xf32>
    %72 = arith.truncf %69 : vector<8x16xf32> to vector<8x16xbf16>
    %c1_40 = arith.constant 1 : index
    %c0_41 = arith.constant 0 : index
    %c0_42 = arith.constant 0 : index
    %73 = vector.load %arg22[%c1_40, %c0_41, %c0_42] : memref<4x16x32xbf16, #tpu.memory_space<vmem>>, vector<1x16x32xbf16>
    %74 = vector.shape_cast %73 : vector<1x16x32xbf16> to vector<16x32xbf16>
    %cst_43 = arith.constant dense<0.000000e+00> : vector<8x32xf32>
    %75 = tpu.matmul %72, %74, %cst_43 {dimension_numbers = #tpu.dot_dimension_numbers<[1], [0], [0], [1], [0, 0, 1, 1], [], []>} : vector<8x16xbf16>, vector<16x32xbf16>, vector<8x32xf32> -> vector<8x32xf32>
    %76 = tpu.reciprocal %71 {approx = true} : vector<8x1xf32> -> vector<8x1xf32>
    %77 = vector.broadcast %76 : vector<8x1xf32> to vector<8x32xf32>
    %78 = arith.mulf %75, %77 : vector<8x32xf32>
    %79 = arith.truncf %78 : vector<8x32xf32> to vector<8x32xbf16>
    %c1_44 = arith.constant 1 : index
    %c0_45 = arith.constant 0 : index
    %c0_46 = arith.constant 0 : index
    %80 = vector.load %arg11[%c1_44, %c0_45, %c0_46] : memref<4x32x128xbf16, #tpu.memory_space<vmem>>, vector<1x32x128xbf16>
    %81 = vector.shape_cast %80 : vector<1x32x128xbf16> to vector<32x128xbf16>
    %cst_47 = arith.constant dense<0.000000e+00> : vector<8x128xf32>
    %82 = tpu.matmul %79, %81, %cst_47 {dimension_numbers = #tpu.dot_dimension_numbers<[1], [0], [0], [1], [0, 0, 1, 1], [], []>} : vector<8x32xbf16>, vector<32x128xbf16>, vector<8x128xf32> -> vector<8x128xf32>
    %83 = arith.addf %49, %82 : vector<8x128xf32>
    %c2 = arith.constant 2 : index
    %c0_48 = arith.constant 0 : index
    %c0_49 = arith.constant 0 : index
    %84 = vector.load %arg5[%c2, %c0_48, %c0_49] : memref<4x128x32xbf16, #tpu.memory_space<vmem>>, vector<1x128x32xbf16>
    %85 = vector.shape_cast %84 : vector<1x128x32xbf16> to vector<128x32xbf16>
    %cst_50 = arith.constant dense<0.000000e+00> : vector<8x32xf32>
    %86 = tpu.matmul %9, %85, %cst_50 {dimension_numbers = #tpu.dot_dimension_numbers<[1], [0], [0], [1], [0, 0, 1, 1], [], []>} : vector<8x128xbf16>, vector<128x32xbf16>, vector<8x32xf32> -> vector<8x32xf32>
    %c2_51 = arith.constant 2 : index
    %c0_52 = arith.constant 0 : index
    %c0_53 = arith.constant 0 : index
    %87 = vector.load %arg8[%c2_51, %c0_52, %c0_53] : memref<4x1x32xf32, #tpu.memory_space<vmem>>, vector<1x1x32xf32>
    %88 = vector.shape_cast %87 : vector<1x1x32xf32> to vector<1x32xf32>
    %89 = vector.broadcast %88 : vector<1x32xf32> to vector<8x32xf32>
    %90 = arith.addf %86, %89 : vector<8x32xf32>
    %91 = arith.truncf %90 : vector<8x32xf32> to vector<8x32xbf16>
    %c2_54 = arith.constant 2 : index
    %c0_55 = arith.constant 0 : index
    %c0_56 = arith.constant 0 : index
    %92 = vector.load %arg21[%c2_54, %c0_55, %c0_56] : memref<4x16x32xbf16, #tpu.memory_space<vmem>>, vector<1x16x32xbf16>
    %93 = vector.shape_cast %92 : vector<1x16x32xbf16> to vector<16x32xbf16>
    "tpu.trace_start"() <{level = 10 : i32, message = "td,sd->ts"}> : () -> ()
    %cst_57 = arith.constant dense<0.000000e+00> : vector<8x16xf32>
    %94 = tpu.matmul %91, %93, %cst_57 {dimension_numbers = #tpu.dot_dimension_numbers<[1], [1], [0], [0], [0, 0, 1, 0], [], []>} : vector<8x32xbf16>, vector<16x32xbf16>, vector<8x16xf32> -> vector<8x16xf32>
    "tpu.trace_stop"() : () -> ()
    %cst_58 = arith.constant 0.176776692 : f32
    %95 = vector.broadcast %cst_58 : f32 to vector<8x16xf32>
    %96 = arith.mulf %94, %95 : vector<8x16xf32>
    %cst_59 = arith.constant -1.000000e+30 : f32
    %97 = vector.broadcast %cst_59 : f32 to vector<8x16xf32>
    %98 = arith.select %14, %96, %97 : vector<8x16xi1>, vector<8x16xf32>
    %cst_60 = arith.constant dense<0xFF800000> : vector<8xf32>
    %99 = vector.multi_reduction <maximumf>, %98, %cst_60 [1] : vector<8x16xf32> to vector<8xf32>
    %100 = vector.shape_cast %99 : vector<8xf32> to vector<8x1xf32>
    %101 = vector.broadcast %100 : vector<8x1xf32> to vector<8x16xf32>
    %102 = arith.subf %98, %101 : vector<8x16xf32>
    %103 = math.exp %102 : vector<8x16xf32>
    %cst_61 = arith.constant dense<0.000000e+00> : vector<8xf32>
    %104 = vector.multi_reduction <add>, %103, %cst_61 [1] : vector<8x16xf32> to vector<8xf32>
    %105 = vector.shape_cast %104 : vector<8xf32> to vector<8x1xf32>
    %106 = arith.truncf %103 : vector<8x16xf32> to vector<8x16xbf16>
    %c2_62 = arith.constant 2 : index
    %c0_63 = arith.constant 0 : index
    %c0_64 = arith.constant 0 : index
    %107 = vector.load %arg22[%c2_62, %c0_63, %c0_64] : memref<4x16x32xbf16, #tpu.memory_space<vmem>>, vector<1x16x32xbf16>
    %108 = vector.shape_cast %107 : vector<1x16x32xbf16> to vector<16x32xbf16>
    %cst_65 = arith.constant dense<0.000000e+00> : vector<8x32xf32>
    %109 = tpu.matmul %106, %108, %cst_65 {dimension_numbers = #tpu.dot_dimension_numbers<[1], [0], [0], [1], [0, 0, 1, 1], [], []>} : vector<8x16xbf16>, vector<16x32xbf16>, vector<8x32xf32> -> vector<8x32xf32>
    %110 = tpu.reciprocal %105 {approx = true} : vector<8x1xf32> -> vector<8x1xf32>
    %111 = vector.broadcast %110 : vector<8x1xf32> to vector<8x32xf32>
    %112 = arith.mulf %109, %111 : vector<8x32xf32>
    %113 = arith.truncf %112 : vector<8x32xf32> to vector<8x32xbf16>
    %c2_66 = arith.constant 2 : index
    %c0_67 = arith.constant 0 : index
    %c0_68 = arith.constant 0 : index
    %114 = vector.load %arg11[%c2_66, %c0_67, %c0_68] : memref<4x32x128xbf16, #tpu.memory_space<vmem>>, vector<1x32x128xbf16>
    %115 = vector.shape_cast %114 : vector<1x32x128xbf16> to vector<32x128xbf16>
    %cst_69 = arith.constant dense<0.000000e+00> : vector<8x128xf32>
    %116 = tpu.matmul %113, %115, %cst_69 {dimension_numbers = #tpu.dot_dimension_numbers<[1], [0], [0], [1], [0, 0, 1, 1], [], []>} : vector<8x32xbf16>, vector<32x128xbf16>, vector<8x128xf32> -> vector<8x128xf32>
    %117 = arith.addf %83, %116 : vector<8x128xf32>
    %c3 = arith.constant 3 : index
    %c0_70 = arith.constant 0 : index
    %c0_71 = arith.constant 0 : index
    %118 = vector.load %arg5[%c3, %c0_70, %c0_71] : memref<4x128x32xbf16, #tpu.memory_space<vmem>>, vector<1x128x32xbf16>
    %119 = vector.shape_cast %118 : vector<1x128x32xbf16> to vector<128x32xbf16>
    %cst_72 = arith.constant dense<0.000000e+00> : vector<8x32xf32>
    %120 = tpu.matmul %9, %119, %cst_72 {dimension_numbers = #tpu.dot_dimension_numbers<[1], [0], [0], [1], [0, 0, 1, 1], [], []>} : vector<8x128xbf16>, vector<128x32xbf16>, vector<8x32xf32> -> vector<8x32xf32>
    %c3_73 = arith.constant 3 : index
    %c0_74 = arith.constant 0 : index
    %c0_75 = arith.constant 0 : index
    %121 = vector.load %arg8[%c3_73, %c0_74, %c0_75] : memref<4x1x32xf32, #tpu.memory_space<vmem>>, vector<1x1x32xf32>
    %122 = vector.shape_cast %121 : vector<1x1x32xf32> to vector<1x32xf32>
    %123 = vector.broadcast %122 : vector<1x32xf32> to vector<8x32xf32>
    %124 = arith.addf %120, %123 : vector<8x32xf32>
    %125 = arith.truncf %124 : vector<8x32xf32> to vector<8x32xbf16>
    %c3_76 = arith.constant 3 : index
    %c0_77 = arith.constant 0 : index
    %c0_78 = arith.constant 0 : index
    %126 = vector.load %arg21[%c3_76, %c0_77, %c0_78] : memref<4x16x32xbf16, #tpu.memory_space<vmem>>, vector<1x16x32xbf16>
    %127 = vector.shape_cast %126 : vector<1x16x32xbf16> to vector<16x32xbf16>
    "tpu.trace_start"() <{level = 10 : i32, message = "td,sd->ts"}> : () -> ()
    %cst_79 = arith.constant dense<0.000000e+00> : vector<8x16xf32>
    %128 = tpu.matmul %125, %127, %cst_79 {dimension_numbers = #tpu.dot_dimension_numbers<[1], [1], [0], [0], [0, 0, 1, 0], [], []>} : vector<8x32xbf16>, vector<16x32xbf16>, vector<8x16xf32> -> vector<8x16xf32>
    "tpu.trace_stop"() : () -> ()
    %cst_80 = arith.constant 0.176776692 : f32
    %129 = vector.broadcast %cst_80 : f32 to vector<8x16xf32>
    %130 = arith.mulf %128, %129 : vector<8x16xf32>
    %cst_81 = arith.constant -1.000000e+30 : f32
    %131 = vector.broadcast %cst_81 : f32 to vector<8x16xf32>
    %132 = arith.select %14, %130, %131 : vector<8x16xi1>, vector<8x16xf32>
    %cst_82 = arith.constant dense<0xFF800000> : vector<8xf32>
    %133 = vector.multi_reduction <maximumf>, %132, %cst_82 [1] : vector<8x16xf32> to vector<8xf32>
    %134 = vector.shape_cast %133 : vector<8xf32> to vector<8x1xf32>
    %135 = vector.broadcast %134 : vector<8x1xf32> to vector<8x16xf32>
    %136 = arith.subf %132, %135 : vector<8x16xf32>
    %137 = math.exp %136 : vector<8x16xf32>
    %cst_83 = arith.constant dense<0.000000e+00> : vector<8xf32>
    %138 = vector.multi_reduction <add>, %137, %cst_83 [1] : vector<8x16xf32> to vector<8xf32>
    %139 = vector.shape_cast %138 : vector<8xf32> to vector<8x1xf32>
    %140 = arith.truncf %137 : vector<8x16xf32> to vector<8x16xbf16>
    %c3_84 = arith.constant 3 : index
    %c0_85 = arith.constant 0 : index
    %c0_86 = arith.constant 0 : index
    %141 = vector.load %arg22[%c3_84, %c0_85, %c0_86] : memref<4x16x32xbf16, #tpu.memory_space<vmem>>, vector<1x16x32xbf16>
    %142 = vector.shape_cast %141 : vector<1x16x32xbf16> to vector<16x32xbf16>
    %cst_87 = arith.constant dense<0.000000e+00> : vector<8x32xf32>
    %143 = tpu.matmul %140, %142, %cst_87 {dimension_numbers = #tpu.dot_dimension_numbers<[1], [0], [0], [1], [0, 0, 1, 1], [], []>} : vector<8x16xbf16>, vector<16x32xbf16>, vector<8x32xf32> -> vector<8x32xf32>
    %144 = tpu.reciprocal %139 {approx = true} : vector<8x1xf32> -> vector<8x1xf32>
    %145 = vector.broadcast %144 : vector<8x1xf32> to vector<8x32xf32>
    %146 = arith.mulf %143, %145 : vector<8x32xf32>
    %147 = arith.truncf %146 : vector<8x32xf32> to vector<8x32xbf16>
    %c3_88 = arith.constant 3 : index
    %c0_89 = arith.constant 0 : index
    %c0_90 = arith.constant 0 : index
    %148 = vector.load %arg11[%c3_88, %c0_89, %c0_90] : memref<4x32x128xbf16, #tpu.memory_space<vmem>>, vector<1x32x128xbf16>
    %149 = vector.shape_cast %148 : vector<1x32x128xbf16> to vector<32x128xbf16>
    %cst_91 = arith.constant dense<0.000000e+00> : vector<8x128xf32>
    %150 = tpu.matmul %147, %149, %cst_91 {dimension_numbers = #tpu.dot_dimension_numbers<[1], [0], [0], [1], [0, 0, 1, 1], [], []>} : vector<8x32xbf16>, vector<32x128xbf16>, vector<8x128xf32> -> vector<8x128xf32>
    %151 = arith.addf %117, %150 : vector<8x128xf32>
    %c0_92 = arith.constant 0 : index
    %c0_93 = arith.constant 0 : index
    %152 = vector.load %arg12[%c0_92, %c0_93] : memref<1x128xf32, #tpu.memory_space<vmem>>, vector<1x128xf32>
    %153 = vector.shape_cast %152 : vector<1x128xf32> to vector<128xf32>
    %154 = vector.shape_cast %153 : vector<128xf32> to vector<1x128xf32>
    %155 = vector.broadcast %154 : vector<1x128xf32> to vector<8x128xf32>
    %156 = arith.addf %151, %155 : vector<8x128xf32>
    %157 = arith.addf %7, %156 : vector<8x128xf32>
    %c0_94 = arith.constant 0 : index
    %c0_95 = arith.constant 0 : index
    %158 = vector.load %arg13[%c0_94, %c0_95] : memref<1x128xf32, #tpu.memory_space<vmem>>, vector<1x128xf32>
    %159 = vector.shape_cast %158 : vector<1x128xf32> to vector<128xf32>
    %c0_96 = arith.constant 0 : index
    %c0_97 = arith.constant 0 : index
    %160 = vector.load %arg14[%c0_96, %c0_97] : memref<1x128xf32, #tpu.memory_space<vmem>>, vector<1x128xf32>
    %161 = vector.shape_cast %160 : vector<1x128xf32> to vector<128xf32>
    %cst_98 = arith.constant dense<0.000000e+00> : vector<8xf32>
    %162 = vector.multi_reduction <add>, %157, %cst_98 [1] : vector<8x128xf32> to vector<8xf32>
    %163 = vector.shape_cast %162 : vector<8xf32> to vector<8x1xf32>
    %cst_99 = arith.constant 1.280000e+02 : f32
    %164 = vector.broadcast %cst_99 : f32 to vector<8x1xf32>
    %165 = arith.divf %163, %164 : vector<8x1xf32>
    %166 = vector.broadcast %165 : vector<8x1xf32> to vector<8x128xf32>
    %167 = arith.subf %157, %166 : vector<8x128xf32>
    %168 = arith.mulf %167, %167 : vector<8x128xf32>
    %cst_100 = arith.constant dense<0.000000e+00> : vector<8xf32>
    %169 = vector.multi_reduction <add>, %168, %cst_100 [1] : vector<8x128xf32> to vector<8xf32>
    %170 = vector.shape_cast %169 : vector<8xf32> to vector<8x1xf32>
    %cst_101 = arith.constant 1.280000e+02 : f32
    %171 = vector.broadcast %cst_101 : f32 to vector<8x1xf32>
    %172 = arith.divf %170, %171 : vector<8x1xf32>
    %173 = vector.broadcast %165 : vector<8x1xf32> to vector<8x128xf32>
    %174 = arith.subf %157, %173 : vector<8x128xf32>
    %cst_102 = arith.constant 9.99999974E-6 : f32
    %175 = vector.broadcast %cst_102 : f32 to vector<8x1xf32>
    %176 = arith.addf %172, %175 : vector<8x1xf32>
    %177 = math.rsqrt %176 : vector<8x1xf32>
    %178 = vector.broadcast %177 : vector<8x1xf32> to vector<8x128xf32>
    %179 = arith.mulf %174, %178 : vector<8x128xf32>
    %180 = vector.shape_cast %159 : vector<128xf32> to vector<1x128xf32>
    %181 = vector.broadcast %180 : vector<1x128xf32> to vector<8x128xf32>
    %182 = arith.mulf %179, %181 : vector<8x128xf32>
    %183 = vector.shape_cast %161 : vector<128xf32> to vector<1x128xf32>
    %184 = vector.broadcast %183 : vector<1x128xf32> to vector<8x128xf32>
    %185 = arith.addf %182, %184 : vector<8x128xf32>
    %186 = arith.truncf %185 : vector<8x128xf32> to vector<8x128xbf16>
    %c0_103 = arith.constant 0 : index
    %c0_104 = arith.constant 0 : index
    %187 = vector.load %arg15[%c0_103, %c0_104] : memref<128x512xbf16, #tpu.memory_space<vmem>>, vector<128x512xbf16>
    %cst_105 = arith.constant dense<0.000000e+00> : vector<8x512xf32>
    %188 = tpu.matmul %186, %187, %cst_105 {dimension_numbers = #tpu.dot_dimension_numbers<[1], [0], [0], [1], [0, 0, 1, 1], [], []>} : vector<8x128xbf16>, vector<128x512xbf16>, vector<8x512xf32> -> vector<8x512xf32>
    %c0_106 = arith.constant 0 : index
    %c0_107 = arith.constant 0 : index
    %189 = vector.load %arg16[%c0_106, %c0_107] : memref<1x512xf32, #tpu.memory_space<vmem>>, vector<1x512xf32>
    %190 = vector.shape_cast %189 : vector<1x512xf32> to vector<512xf32>
    %191 = vector.shape_cast %190 : vector<512xf32> to vector<1x512xf32>
    %192 = vector.broadcast %191 : vector<1x512xf32> to vector<8x512xf32>
    %193 = arith.addf %188, %192 : vector<8x512xf32>
    %cst_108 = arith.constant 5.000000e-01 : f32
    %194 = vector.broadcast %cst_108 : f32 to vector<8x512xf32>
    %195 = arith.mulf %194, %193 : vector<8x512xf32>
    %cst_109 = arith.constant 4.471500e-02 : f32
    %196 = vector.broadcast %cst_109 : f32 to vector<8x512xf32>
    %197 = arith.mulf %196, %193 : vector<8x512xf32>
    %198 = arith.mulf %197, %193 : vector<8x512xf32>
    %199 = arith.mulf %198, %193 : vector<8x512xf32>
    %200 = arith.addf %193, %199 : vector<8x512xf32>
    %cst_110 = arith.constant 0.797884583 : f32
    %201 = vector.broadcast %cst_110 : f32 to vector<8x512xf32>
    %202 = arith.mulf %201, %200 : vector<8x512xf32>
    %203 = math.tanh %202 : vector<8x512xf32>
    %cst_111 = arith.constant 1.000000e+00 : f32
    %204 = vector.broadcast %cst_111 : f32 to vector<8x512xf32>
    %205 = arith.addf %204, %203 : vector<8x512xf32>
    %206 = arith.mulf %195, %205 : vector<8x512xf32>
    %207 = arith.truncf %206 : vector<8x512xf32> to vector<8x512xbf16>
    %c0_112 = arith.constant 0 : index
    %c0_113 = arith.constant 0 : index
    %208 = vector.load %arg17[%c0_112, %c0_113] : memref<512x128xbf16, #tpu.memory_space<vmem>>, vector<512x128xbf16>
    %cst_114 = arith.constant dense<0.000000e+00> : vector<8x128xf32>
    %209 = tpu.matmul %207, %208, %cst_114 {dimension_numbers = #tpu.dot_dimension_numbers<[1], [0], [0], [1], [0, 0, 1, 1], [], []>} : vector<8x512xbf16>, vector<512x128xbf16>, vector<8x128xf32> -> vector<8x128xf32>
    %c0_115 = arith.constant 0 : index
    %c0_116 = arith.constant 0 : index
    %210 = vector.load %arg18[%c0_115, %c0_116] : memref<1x128xf32, #tpu.memory_space<vmem>>, vector<1x128xf32>
    %211 = vector.shape_cast %210 : vector<1x128xf32> to vector<128xf32>
    %212 = vector.shape_cast %211 : vector<128xf32> to vector<1x128xf32>
    %213 = vector.broadcast %212 : vector<1x128xf32> to vector<8x128xf32>
    %214 = arith.addf %209, %213 : vector<8x128xf32>
    %215 = arith.addf %157, %214 : vector<8x128xf32>
    %c0_117 = arith.constant 0 : index
    %c0_118 = arith.constant 0 : index
    %c0_119 = arith.constant 0 : index
    %216 = vector.load %arg19[%c0_117, %c0_118, %c0_119] : memref<1x8x128xf32, #tpu.memory_space<vmem>>, vector<1x8x128xf32>
    %217 = vector.shape_cast %216 : vector<1x8x128xf32> to vector<8x128xf32>
    %218 = vector.shape_cast %215 : vector<8x128xf32> to vector<1x8x128xf32>
    tpu.vector_store %arg19[%c0_117, %c0_118, %c0_119], %218 {strides = array<i32>} : memref<1x8x128xf32, #tpu.memory_space<vmem>>, vector<1x8x128xf32>,
    return
  }
  func.func @transform_0(%arg0: i32, %arg1: i32) -> (i32, i32, i32) {
    %c0_i32 = arith.constant 0 : i32
    %c0_i32_0 = arith.constant 0 : i32
    %c0_i32_1 = arith.constant 0 : i32
    return %arg0, %c0_i32, %c0_i32_0 : i32, i32, i32
  }
  func.func @transform_1(%arg0: i32, %arg1: i32) -> (i32, i32) {
    %c0_i32 = arith.constant 0 : i32
    %c0_i32_0 = arith.constant 0 : i32
    %c0_i32_1 = arith.constant 0 : i32
    return %c0_i32, %c0_i32_0 : i32, i32
  }
  func.func @transform_2(%arg0: i32, %arg1: i32) -> (i32, i32) {
    %c0_i32 = arith.constant 0 : i32
    %c0_i32_0 = arith.constant 0 : i32
    %c0_i32_1 = arith.constant 0 : i32
    return %c0_i32, %c0_i32_0 : i32, i32
  }
  func.func @transform_3(%arg0: i32, %arg1: i32) -> (i32, i32, i32) {
    %c0_i32 = arith.constant 0 : i32
    %c0_i32_0 = arith.constant 0 : i32
    %c0_i32_1 = arith.constant 0 : i32
    %c0_i32_2 = arith.constant 0 : i32
    return %c0_i32, %c0_i32_0, %c0_i32_1 : i32, i32, i32
  }
  func.func @transform_4(%arg0: i32, %arg1: i32) -> (i32, i32, i32) {
    %c0_i32 = arith.constant 0 : i32
    %c0_i32_0 = arith.constant 0 : i32
    %c0_i32_1 = arith.constant 0 : i32
    %c0_i32_2 = arith.constant 0 : i32
    return %c0_i32, %c0_i32_0, %c0_i32_1 : i32, i32, i32
  }
  func.func @transform_5(%arg0: i32, %arg1: i32) -> (i32, i32, i32) {
    %c0_i32 = arith.constant 0 : i32
    %c0_i32_0 = arith.constant 0 : i32
    %c0_i32_1 = arith.constant 0 : i32
    %c0_i32_2 = arith.constant 0 : i32
    return %c0_i32, %c0_i32_0, %c0_i32_1 : i32, i32, i32
  }
  func.func @transform_6(%arg0: i32, %arg1: i32) -> (i32, i32, i32) {
    %c0_i32 = arith.constant 0 : i32
    %c0_i32_0 = arith.constant 0 : i32
    %c0_i32_1 = arith.constant 0 : i32
    %c0_i32_2 = arith.constant 0 : i32
    return %c0_i32, %c0_i32_0, %c0_i32_1 : i32, i32, i32
  }
  func.func @transform_7(%arg0: i32, %arg1: i32) -> (i32, i32, i32) {
    %c0_i32 = arith.constant 0 : i32
    %c0_i32_0 = arith.constant 0 : i32
    %c0_i32_1 = arith.constant 0 : i32
    %c0_i32_2 = arith.constant 0 : i32
    return %c0_i32, %c0_i32_0, %c0_i32_1 : i32, i32, i32
  }
  func.func @transform_8(%arg0: i32, %arg1: i32) -> (i32, i32, i32) {
    %c0_i32 = arith.constant 0 : i32
    %c0_i32_0 = arith.constant 0 : i32
    %c0_i32_1 = arith.constant 0 : i32
    %c0_i32_2 = arith.constant 0 : i32
    return %c0_i32, %c0_i32_0, %c0_i32_1 : i32, i32, i32
  }
  func.func @transform_9(%arg0: i32, %arg1: i32) -> (i32, i32, i32) {
    %c0_i32 = arith.constant 0 : i32
    %c0_i32_0 = arith.constant 0 : i32
    %c0_i32_1 = arith.constant 0 : i32
    %c0_i32_2 = arith.constant 0 : i32
    return %c0_i32, %c0_i32_0, %c0_i32_1 : i32, i32, i32
  }
  func.func @transform_10(%arg0: i32, %arg1: i32) -> (i32, i32) {
    %c0_i32 = arith.constant 0 : i32
    %c0_i32_0 = arith.constant 0 : i32
    %c0_i32_1 = arith.constant 0 : i32
    return %c0_i32, %c0_i32_0 : i32, i32
  }
  func.func @transform_11(%arg0: i32, %arg1: i32) -> (i32, i32) {
    %c0_i32 = arith.constant 0 : i32
    %c0_i32_0 = arith.constant 0 : i32
    %c0_i32_1 = arith.constant 0 : i32
    return %c0_i32, %c0_i32_0 : i32, i32
  }
  func.func @transform_12(%arg0: i32, %arg1: i32) -> (i32, i32) {
    %c0_i32 = arith.constant 0 : i32
    %c0_i32_0 = arith.constant 0 : i32
    %c0_i32_1 = arith.constant 0 : i32
    return %c0_i32, %c0_i32_0 : i32, i32
  }
  func.func @transform_13(%arg0: i32, %arg1: i32) -> (i32, i32) {
    %c0_i32 = arith.constant 0 : i32
    %c0_i32_0 = arith.constant 0 : i32
    %c0_i32_1 = arith.constant 0 : i32
    return %c0_i32, %c0_i32_0 : i32, i32
  }
  func.func @transform_14(%arg0: i32, %arg1: i32) -> (i32, i32) {
    %c0_i32 = arith.constant 0 : i32
    %c0_i32_0 = arith.constant 0 : i32
    %c0_i32_1 = arith.constant 0 : i32
    return %c0_i32, %c0_i32_0 : i32, i32
  }
  func.func @transform_15(%arg0: i32, %arg1: i32) -> (i32, i32) {
    %c0_i32 = arith.constant 0 : i32
    %c0_i32_0 = arith.constant 0 : i32
    %c0_i32_1 = arith.constant 0 : i32
    return %c0_i32, %c0_i32_0 : i32, i32
  }
  func.func @transform_16(%arg0: i32, %arg1: i32) -> (i32, i32) {
    %c0_i32 = arith.constant 0 : i32
    %c0_i32_0 = arith.constant 0 : i32
    %c0_i32_1 = arith.constant 0 : i32
    return %c0_i32, %c0_i32_0 : i32, i32
  }
  func.func @transform_17(%arg0: i32, %arg1: i32) -> (i32, i32, i32) {
    %c0_i32 = arith.constant 0 : i32
    %c0_i32_0 = arith.constant 0 : i32
    return %arg0, %arg1, %c0_i32 : i32, i32, i32
  }
}

</mosaic_0001>

<llo_original>
// kernel: tpu_custom_call.1
$region0: #{tpu_custom_call.1}
  #allocation0 [shape = 'u32[]', space=smem, size = 0x4, offset = 0x4, fixed_abs, tag = 'smem constant byte address 0x4 - core index']
  #allocation1 [shape = 'u32[72,128]{1,0:T(1,128)}', space=vmem, size = 0x9000, scoped, tag = 'internal scratch']
  #allocation2 [shape = 'bf16[16,128]{1,0:T(8,128)(2,1)}', space=vmem, size = 0x1000, scoped, tag = 'scratch operand']
  #allocation3 [shape = 'bf16[4,16,32]{2,1,0:T(8,128)(2,1)}', space=vmem, size = 0x4000, scoped, tag = 'scratch operand']
  #allocation4 [shape = 'bf16[4,16,32]{2,1,0:T(8,128)(2,1)}', space=vmem, size = 0x4000, scoped, tag = 'scratch operand']
  %s0 = inlined_call_operand.vmem [shape: f32[2,16,128], index: 0, kind: input, shape index: {}]
  %s1 = inlined_call_operand.vmem [shape: f32[1,128], index: 1, kind: input, shape index: {}]
  %s2 = inlined_call_operand.vmem [shape: f32[1,128], index: 2, kind: input, shape index: {}]
  %s3 = inlined_call_operand.vmem [shape: bf16[4,128,32], index: 3, kind: input, shape index: {}]
  %s4 = inlined_call_operand.vmem [shape: bf16[4,128,32], index: 4, kind: input, shape index: {}]
  %s5 = inlined_call_operand.vmem [shape: bf16[4,128,32], index: 5, kind: input, shape index: {}]
  %s6 = inlined_call_operand.vmem [shape: f32[4,1,32], index: 6, kind: input, shape index: {}]
  %s7 = inlined_call_operand.vmem [shape: f32[4,1,32], index: 7, kind: input, shape index: {}]
  %s8 = inlined_call_operand.vmem [shape: f32[4,1,32], index: 8, kind: input, shape index: {}]
  %s9 = inlined_call_operand.vmem [shape: bf16[4,32,128], index: 9, kind: input, shape index: {}]
  %s10 = inlined_call_operand.vmem [shape: f32[1,128], index: 10, kind: input, shape index: {}]
  %s11 = inlined_call_operand.vmem [shape: f32[1,128], index: 11, kind: input, shape index: {}]
  %s12 = inlined_call_operand.vmem [shape: f32[1,128], index: 12, kind: input, shape index: {}]
  %s13 = inlined_call_operand.vmem [shape: bf16[128,512], index: 13, kind: input, shape index: {}]
  %s14 = inlined_call_operand.vmem [shape: f32[1,512], index: 14, kind: input, shape index: {}]
  %s15 = inlined_call_operand.vmem [shape: bf16[512,128], index: 15, kind: input, shape index: {}]
  %s16 = inlined_call_operand.vmem [shape: f32[1,128], index: 16, kind: input, shape index: {}]
  %s17 = inlined_call_operand.hbm [shape: f32[2,16,128], index: 17, kind: output, shape index: {}]
  %s18 = sld [smem:[#allocation0]]
  $region105: #{tpu_custom_call.1} parent=0
    _
  %s20 = ssub.s32 1, %s18
  %s21 = scalar_select 0, %s20, %s18
  $region1: #{tpu_custom_call.1} parent=0
    #allocation5 [shape = 'u8[8192]{0}', space=vmem, size = 0x2000, scoped, tag = 'output window, operand 0']
    #allocation6 [shape = 's32[2]{0}', space=sflag, size = 0x8, scoped, tag = 'scoped memory for tpu_custom_call.1']
    %22 = vsyncpa [#allocation6], 0
    %s23 = scalar_lea.sflag [#allocation6], 1
    %24 = vsyncpa %s23, 0
    loop: start=0, step=1, limit=6
    $region2: #{tpu_custom_call.1} parent=1 // loop_pre_header
      _
    $region3: #{tpu_custom_call.1} parent=1 // loop_header
      %s26 = sphi 0, %s30
      %p27 = scmp.ge.s32.totalorder %s26, 6
      %s33 = sphi 0, %s45
      %s34 = sphi 0, %s41
      %s35 = sphi 0, %s33
      %s36 = sphi 0, %s34
      %s37 = sphi 0, %s35
      %s38 = sphi 0, %s36
      %s48 = sphi 0, %s50
      %s51 = sphi 0, %s48
      %s52 = sphi 0, %s51
      %s68 = sphi 0, %s52
      %s72 = sphi 0, %s72
      %s74 = sphi 0, %s72
      %s75 = sphi 0, %s74
      %s89 = sphi 0, %s75
      %s93 = sphi 0, %s93
      %s95 = sphi 0, %s93
      %s96 = sphi 0, %s95
      %s110 = sphi 0, %s96
      %s114 = sphi 0, %s114
      %s116 = sphi 0, %s114
      %s117 = sphi 0, %s116
      %s131 = sphi 0, %s117
      %s135 = sphi 0, %s135
      %s137 = sphi 0, %s135
      %s138 = sphi 0, %s137
      %s152 = sphi 0, %s138
      %s156 = sphi 0, %s156
      %s158 = sphi 0, %s156
      %s159 = sphi 0, %s158
      %s173 = sphi 0, %s159
      %s177 = sphi 0, %s177
      %s179 = sphi 0, %s177
      %s180 = sphi 0, %s179
      %s194 = sphi 0, %s180
      %s198 = sphi 0, %s198
      %s200 = sphi 0, %s198
      %s201 = sphi 0, %s200
      %s215 = sphi 0, %s201
      %s219 = sphi 0, %s219
      %s221 = sphi 0, %s219
      %s222 = sphi 0, %s221
      %s236 = sphi 0, %s222
      %s240 = sphi 0, %s240
      %s242 = sphi 0, %s240
      %s243 = sphi 0, %s242
      %s257 = sphi 0, %s243
      %s261 = sphi 0, %s261
      %s263 = sphi 0, %s261
      %s264 = sphi 0, %s263
      %s278 = sphi 0, %s264
      %s282 = sphi 0, %s282
      %s284 = sphi 0, %s282
      %s285 = sphi 0, %s284
      %s299 = sphi 0, %s285
      %s303 = sphi 0, %s303
      %s305 = sphi 0, %s303
      %s306 = sphi 0, %s305
      %s320 = sphi 0, %s306
      %s324 = sphi 0, %s324
      %s326 = sphi 0, %s324
      %s327 = sphi 0, %s326
      %s341 = sphi 0, %s327
      %s345 = sphi 0, %s345
      %s347 = sphi 0, %s345
      %s348 = sphi 0, %s347
      %s362 = sphi 0, %s348
      %s366 = sphi 0, %s366
      %s368 = sphi 0, %s366
      %s369 = sphi 0, %s368
      %s383 = sphi 0, %s369
      %s387 = sphi 0, %s387
      %s389 = sphi 0, %s387
      %s390 = sphi 0, %s389
      %s404 = sphi 0, %s390
      %s412 = sphi 0, %s414
      %s415 = sphi 0, %s412
      %s416 = sphi 0, %s415
      %s432 = sphi 0, %s416
    $region4: #{tpu_custom_call.1} parent=1 // loop_header_branch
      %29 = sbr.rel (%p27) target = $region8
    $region5: #{tpu_custom_call.1} parent=1 // loop_body
      %s31 = ssub.s32 %s26, 1
      %s32 = ssub.s32 %s26, 2
      %s39 = sadd.s32 1, %s34
      %p40 = scmp.ge.s32.totalorder %s39, 2
      %s41 = scalar_select %p40, 0, %s39
      %s42 = sadd.s32 1, %s33
      %s43 = scalar_select %p40, %s42, %s33
      %p44 = scmp.ge.s32.totalorder %s43, 2
      %s45 = scalar_select %p44, 0, %s43
      %s46 = ssub.s32 %s33, %s45
      %p47 = scmp.eq.s32.totalorder %s46, 0
      %s49 = sadd.s32 %s48, 1
      %s50 = scalar_select %p47, %s48, %s49
      %p53 = pneg %p47
      %p54 = scmp.eq.s32.totalorder %s26, 3
      %p55 = por %p53, %p54
      %p56 = scmp.ne.s32.totalorder %s48, %s51
      %p57 = scmp.eq.s32.totalorder %s26, 0
      %p58 = por %p56, %p57
      %p59 = scmp.ne.s32.totalorder %s48, %s51
      %p60 = scmp.eq.s32.totalorder %s31, 3
      %p61 = por %p59, %p60
      %p62 = scmp.ne.s32.totalorder %s51, %s52
      %p63 = scmp.eq.s32.totalorder %s31, 0
      %p64 = por %p62, %p63
      %p65 = scmp.ne.s32.totalorder %s51, %s52
      %p66 = scmp.eq.s32.totalorder %s32, 3
      %p67 = por %p65, %p66
      %p69 = scmp.ne.s32.totalorder %s52, %s68
      %p70 = scmp.eq.s32.totalorder %s32, 0
      %p71 = por %p69, %p70
      %s73 = sadd.s32 %s72, 1
      %p76 = scmp.eq.s32.totalorder %s26, 3
      %p77 = scmp.ne.s32.totalorder %s72, %s74
      %p78 = scmp.eq.s32.totalorder %s26, 0
      %p79 = por %p77, %p78
      %p80 = scmp.ne.s32.totalorder %s72, %s74
      %p81 = scmp.eq.s32.totalorder %s31, 3
      %p82 = por %p80, %p81
      %p83 = scmp.ne.s32.totalorder %s74, %s75
      %p84 = scmp.eq.s32.totalorder %s31, 0
      %p85 = por %p83, %p84
      %p86 = scmp.ne.s32.totalorder %s74, %s75
      %p87 = scmp.eq.s32.totalorder %s32, 3
      %p88 = por %p86, %p87
      %p90 = scmp.ne.s32.totalorder %s75, %s89
      %p91 = scmp.eq.s32.totalorder %s32, 0
      %p92 = por %p90, %p91
      %s94 = sadd.s32 %s93, 1
      %p97 = scmp.eq.s32.totalorder %s26, 3
      %p98 = scmp.ne.s32.totalorder %s93, %s95
      %p99 = scmp.eq.s32.totalorder %s26, 0
      %p100 = por %p98, %p99
      %p101 = scmp.ne.s32.totalorder %s93, %s95
      %p102 = scmp.eq.s32.totalorder %s31, 3
      %p103 = por %p101, %p102
      %p104 = scmp.ne.s32.totalorder %s95, %s96
      %p105 = scmp.eq.s32.totalorder %s31, 0
      %p106 = por %p104, %p105
      %p107 = scmp.ne.s32.totalorder %s95, %s96
      %p108 = scmp.eq.s32.totalorder %s32, 3
      %p109 = por %p107, %p108
      %p111 = scmp.ne.s32.totalorder %s96, %s110
      %p112 = scmp.eq.s32.totalorder %s32, 0
      %p113 = por %p111, %p112
      %s115 = sadd.s32 %s114, 1
      %p118 = scmp.eq.s32.totalorder %s26, 3
      %p119 = scmp.ne.s32.totalorder %s114, %s116
      %p120 = scmp.eq.s32.totalorder %s26, 0
      %p121 = por %p119, %p120
      %p122 = scmp.ne.s32.totalorder %s114, %s116
      %p123 = scmp.eq.s32.totalorder %s31, 3
      %p124 = por %p122, %p123
      %p125 = scmp.ne.s32.totalorder %s116, %s117
      %p126 = scmp.eq.s32.totalorder %s31, 0
      %p127 = por %p125, %p126
      %p128 = scmp.ne.s32.totalorder %s116, %s117
      %p129 = scmp.eq.s32.totalorder %s32, 3
      %p130 = por %p128, %p129
      %p132 = scmp.ne.s32.totalorder %s117, %s131
      %p133 = scmp.eq.s32.totalorder %s32, 0
      %p134 = por %p132, %p133
      %s136 = sadd.s32 %s135, 1
      %p139 = scmp.eq.s32.totalorder %s26, 3
      %p140 = scmp.ne.s32.totalorder %s135, %s137
      %p141 = scmp.eq.s32.totalorder %s26, 0
      %p142 = por %p140, %p141
      %p143 = scmp.ne.s32.totalorder %s135, %s137
      %p144 = scmp.eq.s32.totalorder %s31, 3
      %p145 = por %p143, %p144
      %p146 = scmp.ne.s32.totalorder %s137, %s138
      %p147 = scmp.eq.s32.totalorder %s31, 0
      %p148 = por %p146, %p147
      %p149 = scmp.ne.s32.totalorder %s137, %s138
      %p150 = scmp.eq.s32.totalorder %s32, 3
      %p151 = por %p149, %p150
      %p153 = scmp.ne.s32.totalorder %s138, %s152
      %p154 = scmp.eq.s32.totalorder %s32, 0
      %p155 = por %p153, %p154
      %s157 = sadd.s32 %s156, 1
      %p160 = scmp.eq.s32.totalorder %s26, 3
      %p161 = scmp.ne.s32.totalorder %s156, %s158
      %p162 = scmp.eq.s32.totalorder %s26, 0
      %p163 = por %p161, %p162
      %p164 = scmp.ne.s32.totalorder %s156, %s158
      %p165 = scmp.eq.s32.totalorder %s31, 3
      %p166 = por %p164, %p165
      %p167 = scmp.ne.s32.totalorder %s158, %s159
      %p168 = scmp.eq.s32.totalorder %s31, 0
      %p169 = por %p167, %p168
      %p170 = scmp.ne.s32.totalorder %s158, %s159
      %p171 = scmp.eq.s32.totalorder %s32, 3
      %p172 = por %p170, %p171
      %p174 = scmp.ne.s32.totalorder %s159, %s173
      %p175 = scmp.eq.s32.totalorder %s32, 0
      %p176 = por %p174, %p175
      %s178 = sadd.s32 %s177, 1
      %p181 = scmp.eq.s32.totalorder %s26, 3
      %p182 = scmp.ne.s32.totalorder %s177, %s179
      %p183 = scmp.eq.s32.totalorder %s26, 0
      %p184 = por %p182, %p183
      %p185 = scmp.ne.s32.totalorder %s177, %s179
      %p186 = scmp.eq.s32.totalorder %s31, 3
      %p187 = por %p185, %p186
      %p188 = scmp.ne.s32.totalorder %s179, %s180
      %p189 = scmp.eq.s32.totalorder %s31, 0
      %p190 = por %p188, %p189
      %p191 = scmp.ne.s32.totalorder %s179, %s180
      %p192 = scmp.eq.s32.totalorder %s32, 3
      %p193 = por %p191, %p192
      %p195 = scmp.ne.s32.totalorder %s180, %s194
      %p196 = scmp.eq.s32.totalorder %s32, 0
      %p197 = por %p195, %p196
      %s199 = sadd.s32 %s198, 1
      %p202 = scmp.eq.s32.totalorder %s26, 3
      %p203 = scmp.ne.s32.totalorder %s198, %s200
      %p204 = scmp.eq.s32.totalorder %s26, 0
      %p205 = por %p203, %p204
      %p206 = scmp.ne.s32.totalorder %s198, %s200
      %p207 = scmp.eq.s32.totalorder %s31, 3
      %p208 = por %p206, %p207
      %p209 = scmp.ne.s32.totalorder %s200, %s201
      %p210 = scmp.eq.s32.totalorder %s31, 0
      %p211 = por %p209, %p210
      %p212 = scmp.ne.s32.totalorder %s200, %s201
      %p213 = scmp.eq.s32.totalorder %s32, 3
      %p214 = por %p212, %p213
      %p216 = scmp.ne.s32.totalorder %s201, %s215
      %p217 = scmp.eq.s32.totalorder %s32, 0
      %p218 = por %p216, %p217
      %s220 = sadd.s32 %s219, 1
      %p223 = scmp.eq.s32.totalorder %s26, 3
      %p224 = scmp.ne.s32.totalorder %s219, %s221
      %p225 = scmp.eq.s32.totalorder %s26, 0
      %p226 = por %p224, %p225
      %p227 = scmp.ne.s32.totalorder %s219, %s221
      %p228 = scmp.eq.s32.totalorder %s31, 3
      %p229 = por %p227, %p228
      %p230 = scmp.ne.s32.totalorder %s221, %s222
      %p231 = scmp.eq.s32.totalorder %s31, 0
      %p232 = por %p230, %p231
      %p233 = scmp.ne.s32.totalorder %s221, %s222
      %p234 = scmp.eq.s32.totalorder %s32, 3
      %p235 = por %p233, %p234
      %p237 = scmp.ne.s32.totalorder %s222, %s236
      %p238 = scmp.eq.s32.totalorder %s32, 0
      %p239 = por %p237, %p238
      %s241 = sadd.s32 %s240, 1
      %p244 = scmp.eq.s32.totalorder %s26, 3
      %p245 = scmp.ne.s32.totalorder %s240, %s242
      %p246 = scmp.eq.s32.totalorder %s26, 0
      %p247 = por %p245, %p246
      %p248 = scmp.ne.s32.totalorder %s240, %s242
      %p249 = scmp.eq.s32.totalorder %s31, 3
      %p250 = por %p248, %p249
      %p251 = scmp.ne.s32.totalorder %s242, %s243
      %p252 = scmp.eq.s32.totalorder %s31, 0
      %p253 = por %p251, %p252
      %p254 = scmp.ne.s32.totalorder %s242, %s243
      %p255 = scmp.eq.s32.totalorder %s32, 3
      %p256 = por %p254, %p255
      %p258 = scmp.ne.s32.totalorder %s243, %s257
      %p259 = scmp.eq.s32.totalorder %s32, 0
      %p260 = por %p258, %p259
      %s262 = sadd.s32 %s261, 1
      %p265 = scmp.eq.s32.totalorder %s26, 3
      %p266 = scmp.ne.s32.totalorder %s261, %s263
      %p267 = scmp.eq.s32.totalorder %s26, 0
      %p268 = por %p266, %p267
      %p269 = scmp.ne.s32.totalorder %s261, %s263
      %p270 = scmp.eq.s32.totalorder %s31, 3
      %p271 = por %p269, %p270
      %p272 = scmp.ne.s32.totalorder %s263, %s264
      %p273 = scmp.eq.s32.totalorder %s31, 0
      %p274 = por %p272, %p273
      %p275 = scmp.ne.s32.totalorder %s263, %s264
      %p276 = scmp.eq.s32.totalorder %s32, 3
      %p277 = por %p275, %p276
      %p279 = scmp.ne.s32.totalorder %s264, %s278
      %p280 = scmp.eq.s32.totalorder %s32, 0
      %p281 = por %p279, %p280
      %s283 = sadd.s32 %s282, 1
      %p286 = scmp.eq.s32.totalorder %s26, 3
      %p287 = scmp.ne.s32.totalorder %s282, %s284
      %p288 = scmp.eq.s32.totalorder %s26, 0
      %p289 = por %p287, %p288
      %p290 = scmp.ne.s32.totalorder %s282, %s284
      %p291 = scmp.eq.s32.totalorder %s31, 3
      %p292 = por %p290, %p291
      %p293 = scmp.ne.s32.totalorder %s284, %s285
      %p294 = scmp.eq.s32.totalorder %s31, 0
      %p295 = por %p293, %p294
      %p296 = scmp.ne.s32.totalorder %s284, %s285
      %p297 = scmp.eq.s32.totalorder %s32, 3
      %p298 = por %p296, %p297
      %p300 = scmp.ne.s32.totalorder %s285, %s299
      %p301 = scmp.eq.s32.totalorder %s32, 0
      %p302 = por %p300, %p301
      %s304 = sadd.s32 %s303, 1
      %p307 = scmp.eq.s32.totalorder %s26, 3
      %p308 = scmp.ne.s32.totalorder %s303, %s305
      %p309 = scmp.eq.s32.totalorder %s26, 0
      %p310 = por %p308, %p309
      %p311 = scmp.ne.s32.totalorder %s303, %s305
      %p312 = scmp.eq.s32.totalorder %s31, 3
      %p313 = por %p311, %p312
      %p314 = scmp.ne.s32.totalorder %s305, %s306
      %p315 = scmp.eq.s32.totalorder %s31, 0
      %p316 = por %p314, %p315
      %p317 = scmp.ne.s32.totalorder %s305, %s306
      %p318 = scmp.eq.s32.totalorder %s32, 3
      %p319 = por %p317, %p318
      %p321 = scmp.ne.s32.totalorder %s306, %s320
      %p322 = scmp.eq.s32.totalorder %s32, 0
      %p323 = por %p321, %p322
      %s325 = sadd.s32 %s324, 1
      %p328 = scmp.eq.s32.totalorder %s26, 3
      %p329 = scmp.ne.s32.totalorder %s324, %s326
      %p330 = scmp.eq.s32.totalorder %s26, 0
      %p331 = por %p329, %p330
      %p332 = scmp.ne.s32.totalorder %s324, %s326
      %p333 = scmp.eq.s32.totalorder %s31, 3
      %p334 = por %p332, %p333
      %p335 = scmp.ne.s32.totalorder %s326, %s327
      %p336 = scmp.eq.s32.totalorder %s31, 0
      %p337 = por %p335, %p336
      %p338 = scmp.ne.s32.totalorder %s326, %s327
      %p339 = scmp.eq.s32.totalorder %s32, 3
      %p340 = por %p338, %p339
      %p342 = scmp.ne.s32.totalorder %s327, %s341
      %p343 = scmp.eq.s32.totalorder %s32, 0
      %p344 = por %p342, %p343
      %s346 = sadd.s32 %s345, 1
      %p349 = scmp.eq.s32.totalorder %s26, 3
      %p350 = scmp.ne.s32.totalorder %s345, %s347
      %p351 = scmp.eq.s32.totalorder %s26, 0
      %p352 = por %p350, %p351
      %p353 = scmp.ne.s32.totalorder %s345, %s347
      %p354 = scmp.eq.s32.totalorder %s31, 3
      %p355 = por %p353, %p354
      %p356 = scmp.ne.s32.totalorder %s347, %s348
      %p357 = scmp.eq.s32.totalorder %s31, 0
      %p358 = por %p356, %p357
      %p359 = scmp.ne.s32.totalorder %s347, %s348
      %p360 = scmp.eq.s32.totalorder %s32, 3
      %p361 = por %p359, %p360
      %p363 = scmp.ne.s32.totalorder %s348, %s362
      %p364 = scmp.eq.s32.totalorder %s32, 0
      %p365 = por %p363, %p364
      %s367 = sadd.s32 %s366, 1
      %p370 = scmp.eq.s32.totalorder %s26, 3
      %p371 = scmp.ne.s32.totalorder %s366, %s368
      %p372 = scmp.eq.s32.totalorder %s26, 0
      %p373 = por %p371, %p372
      %p374 = scmp.ne.s32.totalorder %s366, %s368
      %p375 = scmp.eq.s32.totalorder %s31, 3
      %p376 = por %p374, %p375
      %p377 = scmp.ne.s32.totalorder %s368, %s369
      %p378 = scmp.eq.s32.totalorder %s31, 0
      %p379 = por %p377, %p378
      %p380 = scmp.ne.s32.totalorder %s368, %s369
      %p381 = scmp.eq.s32.totalorder %s32, 3
      %p382 = por %p380, %p381
      %p384 = scmp.ne.s32.totalorder %s369, %s383
      %p385 = scmp.eq.s32.totalorder %s32, 0
      %p386 = por %p384, %p385
      %s388 = sadd.s32 %s387, 1
      %p391 = scmp.eq.s32.totalorder %s26, 3
      %p392 = scmp.ne.s32.totalorder %s387, %s389
      %p393 = scmp.eq.s32.totalorder %s26, 0
      %p394 = por %p392, %p393
      %p395 = scmp.ne.s32.totalorder %s387, %s389
      %p396 = scmp.eq.s32.totalorder %s31, 3
      %p397 = por %p395, %p396
      %p398 = scmp.ne.s32.totalorder %s389, %s390
      %p399 = scmp.eq.s32.totalorder %s31, 0
      %p400 = por %p398, %p399
      %p401 = scmp.ne.s32.totalorder %s389, %s390
      %p402 = scmp.eq.s32.totalorder %s32, 3
      %p403 = por %p401, %p402
      %p405 = scmp.ne.s32.totalorder %s390, %s404
      %p406 = scmp.eq.s32.totalorder %s32, 0
      %p407 = por %p405, %p406
      %s408 = ssub.s32 %s33, %s45
      %s409 = ssub.s32 %s34, %s41
      %s410 = sor.u32 %s408, %s409
      %p411 = scmp.eq.s32.totalorder %s410, 0
      %s413 = sadd.s32 %s412, 1
      %s414 = scalar_select %p411, %s412, %s413
      %p417 = pneg %p411
      %p418 = scmp.eq.s32.totalorder %s26, 3
      %p419 = por %p417, %p418
      %p420 = scmp.ne.s32.totalorder %s412, %s415
      %p421 = scmp.eq.s32.totalorder %s26, 0
      %p422 = por %p420, %p421
      %p423 = scmp.ne.s32.totalorder %s412, %s415
      %p424 = scmp.eq.s32.totalorder %s31, 3
      %p425 = por %p423, %p424
      %p426 = scmp.ne.s32.totalorder %s415, %s416
      %p427 = scmp.eq.s32.totalorder %s31, 0
      %p428 = por %p426, %p427
      %p429 = scmp.ne.s32.totalorder %s415, %s416
      %p430 = scmp.eq.s32.totalorder %s32, 3
      %p431 = por %p429, %p430
      %p433 = scmp.ne.s32.totalorder %s416, %s432
      %p434 = scmp.eq.s32.totalorder %s32, 0
      %p435 = por %p433, %p434
      %p436 = scmp.le.s32.totalorder 1, %s26
      %p437 = scmp.lt.s32.totalorder %s26, 5
      %p438 = pnand %p436, %p437
      %p439 = pneg %p438
      // Predicated region
      $region9: #{tpu_custom_call.1} parent=5 // pred_check
        _
      $region10: #{tpu_custom_call.1} parent=5 // pred_check_branch
        %441 = sbr.rel (%p438) target = $region12
      $region11: #{tpu_custom_call.1} parent=5 // pred_region
        %s442 = ssub.s32 %s26, 1
        // Predicated region
        $region13: #{tpu_custom_call.1} parent=11 // pred_check
          %p443 = pneg %p85
        $region14: #{tpu_custom_call.1} parent=11 // pred_check_branch
          %445 = sbr.rel (%p443) target = $region16
        $region15: #{tpu_custom_call.1} parent=11 // pred_region
          _
        $region16: #{tpu_custom_call.1} parent=11 // pred_fallthru
          _
        // Predicated region
        $region17: #{tpu_custom_call.1} parent=11 // pred_check
          %p446 = pneg %p106
        $region18: #{tpu_custom_call.1} parent=11 // pred_check_branch
          %448 = sbr.rel (%p446) target = $region20
        $region19: #{tpu_custom_call.1} parent=11 // pred_region
          _
        $region20: #{tpu_custom_call.1} parent=11 // pred_fallthru
          _
        // Predicated region
        $region21: #{tpu_custom_call.1} parent=11 // pred_check
          %p449 = pneg %p127
        $region22: #{tpu_custom_call.1} parent=11 // pred_check_branch
          %451 = sbr.rel (%p449) target = $region24
        $region23: #{tpu_custom_call.1} parent=11 // pred_region
          _
        $region24: #{tpu_custom_call.1} parent=11 // pred_fallthru
          _
        // Predicated region
        $region25: #{tpu_custom_call.1} parent=11 // pred_check
          %p452 = pneg %p148
        $region26: #{tpu_custom_call.1} parent=11 // pred_check_branch
          %454 = sbr.rel (%p452) target = $region28
        $region27: #{tpu_custom_call.1} parent=11 // pred_region
          _
        $region28: #{tpu_custom_call.1} parent=11 // pred_fallthru
          _
        // Predicated region
        $region29: #{tpu_custom_call.1} parent=11 // pred_check
          %p455 = pneg %p169
        $region30: #{tpu_custom_call.1} parent=11 // pred_check_branch
          %457 = sbr.rel (%p455) target = $region32
        $region31: #{tpu_custom_call.1} parent=11 // pred_region
          _
        $region32: #{tpu_custom_call.1} parent=11 // pred_fallthru
          _
        // Predicated region
        $region33: #{tpu_custom_call.1} parent=11 // pred_check
          %p458 = pneg %p190
        $region34: #{tpu_custom_call.1} parent=11 // pred_check_branch
          %460 = sbr.rel (%p458) target = $region36
        $region35: #{tpu_custom_call.1} parent=11 // pred_region
          _
        $region36: #{tpu_custom_call.1} parent=11 // pred_fallthru
          _
        // Predicated region
        $region37: #{tpu_custom_call.1} parent=11 // pred_check
          %p461 = pneg %p211
        $region38: #{tpu_custom_call.1} parent=11 // pred_check_branch
          %463 = sbr.rel (%p461) target = $region40
        $region39: #{tpu_custom_call.1} parent=11 // pred_region
          _
        $region40: #{tpu_custom_call.1} parent=11 // pred_fallthru
          _
        // Predicated region
        $region41: #{tpu_custom_call.1} parent=11 // pred_check
          %p464 = pneg %p232
        $region42: #{tpu_custom_call.1} parent=11 // pred_check_branch
          %466 = sbr.rel (%p464) target = $region44
        $region43: #{tpu_custom_call.1} parent=11 // pred_region
          _
        $region44: #{tpu_custom_call.1} parent=11 // pred_fallthru
          _
        // Predicated region
        $region45: #{tpu_custom_call.1} parent=11 // pred_check
          %p467 = pneg %p253
        $region46: #{tpu_custom_call.1} parent=11 // pred_check_branch
          %469 = sbr.rel (%p467) target = $region48
        $region47: #{tpu_custom_call.1} parent=11 // pred_region
          _
        $region48: #{tpu_custom_call.1} parent=11 // pred_fallthru
          _
        // Predicated region
        $region49: #{tpu_custom_call.1} parent=11 // pred_check
          %p470 = pneg %p274
        $region50: #{tpu_custom_call.1} parent=11 // pred_check_branch
          %472 = sbr.rel (%p470) target = $region52
        $region51: #{tpu_custom_call.1} parent=11 // pred_region
          _
        $region52: #{tpu_custom_call.1} parent=11 // pred_fallthru
          _
        // Predicated region
        $region53: #{tpu_custom_call.1} parent=11 // pred_check
          %p473 = pneg %p295
        $region54: #{tpu_custom_call.1} parent=11 // pred_check_branch
          %475 = sbr.rel (%p473) target = $region56
        $region55: #{tpu_custom_call.1} parent=11 // pred_region
          _
        $region56: #{tpu_custom_call.1} parent=11 // pred_fallthru
          _
        // Predicated region
        $region57: #{tpu_custom_call.1} parent=11 // pred_check
          %p476 = pneg %p316
        $region58: #{tpu_custom_call.1} parent=11 // pred_check_branch
          %478 = sbr.rel (%p476) target = $region60
        $region59: #{tpu_custom_call.1} parent=11 // pred_region
          _
        $region60: #{tpu_custom_call.1} parent=11 // pred_fallthru
          _
        // Predicated region
        $region61: #{tpu_custom_call.1} parent=11 // pred_check
          %p479 = pneg %p337
        $region62: #{tpu_custom_call.1} parent=11 // pred_check_branch
          %481 = sbr.rel (%p479) target = $region64
        $region63: #{tpu_custom_call.1} parent=11 // pred_region
          _
        $region64: #{tpu_custom_call.1} parent=11 // pred_fallthru
          _
        // Predicated region
        $region65: #{tpu_custom_call.1} parent=11 // pred_check
          %p482 = pneg %p358
        $region66: #{tpu_custom_call.1} parent=11 // pred_check_branch
          %484 = sbr.rel (%p482) target = $region68
        $region67: #{tpu_custom_call.1} parent=11 // pred_region
          _
        $region68: #{tpu_custom_call.1} parent=11 // pred_fallthru
          _
        // Predicated region
        $region69: #{tpu_custom_call.1} parent=11 // pred_check
          %p485 = pneg %p379
        $region70: #{tpu_custom_call.1} parent=11 // pred_check_branch
          %487 = sbr.rel (%p485) target = $region72
        $region71: #{tpu_custom_call.1} parent=11 // pred_region
          _
        $region72: #{tpu_custom_call.1} parent=11 // pred_fallthru
          _
        // Predicated region
        $region73: #{tpu_custom_call.1} parent=11 // pred_check
          %p488 = pneg %p400
        $region74: #{tpu_custom_call.1} parent=11 // pred_check_branch
          %490 = sbr.rel (%p488) target = $region76
        $region75: #{tpu_custom_call.1} parent=11 // pred_region
          _
        $region76: #{tpu_custom_call.1} parent=11 // pred_fallthru
          _
      $region12: #{tpu_custom_call.1} parent=5 // pred_fallthru
        _
      %p491 = scmp.lt.s32.totalorder %s26, 4
      // Predicated region
      $region77: #{tpu_custom_call.1} parent=5 // pred_check
        %p492 = pneg %p491
      $region78: #{tpu_custom_call.1} parent=5 // pred_check_branch
        %494 = sbr.rel (%p492) target = $region80
      $region79: #{tpu_custom_call.1} parent=5 // pred_region
        // Predicated region
        $region81: #{tpu_custom_call.1} parent=79 // pred_check
          %p495 = pneg %p58
        $region82: #{tpu_custom_call.1} parent=79 // pred_check_branch
          %497 = sbr.rel (%p495) target = $region84
        $region83: #{tpu_custom_call.1} parent=79 // pred_region
          %p498 = scmp.lt.s32.totalorder %s33, 1
          %s499 = scalar_select %p498, %s33, 1
          %s500 = smul.addr %s499, 2
          %s501 = smul.addr %s500, 8
          %s502 = scalar_lea.vmem %s0, %s501
        $region84: #{tpu_custom_call.1} parent=79 // pred_fallthru
          _
      $region80: #{tpu_custom_call.1} parent=5 // pred_fallthru
        _
      %p503 = scmp.le.s32.totalorder 1, %s26
      %p504 = scmp.lt.s32.totalorder %s26, 5
      %p505 = pnand %p503, %p504
      %p506 = pneg %p505
      // Predicated region
      $region85: #{tpu_custom_call.1} parent=5 // pred_check
        _
      $region86: #{tpu_custom_call.1} parent=5 // pred_check_branch
        %508 = sbr.rel (%p505) target = $region88
      $region87: #{tpu_custom_call.1} parent=5 // pred_region
        %s509 = ssub.s32 %s26, 1
        %p510 = scmp.lt.s32.totalorder %s35, 1
        %s511 = scalar_select %p510, %s35, 1
        %s512 = smul.addr %s511, 2
        %s513 = smul.addr %s512, 8
        %s514 = scalar_lea.vmem %s0, %s513
        %p515 = pneg %p64
        %p516 = pneg %p61
        %p517 = pneg %p85
        %p518 = pneg %p82
        %p519 = pneg %p106
        %p520 = pneg %p103
        %p521 = pneg %p127
        %p522 = pneg %p124
        %p523 = pneg %p148
        %p524 = pneg %p145
        %p525 = pneg %p169
        %p526 = pneg %p166
        %p527 = pneg %p190
        %p528 = pneg %p187
        %p529 = pneg %p211
        %p530 = pneg %p208
        %p531 = pneg %p232
        %p532 = pneg %p229
        %p533 = pneg %p253
        %p534 = pneg %p250
        %p535 = pneg %p274
        %p536 = pneg %p271
        %p537 = pneg %p295
        %p538 = pneg %p292
        %p539 = pneg %p316
        %p540 = pneg %p313
        %p541 = pneg %p337
        %p542 = pneg %p334
        %p543 = pneg %p358
        %p544 = pneg %p355
        %p545 = pneg %p379
        %p546 = pneg %p376
        %p547 = pneg %p400
        %p548 = pneg %p397
        %p549 = pneg %p428
        %p550 = pneg %p425
        %s551 = sand.u32 %s415, 1
        %s552 = scalar_lea.sflag [#allocation6], %s551
        %s553 = sand.u32 %s415, 1
        %s554 = smul.addr %s553, 8
        %s555 = scalar_lea.vmem [#allocation5], %s554
        %p556 = scmp.lt.s32.totalorder %s35, 1
        %s557 = scalar_select %p556, %s35, 1
        %s558 = smul.addr %s557, 2
        %s559 = smul.addr %s558, 8
        %s560 = scalar_lea.vmem %s0, %s559
        %p562 = scmp.eq.s32.totalorder %s36, 0
        // Predicated region
        $region89: #{tpu_custom_call.1} parent=87 // pred_check
          %p563 = pneg %p562
        $region90: #{tpu_custom_call.1} parent=87 // pred_check_branch
          %565 = sbr.rel (%p563) target = $region92
        $region91: #{tpu_custom_call.1} parent=87 // pred_region
          %v566 = vld [vmem:[%s560] sm:$0xff]
          %v567 = vld [vmem:[%s560 + $0x8] sm:$0xff]
          %v568 = vld [vmem:[%s1] sm:$0x1]
          %v569 = vld [vmem:[%s2] sm:$0x1]
          %570 = vadd.xlane.f32.xlu0 %v566
          %v571 = vpop.xlane.xlu0 %570
          %572 = vadd.xlane.f32.xlu0 %v567
          %v573 = vpop.xlane.xlu0 %572
          %v574 = vrcp.pop 128.0
          %v575 = vmul.f32 128.0, %v574
          %v576 = vsub.f32 1.0, %v575
          %v577 = vmul.f32 %v574, %v576
          %v578 = vadd.f32 %v574, %v577
          %vm579 = vweird.f32 %v574
          %v580 = vsel %vm579, %v574, %v578
          %v581 = vmul.f32 %v571, %v580
          %v582 = vmul.f32 %v573, %v580
          %v583 = vsub.f32 %v566, %v581
          %v584 = vsub.f32 %v567, %v582
          %v585 = vmul.f32 %v583, %v583
          %v586 = vmul.f32 %v584, %v584
          %587 = vadd.xlane.f32.xlu0 %v585
          %v588 = vpop.xlane.xlu0 %587
          %589 = vadd.xlane.f32.xlu0 %v586
          %v590 = vpop.xlane.xlu0 %589
          %v591 = vmul.f32 %v588, %v580
          %v592 = vmul.f32 %v590, %v580
          %v593 = vadd.f32 %v591, 1e-05
          %v594 = vadd.f32 %v592, 1e-05
          %v595 = vrsqrt.pop %v593
          %v596 = vmul.f32 %v595, %v593
          %v597 = vmul.f32 %v596, %v595
          %v598 = vmul.f32 0.5, %v597
          %v599 = vsub.f32 1.5, %v598
          %v600 = vmul.f32 %v595, %v599
          %vm601 = vweird.f32 %v593
          %vm602 = vweird.f32 %v595
          %vm603 = vmor %vm601, %vm602
          %v604 = vsel %vm603, %v595, %v600
          %v605 = vrsqrt.pop %v594
          %v606 = vmul.f32 %v605, %v594
          %v607 = vmul.f32 %v606, %v605
          %v608 = vmul.f32 0.5, %v607
          %v609 = vsub.f32 1.5, %v608
          %v610 = vmul.f32 %v605, %v609
          %vm611 = vweird.f32 %v594
          %vm612 = vweird.f32 %v605
          %vm613 = vmor %vm611, %vm612
          %v614 = vsel %vm613, %v605, %v610
          %v615 = vmul.f32 %v583, %v604
          %v616 = vmul.f32 %v584, %v614
          %v618 = vperm.slane %v568, 0
          %v620 = vmul.f32 %v615, %v618
          %v621 = vmul.f32 %v616, %v618
          %v623 = vperm.slane %v569, 0
          %v625 = vadd.f32 %v620, %v623
          %v626 = vadd.f32 %v621, %v623
          %v627 = vpack.c.bf16 %v625, %v625
          %v628 = vpack.c.bf16 %v626, %v626
          %629 = vst [vmem:[#allocation2] sm:$0xf] %v627
          %630 = vst [vmem:[#allocation2 + $0x4] sm:$0xf] %v628
          %v631 = vld [vmem:[%s4] sm:$0xf]
          %v632 = vld [vmem:[%s4 + $0x4] sm:$0xf]
          %v633 = vld [vmem:[%s4 + $0x8] sm:$0xf]
          %v634 = vld [vmem:[%s4 + $0xc] sm:$0xf]
          %v635 = vld [vmem:[%s4 + $0x10] sm:$0xf]
          %v636 = vld [vmem:[%s4 + $0x14] sm:$0xf]
          %v637 = vld [vmem:[%s4 + $0x18] sm:$0xf]
          %v638 = vld [vmem:[%s4 + $0x1c] sm:$0xf]
          %v639 = vld [vmem:[%s4 + $0x20] sm:$0xf]
          %v640 = vld [vmem:[%s4 + $0x24] sm:$0xf]
          %v641 = vld [vmem:[%s4 + $0x28] sm:$0xf]
          %v642 = vld [vmem:[%s4 + $0x2c] sm:$0xf]
          %v643 = vld [vmem:[%s4 + $0x30] sm:$0xf]
          %v644 = vld [vmem:[%s4 + $0x34] sm:$0xf]
          %v645 = vld [vmem:[%s4 + $0x38] sm:$0xf]
          %v646 = vld [vmem:[%s4 + $0x3c] sm:$0xf]
          %v647 = vld [vmem:[%s7] sm:$0x1]
          %v649 = vperm.slane %v647, 0
          %v653 = vunpack.c.l.b16 %v627
          %v654 = vunpack.c.l.b16 %v628
          %v655 = vpack.c.b16 %v654, %v653
          %v673 = vunpack.c.l.b16 %v631
          %v674 = vunpack.c.l.b16 %v632
          %v675 = vunpack.c.l.b16 %v633
          %v676 = vunpack.c.l.b16 %v634
          %v677 = vunpack.c.l.b16 %v635
          %v678 = vunpack.c.l.b16 %v636
          %v679 = vunpack.c.l.b16 %v637
          %v680 = vunpack.c.l.b16 %v638
          %v681 = vunpack.c.l.b16 %v639
          %v682 = vunpack.c.l.b16 %v640
          %v683 = vunpack.c.l.b16 %v641
          %v684 = vunpack.c.l.b16 %v642
          %v685 = vunpack.c.l.b16 %v643
          %v686 = vunpack.c.l.b16 %v644
          %v687 = vunpack.c.l.b16 %v645
          %v688 = vunpack.c.l.b16 %v646
          %v689 = vpack.c.b16 %v674, %v673
          %v690 = vpack.c.b16 %v676, %v675
          %v691 = vpack.c.b16 %v678, %v677
          %v692 = vpack.c.b16 %v680, %v679
          %v693 = vpack.c.b16 %v682, %v681
          %v694 = vpack.c.b16 %v684, %v683
          %v695 = vpack.c.b16 %v686, %v685
          %v696 = vpack.c.b16 %v688, %v687
          %705 = vmatpush.bf16.msra.mxu0 %v696
          %706 = vmatpush.bf16.msra.mxu0 %v695
          %707 = vmatpush.bf16.msra.mxu0 %v694
          %708 = vmatpush.bf16.msra.mxu0 %v693
          %709 = vmatpush.bf16.msra.mxu0 %v692
          %710 = vmatpush.bf16.msra.mxu0 %v691
          %711 = vmatpush.bf16.msra.mxu0 %v690
          %712 = vmatpush.bf16.msra.mxu0 %v689
          %713 = vmatmul.bf16.gmra.mxu0 %v655
          %v714 = vpop.f32.mrf.mxu0
          %v715 = vadd.f32 %v649, %v714
          %v716 = vpop.f32.mrf.mxu0
          %v717 = vadd.f32 %v649, %v716
          %718 = vdwg.mxu0
          %v719 = vld [vmem:[%s5] sm:$0xf]
          %v720 = vld [vmem:[%s5 + $0x4] sm:$0xf]
          %v721 = vld [vmem:[%s5 + $0x8] sm:$0xf]
          %v722 = vld [vmem:[%s5 + $0xc] sm:$0xf]
          %v723 = vld [vmem:[%s5 + $0x10] sm:$0xf]
          %v724 = vld [vmem:[%s5 + $0x14] sm:$0xf]
          %v725 = vld [vmem:[%s5 + $0x18] sm:$0xf]
          %v726 = vld [vmem:[%s5 + $0x1c] sm:$0xf]
          %v727 = vld [vmem:[%s5 + $0x20] sm:$0xf]
          %v728 = vld [vmem:[%s5 + $0x24] sm:$0xf]
          %v729 = vld [vmem:[%s5 + $0x28] sm:$0xf]
          %v730 = vld [vmem:[%s5 + $0x2c] sm:$0xf]
          %v731 = vld [vmem:[%s5 + $0x30] sm:$0xf]
          %v732 = vld [vmem:[%s5 + $0x34] sm:$0xf]
          %v733 = vld [vmem:[%s5 + $0x38] sm:$0xf]
          %v734 = vld [vmem:[%s5 + $0x3c] sm:$0xf]
          %v735 = vld [vmem:[%s8] sm:$0x1]
          %v737 = vperm.slane %v735, 0
          %v755 = vunpack.c.l.b16 %v719
          %v756 = vunpack.c.l.b16 %v720
          %v757 = vunpack.c.l.b16 %v721
          %v758 = vunpack.c.l.b16 %v722
          %v759 = vunpack.c.l.b16 %v723
          %v760 = vunpack.c.l.b16 %v724
          %v761 = vunpack.c.l.b16 %v725
          %v762 = vunpack.c.l.b16 %v726
          %v763 = vunpack.c.l.b16 %v727
          %v764 = vunpack.c.l.b16 %v728
          %v765 = vunpack.c.l.b16 %v729
          %v766 = vunpack.c.l.b16 %v730
          %v767 = vunpack.c.l.b16 %v731
          %v768 = vunpack.c.l.b16 %v732
          %v769 = vunpack.c.l.b16 %v733
          %v770 = vunpack.c.l.b16 %v734
          %v771 = vpack.c.b16 %v756, %v755
          %v772 = vpack.c.b16 %v758, %v757
          %v773 = vpack.c.b16 %v760, %v759
          %v774 = vpack.c.b16 %v762, %v761
          %v775 = vpack.c.b16 %v764, %v763
          %v776 = vpack.c.b16 %v766, %v765
          %v777 = vpack.c.b16 %v768, %v767
          %v778 = vpack.c.b16 %v770, %v769
          %787 = vmatpush.bf16.msra.mxu0 %v778
          %788 = vmatpush.bf16.msra.mxu0 %v777
          %789 = vmatpush.bf16.msra.mxu0 %v776
          %790 = vmatpush.bf16.msra.mxu0 %v775
          %791 = vmatpush.bf16.msra.mxu0 %v774
          %792 = vmatpush.bf16.msra.mxu0 %v773
          %793 = vmatpush.bf16.msra.mxu0 %v772
          %794 = vmatpush.bf16.msra.mxu0 %v771
          %795 = vmatmul.bf16.gmra.mxu0 %v655
          %v796 = vpop.f32.mrf.mxu0
          %v797 = vadd.f32 %v737, %v796
          %v798 = vpop.f32.mrf.mxu0
          %v799 = vadd.f32 %v737, %v798
          %800 = vdwg.mxu0
          %v801 = vpack.c.bf16 %v715, %v715
          %v802 = vpack.c.bf16 %v717, %v717
          %vm803 = vcmask 257024
          %804 = vst.msk [vmem:[#allocation3] sm:$0xf] %vm803, %v801
          %805 = vst.msk [vmem:[#allocation3 + $0x4] sm:$0xf] %vm803, %v802
          %v806 = vpack.c.bf16 %v797, %v797
          %v807 = vpack.c.bf16 %v799, %v799
          %808 = vst.msk [vmem:[#allocation4] sm:$0xf] %vm803, %v806
          %809 = vst.msk [vmem:[#allocation4 + $0x4] sm:$0xf] %vm803, %v807
          %s810 = scalar_lea.vmem %s4, 64
          %v811 = vld [vmem:[%s810] sm:$0xf]
          %v812 = vld [vmem:[%s810 + $0x4] sm:$0xf]
          %v813 = vld [vmem:[%s810 + $0x8] sm:$0xf]
          %v814 = vld [vmem:[%s810 + $0xc] sm:$0xf]
          %v815 = vld [vmem:[%s810 + $0x10] sm:$0xf]
          %v816 = vld [vmem:[%s810 + $0x14] sm:$0xf]
          %v817 = vld [vmem:[%s810 + $0x18] sm:$0xf]
          %v818 = vld [vmem:[%s810 + $0x1c] sm:$0xf]
          %v819 = vld [vmem:[%s810 + $0x20] sm:$0xf]
          %v820 = vld [vmem:[%s810 + $0x24] sm:$0xf]
          %v821 = vld [vmem:[%s810 + $0x28] sm:$0xf]
          %v822 = vld [vmem:[%s810 + $0x2c] sm:$0xf]
          %v823 = vld [vmem:[%s810 + $0x30] sm:$0xf]
          %v824 = vld [vmem:[%s810 + $0x34] sm:$0xf]
          %v825 = vld [vmem:[%s810 + $0x38] sm:$0xf]
          %v826 = vld [vmem:[%s810 + $0x3c] sm:$0xf]
          %s827 = scalar_lea.vmem %s7, 1
          %v828 = vld [vmem:[%s827] sm:$0x1]
          %v830 = vperm.slane %v828, 0
          %v848 = vunpack.c.l.b16 %v811
          %v849 = vunpack.c.l.b16 %v812
          %v850 = vunpack.c.l.b16 %v813
          %v851 = vunpack.c.l.b16 %v814
          %v852 = vunpack.c.l.b16 %v815
          %v853 = vunpack.c.l.b16 %v816
          %v854 = vunpack.c.l.b16 %v817
          %v855 = vunpack.c.l.b16 %v818
          %v856 = vunpack.c.l.b16 %v819
          %v857 = vunpack.c.l.b16 %v820
          %v858 = vunpack.c.l.b16 %v821
          %v859 = vunpack.c.l.b16 %v822
          %v860 = vunpack.c.l.b16 %v823
          %v861 = vunpack.c.l.b16 %v824
          %v862 = vunpack.c.l.b16 %v825
          %v863 = vunpack.c.l.b16 %v826
          %v864 = vpack.c.b16 %v849, %v848
          %v865 = vpack.c.b16 %v851, %v850
          %v866 = vpack.c.b16 %v853, %v852
          %v867 = vpack.c.b16 %v855, %v854
          %v868 = vpack.c.b16 %v857, %v856
          %v869 = vpack.c.b16 %v859, %v858
          %v870 = vpack.c.b16 %v861, %v860
          %v871 = vpack.c.b16 %v863, %v862
          %880 = vmatpush.bf16.msra.mxu0 %v871
          %881 = vmatpush.bf16.msra.mxu0 %v870
          %882 = vmatpush.bf16.msra.mxu0 %v869
          %883 = vmatpush.bf16.msra.mxu0 %v868
          %884 = vmatpush.bf16.msra.mxu0 %v867
          %885 = vmatpush.bf16.msra.mxu0 %v866
          %886 = vmatpush.bf16.msra.mxu0 %v865
          %887 = vmatpush.bf16.msra.mxu0 %v864
          %888 = vmatmul.bf16.gmra.mxu0 %v655
          %v889 = vpop.f32.mrf.mxu0
          %v890 = vadd.f32 %v830, %v889
          %v891 = vpop.f32.mrf.mxu0
          %v892 = vadd.f32 %v830, %v891
          %893 = vdwg.mxu0
          %s894 = scalar_lea.vmem %s5, 64
          %v895 = vld [vmem:[%s894] sm:$0xf]
          %v896 = vld [vmem:[%s894 + $0x4] sm:$0xf]
          %v897 = vld [vmem:[%s894 + $0x8] sm:$0xf]
          %v898 = vld [vmem:[%s894 + $0xc] sm:$0xf]
          %v899 = vld [vmem:[%s894 + $0x10] sm:$0xf]
          %v900 = vld [vmem:[%s894 + $0x14] sm:$0xf]
          %v901 = vld [vmem:[%s894 + $0x18] sm:$0xf]
          %v902 = vld [vmem:[%s894 + $0x1c] sm:$0xf]
          %v903 = vld [vmem:[%s894 + $0x20] sm:$0xf]
          %v904 = vld [vmem:[%s894 + $0x24] sm:$0xf]
          %v905 = vld [vmem:[%s894 + $0x28] sm:$0xf]
          %v906 = vld [vmem:[%s894 + $0x2c] sm:$0xf]
          %v907 = vld [vmem:[%s894 + $0x30] sm:$0xf]
          %v908 = vld [vmem:[%s894 + $0x34] sm:$0xf]
          %v909 = vld [vmem:[%s894 + $0x38] sm:$0xf]
          %v910 = vld [vmem:[%s894 + $0x3c] sm:$0xf]
          %s911 = scalar_lea.vmem %s8, 1
          %v912 = vld [vmem:[%s911] sm:$0x1]
          %v914 = vperm.slane %v912, 0
          %v932 = vunpack.c.l.b16 %v895
          %v933 = vunpack.c.l.b16 %v896
          %v934 = vunpack.c.l.b16 %v897
          %v935 = vunpack.c.l.b16 %v898
          %v936 = vunpack.c.l.b16 %v899
          %v937 = vunpack.c.l.b16 %v900
          %v938 = vunpack.c.l.b16 %v901
          %v939 = vunpack.c.l.b16 %v902
          %v940 = vunpack.c.l.b16 %v903
          %v941 = vunpack.c.l.b16 %v904
          %v942 = vunpack.c.l.b16 %v905
          %v943 = vunpack.c.l.b16 %v906
          %v944 = vunpack.c.l.b16 %v907
          %v945 = vunpack.c.l.b16 %v908
          %v946 = vunpack.c.l.b16 %v909
          %v947 = vunpack.c.l.b16 %v910
          %v948 = vpack.c.b16 %v933, %v932
          %v949 = vpack.c.b16 %v935, %v934
          %v950 = vpack.c.b16 %v937, %v936
          %v951 = vpack.c.b16 %v939, %v938
          %v952 = vpack.c.b16 %v941, %v940
          %v953 = vpack.c.b16 %v943, %v942
          %v954 = vpack.c.b16 %v945, %v944
          %v955 = vpack.c.b16 %v947, %v946
          %964 = vmatpush.bf16.msra.mxu0 %v955
          %965 = vmatpush.bf16.msra.mxu0 %v954
          %966 = vmatpush.bf16.msra.mxu0 %v953
          %967 = vmatpush.bf16.msra.mxu0 %v952
          %968 = vmatpush.bf16.msra.mxu0 %v951
          %969 = vmatpush.bf16.msra.mxu0 %v950
          %970 = vmatpush.bf16.msra.mxu0 %v949
          %971 = vmatpush.bf16.msra.mxu0 %v948
          %972 = vmatmul.bf16.gmra.mxu0 %v655
          %v973 = vpop.f32.mrf.mxu0
          %v974 = vadd.f32 %v914, %v973
          %v975 = vpop.f32.mrf.mxu0
          %v976 = vadd.f32 %v914, %v975
          %977 = vdwg.mxu0
          %v978 = vpack.c.bf16 %v890, %v890
          %v979 = vpack.c.bf16 %v892, %v892
          %s980 = scalar_lea.vmem [#allocation3], 8
          %981 = vst.msk [vmem:[%s980] sm:$0xf] %vm803, %v978
          %982 = vst.msk [vmem:[%s980 + $0x4] sm:$0xf] %vm803, %v979
          %v983 = vpack.c.bf16 %v974, %v974
          %v984 = vpack.c.bf16 %v976, %v976
          %s985 = scalar_lea.vmem [#allocation4], 8
          %986 = vst.msk [vmem:[%s985] sm:$0xf] %vm803, %v983
          %987 = vst.msk [vmem:[%s985 + $0x4] sm:$0xf] %vm803, %v984
          %s988 = scalar_lea.vmem %s4, 128
          %v989 = vld [vmem:[%s988] sm:$0xf]
          %v990 = vld [vmem:[%s988 + $0x4] sm:$0xf]
          %v991 = vld [vmem:[%s988 + $0x8] sm:$0xf]
          %v992 = vld [vmem:[%s988 + $0xc] sm:$0xf]
          %v993 = vld [vmem:[%s988 + $0x10] sm:$0xf]
          %v994 = vld [vmem:[%s988 + $0x14] sm:$0xf]
          %v995 = vld [vmem:[%s988 + $0x18] sm:$0xf]
          %v996 = vld [vmem:[%s988 + $0x1c] sm:$0xf]
          %v997 = vld [vmem:[%s988 + $0x20] sm:$0xf]
          %v998 = vld [vmem:[%s988 + $0x24] sm:$0xf]
          %v999 = vld [vmem:[%s988 + $0x28] sm:$0xf]
          %v1000 = vld [vmem:[%s988 + $0x2c] sm:$0xf]
          %v1001 = vld [vmem:[%s988 + $0x30] sm:$0xf]
          %v1002 = vld [vmem:[%s988 + $0x34] sm:$0xf]
          %v1003 = vld [vmem:[%s988 + $0x38] sm:$0xf]
          %v1004 = vld [vmem:[%s988 + $0x3c] sm:$0xf]
          %s1005 = scalar_lea.vmem %s7, 2
          %v1006 = vld [vmem:[%s1005] sm:$0x1]
          %v1008 = vperm.slane %v1006, 0
          %v1026 = vunpack.c.l.b16 %v989
          %v1027 = vunpack.c.l.b16 %v990
          %v1028 = vunpack.c.l.b16 %v991
          %v1029 = vunpack.c.l.b16 %v992
          %v1030 = vunpack.c.l.b16 %v993
          %v1031 = vunpack.c.l.b16 %v994
          %v1032 = vunpack.c.l.b16 %v995
          %v1033 = vunpack.c.l.b16 %v996
          %v1034 = vunpack.c.l.b16 %v997
          %v1035 = vunpack.c.l.b16 %v998
          %v1036 = vunpack.c.l.b16 %v999
          %v1037 = vunpack.c.l.b16 %v1000
          %v1038 = vunpack.c.l.b16 %v1001
          %v1039 = vunpack.c.l.b16 %v1002
          %v1040 = vunpack.c.l.b16 %v1003
          %v1041 = vunpack.c.l.b16 %v1004
          %v1042 = vpack.c.b16 %v1027, %v1026
          %v1043 = vpack.c.b16 %v1029, %v1028
          %v1044 = vpack.c.b16 %v1031, %v1030
          %v1045 = vpack.c.b16 %v1033, %v1032
          %v1046 = vpack.c.b16 %v1035, %v1034
          %v1047 = vpack.c.b16 %v1037, %v1036
          %v1048 = vpack.c.b16 %v1039, %v1038
          %v1049 = vpack.c.b16 %v1041, %v1040
          %1058 = vmatpush.bf16.msra.mxu0 %v1049
          %1059 = vmatpush.bf16.msra.mxu0 %v1048
          %1060 = vmatpush.bf16.msra.mxu0 %v1047
          %1061 = vmatpush.bf16.msra.mxu0 %v1046
          %1062 = vmatpush.bf16.msra.mxu0 %v1045
          %1063 = vmatpush.bf16.msra.mxu0 %v1044
          %1064 = vmatpush.bf16.msra.mxu0 %v1043
          %1065 = vmatpush.bf16.msra.mxu0 %v1042
          %1066 = vmatmul.bf16.gmra.mxu0 %v655
          %v1067 = vpop.f32.mrf.mxu0
          %v1068 = vadd.f32 %v1008, %v1067
          %v1069 = vpop.f32.mrf.mxu0
          %v1070 = vadd.f32 %v1008, %v1069
          %1071 = vdwg.mxu0
          %s1072 = scalar_lea.vmem %s5, 128
          %v1073 = vld [vmem:[%s1072] sm:$0xf]
          %v1074 = vld [vmem:[%s1072 + $0x4] sm:$0xf]
          %v1075 = vld [vmem:[%s1072 + $0x8] sm:$0xf]
          %v1076 = vld [vmem:[%s1072 + $0xc] sm:$0xf]
          %v1077 = vld [vmem:[%s1072 + $0x10] sm:$0xf]
          %v1078 = vld [vmem:[%s1072 + $0x14] sm:$0xf]
          %v1079 = vld [vmem:[%s1072 + $0x18] sm:$0xf]
          %v1080 = vld [vmem:[%s1072 + $0x1c] sm:$0xf]
          %v1081 = vld [vmem:[%s1072 + $0x20] sm:$0xf]
          %v1082 = vld [vmem:[%s1072 + $0x24] sm:$0xf]
          %v1083 = vld [vmem:[%s1072 + $0x28] sm:$0xf]
          %v1084 = vld [vmem:[%s1072 + $0x2c] sm:$0xf]
          %v1085 = vld [vmem:[%s1072 + $0x30] sm:$0xf]
          %v1086 = vld [vmem:[%s1072 + $0x34] sm:$0xf]
          %v1087 = vld [vmem:[%s1072 + $0x38] sm:$0xf]
          %v1088 = vld [vmem:[%s1072 + $0x3c] sm:$0xf]
          %s1089 = scalar_lea.vmem %s8, 2
          %v1090 = vld [vmem:[%s1089] sm:$0x1]
          %v1092 = vperm.slane %v1090, 0
          %v1110 = vunpack.c.l.b16 %v1073
          %v1111 = vunpack.c.l.b16 %v1074
          %v1112 = vunpack.c.l.b16 %v1075
          %v1113 = vunpack.c.l.b16 %v1076
          %v1114 = vunpack.c.l.b16 %v1077
          %v1115 = vunpack.c.l.b16 %v1078
          %v1116 = vunpack.c.l.b16 %v1079
          %v1117 = vunpack.c.l.b16 %v1080
          %v1118 = vunpack.c.l.b16 %v1081
          %v1119 = vunpack.c.l.b16 %v1082
          %v1120 = vunpack.c.l.b16 %v1083
          %v1121 = vunpack.c.l.b16 %v1084
          %v1122 = vunpack.c.l.b16 %v1085
          %v1123 = vunpack.c.l.b16 %v1086
          %v1124 = vunpack.c.l.b16 %v1087
          %v1125 = vunpack.c.l.b16 %v1088
          %v1126 = vpack.c.b16 %v1111, %v1110
          %v1127 = vpack.c.b16 %v1113, %v1112
          %v1128 = vpack.c.b16 %v1115, %v1114
          %v1129 = vpack.c.b16 %v1117, %v1116
          %v1130 = vpack.c.b16 %v1119, %v1118
          %v1131 = vpack.c.b16 %v1121, %v1120
          %v1132 = vpack.c.b16 %v1123, %v1122
          %v1133 = vpack.c.b16 %v1125, %v1124
          %1142 = vmatpush.bf16.msra.mxu0 %v1133
          %1143 = vmatpush.bf16.msra.mxu0 %v1132
          %1144 = vmatpush.bf16.msra.mxu0 %v1131
          %1145 = vmatpush.bf16.msra.mxu0 %v1130
          %1146 = vmatpush.bf16.msra.mxu0 %v1129
          %1147 = vmatpush.bf16.msra.mxu0 %v1128
          %1148 = vmatpush.bf16.msra.mxu0 %v1127
          %1149 = vmatpush.bf16.msra.mxu0 %v1126
          %1150 = vmatmul.bf16.gmra.mxu0 %v655
          %v1151 = vpop.f32.mrf.mxu0
          %v1152 = vadd.f32 %v1092, %v1151
          %v1153 = vpop.f32.mrf.mxu0
          %v1154 = vadd.f32 %v1092, %v1153
          %1155 = vdwg.mxu0
          %v1156 = vpack.c.bf16 %v1068, %v1068
          %v1157 = vpack.c.bf16 %v1070, %v1070
          %s1158 = scalar_lea.vmem [#allocation3], 16
          %1159 = vst.msk [vmem:[%s1158] sm:$0xf] %vm803, %v1156
          %1160 = vst.msk [vmem:[%s1158 + $0x4] sm:$0xf] %vm803, %v1157
          %v1161 = vpack.c.bf16 %v1152, %v1152
          %v1162 = vpack.c.bf16 %v1154, %v1154
          %s1163 = scalar_lea.vmem [#allocation4], 16
          %1164 = vst.msk [vmem:[%s1163] sm:$0xf] %vm803, %v1161
          %1165 = vst.msk [vmem:[%s1163 + $0x4] sm:$0xf] %vm803, %v1162
          %s1166 = scalar_lea.vmem %s4, 192
          %v1167 = vld [vmem:[%s1166] sm:$0xf]
          %v1168 = vld [vmem:[%s1166 + $0x4] sm:$0xf]
          %v1169 = vld [vmem:[%s1166 + $0x8] sm:$0xf]
          %v1170 = vld [vmem:[%s1166 + $0xc] sm:$0xf]
          %v1171 = vld [vmem:[%s1166 + $0x10] sm:$0xf]
          %v1172 = vld [vmem:[%s1166 + $0x14] sm:$0xf]
          %v1173 = vld [vmem:[%s1166 + $0x18] sm:$0xf]
          %v1174 = vld [vmem:[%s1166 + $0x1c] sm:$0xf]
          %v1175 = vld [vmem:[%s1166 + $0x20] sm:$0xf]
          %v1176 = vld [vmem:[%s1166 + $0x24] sm:$0xf]
          %v1177 = vld [vmem:[%s1166 + $0x28] sm:$0xf]
          %v1178 = vld [vmem:[%s1166 + $0x2c] sm:$0xf]
          %v1179 = vld [vmem:[%s1166 + $0x30] sm:$0xf]
          %v1180 = vld [vmem:[%s1166 + $0x34] sm:$0xf]
          %v1181 = vld [vmem:[%s1166 + $0x38] sm:$0xf]
          %v1182 = vld [vmem:[%s1166 + $0x3c] sm:$0xf]
          %s1183 = scalar_lea.vmem %s7, 3
          %v1184 = vld [vmem:[%s1183] sm:$0x1]
          %v1186 = vperm.slane %v1184, 0
          %v1204 = vunpack.c.l.b16 %v1167
          %v1205 = vunpack.c.l.b16 %v1168
          %v1206 = vunpack.c.l.b16 %v1169
          %v1207 = vunpack.c.l.b16 %v1170
          %v1208 = vunpack.c.l.b16 %v1171
          %v1209 = vunpack.c.l.b16 %v1172
          %v1210 = vunpack.c.l.b16 %v1173
          %v1211 = vunpack.c.l.b16 %v1174
          %v1212 = vunpack.c.l.b16 %v1175
          %v1213 = vunpack.c.l.b16 %v1176
          %v1214 = vunpack.c.l.b16 %v1177
          %v1215 = vunpack.c.l.b16 %v1178
          %v1216 = vunpack.c.l.b16 %v1179
          %v1217 = vunpack.c.l.b16 %v1180
          %v1218 = vunpack.c.l.b16 %v1181
          %v1219 = vunpack.c.l.b16 %v1182
          %v1220 = vpack.c.b16 %v1205, %v1204
          %v1221 = vpack.c.b16 %v1207, %v1206
          %v1222 = vpack.c.b16 %v1209, %v1208
          %v1223 = vpack.c.b16 %v1211, %v1210
          %v1224 = vpack.c.b16 %v1213, %v1212
          %v1225 = vpack.c.b16 %v1215, %v1214
          %v1226 = vpack.c.b16 %v1217, %v1216
          %v1227 = vpack.c.b16 %v1219, %v1218
          %1236 = vmatpush.bf16.msra.mxu0 %v1227
          %1237 = vmatpush.bf16.msra.mxu0 %v1226
          %1238 = vmatpush.bf16.msra.mxu0 %v1225
          %1239 = vmatpush.bf16.msra.mxu0 %v1224
          %1240 = vmatpush.bf16.msra.mxu0 %v1223
          %1241 = vmatpush.bf16.msra.mxu0 %v1222
          %1242 = vmatpush.bf16.msra.mxu0 %v1221
          %1243 = vmatpush.bf16.msra.mxu0 %v1220
          %1244 = vmatmul.bf16.gmra.mxu0 %v655
          %v1245 = vpop.f32.mrf.mxu0
          %v1246 = vadd.f32 %v1186, %v1245
          %v1247 = vpop.f32.mrf.mxu0
          %v1248 = vadd.f32 %v1186, %v1247
          %1249 = vdwg.mxu0
          %s1250 = scalar_lea.vmem %s5, 192
          %v1251 = vld [vmem:[%s1250] sm:$0xf]
          %v1252 = vld [vmem:[%s1250 + $0x4] sm:$0xf]
          %v1253 = vld [vmem:[%s1250 + $0x8] sm:$0xf]
          %v1254 = vld [vmem:[%s1250 + $0xc] sm:$0xf]
          %v1255 = vld [vmem:[%s1250 + $0x10] sm:$0xf]
          %v1256 = vld [vmem:[%s1250 + $0x14] sm:$0xf]
          %v1257 = vld [vmem:[%s1250 + $0x18] sm:$0xf]
          %v1258 = vld [vmem:[%s1250 + $0x1c] sm:$0xf]
          %v1259 = vld [vmem:[%s1250 + $0x20] sm:$0xf]
          %v1260 = vld [vmem:[%s1250 + $0x24] sm:$0xf]
          %v1261 = vld [vmem:[%s1250 + $0x28] sm:$0xf]
          %v1262 = vld [vmem:[%s1250 + $0x2c] sm:$0xf]
          %v1263 = vld [vmem:[%s1250 + $0x30] sm:$0xf]
          %v1264 = vld [vmem:[%s1250 + $0x34] sm:$0xf]
          %v1265 = vld [vmem:[%s1250 + $0x38] sm:$0xf]
          %v1266 = vld [vmem:[%s1250 + $0x3c] sm:$0xf]
          %s1267 = scalar_lea.vmem %s8, 3
          %v1268 = vld [vmem:[%s1267] sm:$0x1]
          %v1270 = vperm.slane %v1268, 0
          %v1288 = vunpack.c.l.b16 %v1251
          %v1289 = vunpack.c.l.b16 %v1252
          %v1290 = vunpack.c.l.b16 %v1253
          %v1291 = vunpack.c.l.b16 %v1254
          %v1292 = vunpack.c.l.b16 %v1255
          %v1293 = vunpack.c.l.b16 %v1256
          %v1294 = vunpack.c.l.b16 %v1257
          %v1295 = vunpack.c.l.b16 %v1258
          %v1296 = vunpack.c.l.b16 %v1259
          %v1297 = vunpack.c.l.b16 %v1260
          %v1298 = vunpack.c.l.b16 %v1261
          %v1299 = vunpack.c.l.b16 %v1262
          %v1300 = vunpack.c.l.b16 %v1263
          %v1301 = vunpack.c.l.b16 %v1264
          %v1302 = vunpack.c.l.b16 %v1265
          %v1303 = vunpack.c.l.b16 %v1266
          %v1304 = vpack.c.b16 %v1289, %v1288
          %v1305 = vpack.c.b16 %v1291, %v1290
          %v1306 = vpack.c.b16 %v1293, %v1292
          %v1307 = vpack.c.b16 %v1295, %v1294
          %v1308 = vpack.c.b16 %v1297, %v1296
          %v1309 = vpack.c.b16 %v1299, %v1298
          %v1310 = vpack.c.b16 %v1301, %v1300
          %v1311 = vpack.c.b16 %v1303, %v1302
          %1320 = vmatpush.bf16.msra.mxu0 %v1311
          %1321 = vmatpush.bf16.msra.mxu0 %v1310
          %1322 = vmatpush.bf16.msra.mxu0 %v1309
          %1323 = vmatpush.bf16.msra.mxu0 %v1308
          %1324 = vmatpush.bf16.msra.mxu0 %v1307
          %1325 = vmatpush.bf16.msra.mxu0 %v1306
          %1326 = vmatpush.bf16.msra.mxu0 %v1305
          %1327 = vmatpush.bf16.msra.mxu0 %v1304
          %1328 = vmatmul.bf16.gmra.mxu0 %v655
          %v1329 = vpop.f32.mrf.mxu0
          %v1330 = vadd.f32 %v1270, %v1329
          %v1331 = vpop.f32.mrf.mxu0
          %v1332 = vadd.f32 %v1270, %v1331
          %1333 = vdwg.mxu0
          %v1334 = vpack.c.bf16 %v1246, %v1246
          %v1335 = vpack.c.bf16 %v1248, %v1248
          %s1336 = scalar_lea.vmem [#allocation3], 24
          %1337 = vst.msk [vmem:[%s1336] sm:$0xf] %vm803, %v1334
          %1338 = vst.msk [vmem:[%s1336 + $0x4] sm:$0xf] %vm803, %v1335
          %v1339 = vpack.c.bf16 %v1330, %v1330
          %v1340 = vpack.c.bf16 %v1332, %v1332
          %s1341 = scalar_lea.vmem [#allocation4], 24
          %1342 = vst.msk [vmem:[%s1341] sm:$0xf] %vm803, %v1339
          %1343 = vst.msk [vmem:[%s1341 + $0x4] sm:$0xf] %vm803, %v1340
        $region92: #{tpu_custom_call.1} parent=87 // pred_fallthru
          _
        %s1344 = smul.u32 %s36, 8
        %s1345 = scalar_lea.vmem %s560, %s1344
        %v1346 = vld [vmem:[%s1345] sm:$0xff]
        %s1347 = sshra.s32 %s1344, 3
        %s1348 = sand.u32 %s1344, 7
        %s1349 = smul.addr %s1347, 4
        %s1350 = scalar_lea.vmem [#allocation2], %s1349
        %v1351 = vld [vmem:[%s1350] sm:$0xf]
        %v1352 = vlaneseq
        %v1353 = vshrl.u32 %v1352, 7
        %v1354 = vstv %s1344
        %v1355 = vadd.s32 %v1353, %v1354
        %v1356 = vlaneseq
        %v1357 = vand.u32 %v1356, 127
        %vm1358 = vcmp.ge.s32.totalorder %v1355, %v1357
        %v1359 = vld [vmem:[%s3] sm:$0xf]
        %v1360 = vld [vmem:[%s3 + $0x4] sm:$0xf]
        %v1361 = vld [vmem:[%s3 + $0x8] sm:$0xf]
        %v1362 = vld [vmem:[%s3 + $0xc] sm:$0xf]
        %v1363 = vld [vmem:[%s3 + $0x10] sm:$0xf]
        %v1364 = vld [vmem:[%s3 + $0x14] sm:$0xf]
        %v1365 = vld [vmem:[%s3 + $0x18] sm:$0xf]
        %v1366 = vld [vmem:[%s3 + $0x1c] sm:$0xf]
        %v1367 = vld [vmem:[%s3 + $0x20] sm:$0xf]
        %v1368 = vld [vmem:[%s3 + $0x24] sm:$0xf]
        %v1369 = vld [vmem:[%s3 + $0x28] sm:$0xf]
        %v1370 = vld [vmem:[%s3 + $0x2c] sm:$0xf]
        %v1371 = vld [vmem:[%s3 + $0x30] sm:$0xf]
        %v1372 = vld [vmem:[%s3 + $0x34] sm:$0xf]
        %v1373 = vld [vmem:[%s3 + $0x38] sm:$0xf]
        %v1374 = vld [vmem:[%s3 + $0x3c] sm:$0xf]
        %v1375 = vld [vmem:[%s6] sm:$0x1]
        %v1377 = vperm.slane %v1375, 0
        %v1395 = vunpack.c.l.b16 %v1359
        %v1396 = vunpack.c.l.b16 %v1360
        %v1397 = vunpack.c.l.b16 %v1361
        %v1398 = vunpack.c.l.b16 %v1362
        %v1399 = vunpack.c.l.b16 %v1363
        %v1400 = vunpack.c.l.b16 %v1364
        %v1401 = vunpack.c.l.b16 %v1365
        %v1402 = vunpack.c.l.b16 %v1366
        %v1403 = vunpack.c.l.b16 %v1367
        %v1404 = vunpack.c.l.b16 %v1368
        %v1405 = vunpack.c.l.b16 %v1369
        %v1406 = vunpack.c.l.b16 %v1370
        %v1407 = vunpack.c.l.b16 %v1371
        %v1408 = vunpack.c.l.b16 %v1372
        %v1409 = vunpack.c.l.b16 %v1373
        %v1410 = vunpack.c.l.b16 %v1374
        %v1411 = vpack.c.b16 %v1396, %v1395
        %v1412 = vpack.c.b16 %v1398, %v1397
        %v1413 = vpack.c.b16 %v1400, %v1399
        %v1414 = vpack.c.b16 %v1402, %v1401
        %v1415 = vpack.c.b16 %v1404, %v1403
        %v1416 = vpack.c.b16 %v1406, %v1405
        %v1417 = vpack.c.b16 %v1408, %v1407
        %v1418 = vpack.c.b16 %v1410, %v1409
        %1427 = vmatpush.bf16.msra.mxu0 %v1418
        %1428 = vmatpush.bf16.msra.mxu0 %v1417
        %1429 = vmatpush.bf16.msra.mxu0 %v1416
        %1430 = vmatpush.bf16.msra.mxu0 %v1415
        %1431 = vmatpush.bf16.msra.mxu0 %v1414
        %1432 = vmatpush.bf16.msra.mxu0 %v1413
        %1433 = vmatpush.bf16.msra.mxu0 %v1412
        %1434 = vmatpush.bf16.msra.mxu0 %v1411
        %1435 = vmatmul.bf16.gmra.mxu0 %v1351
        %v1436 = vpop.f32.mrf.mxu0
        %v1437 = vadd.f32 %v1377, %v1436
        %v1438 = vpop.f32.mrf.mxu0
        %1439 = vdwg.mxu0
        %v1440 = vpack.c.bf16 %v1437, %v1437
        %v1441 = vld [vmem:[#allocation3] sm:$0xf]
        %v1442 = vld [vmem:[#allocation3 + $0x4] sm:$0xf]
        %v1445 = vunpack.c.l.b16 %v1441
        %v1446 = vunpack.c.l.b16 %v1442
        %v1447 = vpack.c.b16 %v1446, %v1445
        %vm1448 = vcmask 261120
        %v1450 = vsel %vm1448, %v1440, 0
        %v1453 = vsel %vm1448, %v1447, 0
        %1455 = vmatpush.bf16.xpose.msra.mxu0 0
        %1456 = vmatpush.bf16.xpose.msra.mxu0 0
        %1457 = vmatpush.bf16.xpose.msra.mxu0 0
        %1458 = vmatpush.bf16.xpose.msra.mxu0 0
        %1459 = vmatpush.bf16.xpose.msra.mxu0 0
        %1460 = vmatpush.bf16.xpose.msra.mxu0 0
        %1461 = vmatpush.bf16.xpose.msra.mxu0 0
        %1462 = vmatpush.bf16.xpose.msra.mxu0 %v1453
        %1463 = vmatmul.bf16.gmra.mxu0 %v1450
        %v1464 = vpop.f32.mrf.mxu0
        %v1465 = vadd.f32 0.0, %v1464
        %v1466 = vpop.f32.mrf.mxu0
        %1467 = vdwg.mxu0
        %v1468 = vmul.f32 %v1465, 0.17677669
        %v1469 = vsel %vm1358, %v1468, -1e+30
        %vm1470 = vcmask 130048
        %v1471 = vsel %vm1470, %v1469, -inf
        %1472 = vmax.xlane.f32.xlu0 %v1471
        %v1473 = vpop.xlane.xlu0 %1472
        %v1474 = vsub.f32 %v1469, %v1473
        %v1475 = vmul.f32 %v1474, 1.442695
        %v1476 = vpow.pop %v1475
        %v1477 = vsel %vm1470, %v1476, 0.0
        %1478 = vadd.xlane.f32.xlu0 %v1477
        %v1479 = vpop.xlane.xlu0 %1478
        %v1480 = vpack.c.bf16 %v1476, %v1476
        %v1481 = vld [vmem:[#allocation4] sm:$0xf]
        %v1482 = vld [vmem:[#allocation4 + $0x4] sm:$0xf]
        %v1485 = vunpack.c.l.b16 %v1481
        %v1486 = vunpack.c.l.b16 %v1482
        %v1487 = vpack.c.b16 %v1486, %v1485
        %v1490 = vsel %vm1470, %v1480, 0
        %1492 = vmatpush.bf16.msra.mxu0 0
        %1493 = vmatpush.bf16.msra.mxu0 0
        %1494 = vmatpush.bf16.msra.mxu0 0
        %1495 = vmatpush.bf16.msra.mxu0 0
        %1496 = vmatpush.bf16.msra.mxu0 0
        %1497 = vmatpush.bf16.msra.mxu0 0
        %1498 = vmatpush.bf16.msra.mxu0 0
        %1499 = vmatpush.bf16.msra.mxu0 %v1487
        %1500 = vmatmul.bf16.gmra.mxu0 %v1490
        %v1501 = vpop.f32.mrf.mxu0
        %v1502 = vadd.f32 0.0, %v1501
        %v1503 = vpop.f32.mrf.mxu0
        %1504 = vdwg.mxu0
        %v1505 = vrcp.pop %v1479
        %v1506 = vmul.f32 %v1502, %v1505
        %v1507 = vpack.c.bf16 %v1506, %v1506
        %v1508 = vld [vmem:[%s9] sm:$0xf]
        %v1509 = vld [vmem:[%s9 + $0x4] sm:$0xf]
        %v1510 = vld [vmem:[%s9 + $0x8] sm:$0xf]
        %v1511 = vld [vmem:[%s9 + $0xc] sm:$0xf]
        %s1512 = scalar_lea.vmem %s3, 64
        %v1513 = vld [vmem:[%s1512] sm:$0xf]
        %v1514 = vld [vmem:[%s1512 + $0x4] sm:$0xf]
        %v1515 = vld [vmem:[%s1512 + $0x8] sm:$0xf]
        %v1516 = vld [vmem:[%s1512 + $0xc] sm:$0xf]
        %v1517 = vld [vmem:[%s1512 + $0x10] sm:$0xf]
        %v1518 = vld [vmem:[%s1512 + $0x14] sm:$0xf]
        %v1519 = vld [vmem:[%s1512 + $0x18] sm:$0xf]
        %v1520 = vld [vmem:[%s1512 + $0x1c] sm:$0xf]
        %v1521 = vld [vmem:[%s1512 + $0x20] sm:$0xf]
        %v1522 = vld [vmem:[%s1512 + $0x24] sm:$0xf]
        %v1523 = vld [vmem:[%s1512 + $0x28] sm:$0xf]
        %v1524 = vld [vmem:[%s1512 + $0x2c] sm:$0xf]
        %v1525 = vld [vmem:[%s1512 + $0x30] sm:$0xf]
        %v1526 = vld [vmem:[%s1512 + $0x34] sm:$0xf]
        %v1527 = vld [vmem:[%s1512 + $0x38] sm:$0xf]
        %v1528 = vld [vmem:[%s1512 + $0x3c] sm:$0xf]
        %s1529 = scalar_lea.vmem %s6, 1
        %v1530 = vld [vmem:[%s1529] sm:$0x1]
        %v1532 = vperm.slane %v1530, 0
        %v1550 = vunpack.c.l.b16 %v1513
        %v1551 = vunpack.c.l.b16 %v1514
        %v1552 = vunpack.c.l.b16 %v1515
        %v1553 = vunpack.c.l.b16 %v1516
        %v1554 = vunpack.c.l.b16 %v1517
        %v1555 = vunpack.c.l.b16 %v1518
        %v1556 = vunpack.c.l.b16 %v1519
        %v1557 = vunpack.c.l.b16 %v1520
        %v1558 = vunpack.c.l.b16 %v1521
        %v1559 = vunpack.c.l.b16 %v1522
        %v1560 = vunpack.c.l.b16 %v1523
        %v1561 = vunpack.c.l.b16 %v1524
        %v1562 = vunpack.c.l.b16 %v1525
        %v1563 = vunpack.c.l.b16 %v1526
        %v1564 = vunpack.c.l.b16 %v1527
        %v1565 = vunpack.c.l.b16 %v1528
        %v1566 = vpack.c.b16 %v1551, %v1550
        %v1567 = vpack.c.b16 %v1553, %v1552
        %v1568 = vpack.c.b16 %v1555, %v1554
        %v1569 = vpack.c.b16 %v1557, %v1556
        %v1570 = vpack.c.b16 %v1559, %v1558
        %v1571 = vpack.c.b16 %v1561, %v1560
        %v1572 = vpack.c.b16 %v1563, %v1562
        %v1573 = vpack.c.b16 %v1565, %v1564
        %1582 = vmatpush.bf16.msra.mxu0 %v1573
        %1583 = vmatpush.bf16.msra.mxu0 %v1572
        %1584 = vmatpush.bf16.msra.mxu0 %v1571
        %1585 = vmatpush.bf16.msra.mxu0 %v1570
        %1586 = vmatpush.bf16.msra.mxu0 %v1569
        %1587 = vmatpush.bf16.msra.mxu0 %v1568
        %1588 = vmatpush.bf16.msra.mxu0 %v1567
        %1589 = vmatpush.bf16.msra.mxu0 %v1566
        %1590 = vmatmul.bf16.gmra.mxu0 %v1351
        %v1591 = vpop.f32.mrf.mxu0
        %v1592 = vadd.f32 %v1532, %v1591
        %v1593 = vpop.f32.mrf.mxu0
        %1594 = vdwg.mxu0
        %v1595 = vpack.c.bf16 %v1592, %v1592
        %s1596 = scalar_lea.vmem [#allocation3], 8
        %v1597 = vld [vmem:[%s1596] sm:$0xf]
        %v1598 = vld [vmem:[%s1596 + $0x4] sm:$0xf]
        %v1601 = vunpack.c.l.b16 %v1597
        %v1602 = vunpack.c.l.b16 %v1598
        %v1603 = vpack.c.b16 %v1602, %v1601
        %v1605 = vsel %vm1448, %v1595, 0
        %v1608 = vsel %vm1448, %v1603, 0
        %1610 = vmatpush.bf16.xpose.msra.mxu0 0
        %1611 = vmatpush.bf16.xpose.msra.mxu0 0
        %1612 = vmatpush.bf16.xpose.msra.mxu0 0
        %1613 = vmatpush.bf16.xpose.msra.mxu0 0
        %1614 = vmatpush.bf16.xpose.msra.mxu0 0
        %1615 = vmatpush.bf16.xpose.msra.mxu0 0
        %1616 = vmatpush.bf16.xpose.msra.mxu0 0
        %1617 = vmatpush.bf16.xpose.msra.mxu0 %v1608
        %1618 = vmatmul.bf16.gmra.mxu0 %v1605
        %v1619 = vpop.f32.mrf.mxu0
        %v1620 = vadd.f32 0.0, %v1619
        %v1621 = vpop.f32.mrf.mxu0
        %1622 = vdwg.mxu0
        %v1623 = vmul.f32 %v1620, 0.17677669
        %v1624 = vsel %vm1358, %v1623, -1e+30
        %v1625 = vsel %vm1470, %v1624, -inf
        %1626 = vmax.xlane.f32.xlu0 %v1625
        %v1627 = vpop.xlane.xlu0 %1626
        %v1628 = vsub.f32 %v1624, %v1627
        %v1629 = vmul.f32 %v1628, 1.442695
        %v1630 = vpow.pop %v1629
        %v1631 = vsel %vm1470, %v1630, 0.0
        %1632 = vadd.xlane.f32.xlu0 %v1631
        %v1633 = vpop.xlane.xlu0 %1632
        %v1634 = vpack.c.bf16 %v1630, %v1630
        %s1635 = scalar_lea.vmem [#allocation4], 8
        %v1636 = vld [vmem:[%s1635] sm:$0xf]
        %v1637 = vld [vmem:[%s1635 + $0x4] sm:$0xf]
        %v1640 = vunpack.c.l.b16 %v1636
        %v1641 = vunpack.c.l.b16 %v1637
        %v1642 = vpack.c.b16 %v1641, %v1640
        %v1645 = vsel %vm1470, %v1634, 0
        %1647 = vmatpush.bf16.msra.mxu0 0
        %1648 = vmatpush.bf16.msra.mxu0 0
        %1649 = vmatpush.bf16.msra.mxu0 0
        %1650 = vmatpush.bf16.msra.mxu0 0
        %1651 = vmatpush.bf16.msra.mxu0 0
        %1652 = vmatpush.bf16.msra.mxu0 0
        %1653 = vmatpush.bf16.msra.mxu0 0
        %1654 = vmatpush.bf16.msra.mxu0 %v1642
        %1655 = vmatmul.bf16.gmra.mxu0 %v1645
        %v1656 = vpop.f32.mrf.mxu0
        %v1657 = vadd.f32 0.0, %v1656
        %v1658 = vpop.f32.mrf.mxu0
        %1659 = vdwg.mxu0
        %v1660 = vrcp.pop %v1633
        %v1661 = vmul.f32 %v1657, %v1660
        %v1662 = vpack.c.bf16 %v1661, %v1661
        %s1663 = scalar_lea.vmem %s9, 16
        %v1664 = vld [vmem:[%s1663] sm:$0xf]
        %v1665 = vld [vmem:[%s1663 + $0x4] sm:$0xf]
        %v1666 = vld [vmem:[%s1663 + $0x8] sm:$0xf]
        %v1667 = vld [vmem:[%s1663 + $0xc] sm:$0xf]
        %v1672 = vunpack.c.l.b16 %v1664
        %v1673 = vunpack.c.l.b16 %v1665
        %v1674 = vunpack.c.l.b16 %v1666
        %v1675 = vunpack.c.l.b16 %v1667
        %v1676 = vpack.c.b16 %v1673, %v1672
        %v1677 = vpack.c.b16 %v1675, %v1674
        %v1681 = vsel %vm1448, %v1662, 0
        %1683 = vmatpush.bf16.msra.mxu0 0
        %1684 = vmatpush.bf16.msra.mxu0 0
        %1685 = vmatpush.bf16.msra.mxu0 0
        %1686 = vmatpush.bf16.msra.mxu0 0
        %1687 = vmatpush.bf16.msra.mxu0 0
        %1688 = vmatpush.bf16.msra.mxu0 0
        %1689 = vmatpush.bf16.msra.mxu0 %v1677
        %1690 = vmatpush.bf16.msra.mxu0 %v1676
        %1691 = vmatmul.bf16.gmra.mxu0 %v1681
        %v1692 = vpop.f32.mrf.mxu0
        %v1693 = vadd.f32 0.0, %v1692
        %v1694 = vpop.f32.mrf.mxu0
        %1695 = vdwg.mxu0
        %v1700 = vunpack.c.l.b16 %v1508
        %v1701 = vunpack.c.l.b16 %v1509
        %v1702 = vunpack.c.l.b16 %v1510
        %v1703 = vunpack.c.l.b16 %v1511
        %v1704 = vpack.c.b16 %v1701, %v1700
        %v1705 = vpack.c.b16 %v1703, %v1702
        %v1709 = vsel %vm1448, %v1507, 0
        %1711 = vmatpush.bf16.msra.mxu0 0
        %1712 = vmatpush.bf16.msra.mxu0 0
        %1713 = vmatpush.bf16.msra.mxu0 0
        %1714 = vmatpush.bf16.msra.mxu0 0
        %1715 = vmatpush.bf16.msra.mxu0 0
        %1716 = vmatpush.bf16.msra.mxu0 0
        %1717 = vmatpush.bf16.msra.mxu0 %v1705
        %1718 = vmatpush.bf16.msra.mxu0 %v1704
        %1719 = vmatmul.bf16.gmra.mxu0 %v1709
        %v1720 = vpop.f32.mrf.mxu0
        %v1721 = vadd.f32 %v1693, %v1720
        %v1722 = vpop.f32.mrf.mxu0
        %1723 = vdwg.mxu0
        %s1724 = scalar_lea.vmem %s3, 128
        %v1725 = vld [vmem:[%s1724] sm:$0xf]
        %v1726 = vld [vmem:[%s1724 + $0x4] sm:$0xf]
        %v1727 = vld [vmem:[%s1724 + $0x8] sm:$0xf]
        %v1728 = vld [vmem:[%s1724 + $0xc] sm:$0xf]
        %v1729 = vld [vmem:[%s1724 + $0x10] sm:$0xf]
        %v1730 = vld [vmem:[%s1724 + $0x14] sm:$0xf]
        %v1731 = vld [vmem:[%s1724 + $0x18] sm:$0xf]
        %v1732 = vld [vmem:[%s1724 + $0x1c] sm:$0xf]
        %v1733 = vld [vmem:[%s1724 + $0x20] sm:$0xf]
        %v1734 = vld [vmem:[%s1724 + $0x24] sm:$0xf]
        %v1735 = vld [vmem:[%s1724 + $0x28] sm:$0xf]
        %v1736 = vld [vmem:[%s1724 + $0x2c] sm:$0xf]
        %v1737 = vld [vmem:[%s1724 + $0x30] sm:$0xf]
        %v1738 = vld [vmem:[%s1724 + $0x34] sm:$0xf]
        %v1739 = vld [vmem:[%s1724 + $0x38] sm:$0xf]
        %v1740 = vld [vmem:[%s1724 + $0x3c] sm:$0xf]
        %s1741 = scalar_lea.vmem %s6, 2
        %v1742 = vld [vmem:[%s1741] sm:$0x1]
        %v1744 = vperm.slane %v1742, 0
        %v1762 = vunpack.c.l.b16 %v1725
        %v1763 = vunpack.c.l.b16 %v1726
        %v1764 = vunpack.c.l.b16 %v1727
        %v1765 = vunpack.c.l.b16 %v1728
        %v1766 = vunpack.c.l.b16 %v1729
        %v1767 = vunpack.c.l.b16 %v1730
        %v1768 = vunpack.c.l.b16 %v1731
        %v1769 = vunpack.c.l.b16 %v1732
        %v1770 = vunpack.c.l.b16 %v1733
        %v1771 = vunpack.c.l.b16 %v1734
        %v1772 = vunpack.c.l.b16 %v1735
        %v1773 = vunpack.c.l.b16 %v1736
        %v1774 = vunpack.c.l.b16 %v1737
        %v1775 = vunpack.c.l.b16 %v1738
        %v1776 = vunpack.c.l.b16 %v1739
        %v1777 = vunpack.c.l.b16 %v1740
        %v1778 = vpack.c.b16 %v1763, %v1762
        %v1779 = vpack.c.b16 %v1765, %v1764
        %v1780 = vpack.c.b16 %v1767, %v1766
        %v1781 = vpack.c.b16 %v1769, %v1768
        %v1782 = vpack.c.b16 %v1771, %v1770
        %v1783 = vpack.c.b16 %v1773, %v1772
        %v1784 = vpack.c.b16 %v1775, %v1774
        %v1785 = vpack.c.b16 %v1777, %v1776
        %1794 = vmatpush.bf16.msra.mxu0 %v1785
        %1795 = vmatpush.bf16.msra.mxu0 %v1784
        %1796 = vmatpush.bf16.msra.mxu0 %v1783
        %1797 = vmatpush.bf16.msra.mxu0 %v1782
        %1798 = vmatpush.bf16.msra.mxu0 %v1781
        %1799 = vmatpush.bf16.msra.mxu0 %v1780
        %1800 = vmatpush.bf16.msra.mxu0 %v1779
        %1801 = vmatpush.bf16.msra.mxu0 %v1778
        %1802 = vmatmul.bf16.gmra.mxu0 %v1351
        %v1803 = vpop.f32.mrf.mxu0
        %v1804 = vadd.f32 %v1744, %v1803
        %v1805 = vpop.f32.mrf.mxu0
        %1806 = vdwg.mxu0
        %v1807 = vpack.c.bf16 %v1804, %v1804
        %s1808 = scalar_lea.vmem [#allocation3], 16
        %v1809 = vld [vmem:[%s1808] sm:$0xf]
        %v1810 = vld [vmem:[%s1808 + $0x4] sm:$0xf]
        %v1813 = vunpack.c.l.b16 %v1809
        %v1814 = vunpack.c.l.b16 %v1810
        %v1815 = vpack.c.b16 %v1814, %v1813
        %v1817 = vsel %vm1448, %v1807, 0
        %v1820 = vsel %vm1448, %v1815, 0
        %1822 = vmatpush.bf16.xpose.msra.mxu0 0
        %1823 = vmatpush.bf16.xpose.msra.mxu0 0
        %1824 = vmatpush.bf16.xpose.msra.mxu0 0
        %1825 = vmatpush.bf16.xpose.msra.mxu0 0
        %1826 = vmatpush.bf16.xpose.msra.mxu0 0
        %1827 = vmatpush.bf16.xpose.msra.mxu0 0
        %1828 = vmatpush.bf16.xpose.msra.mxu0 0
        %1829 = vmatpush.bf16.xpose.msra.mxu0 %v1820
        %1830 = vmatmul.bf16.gmra.mxu0 %v1817
        %v1831 = vpop.f32.mrf.mxu0
        %v1832 = vadd.f32 0.0, %v1831
        %v1833 = vpop.f32.mrf.mxu0
        %1834 = vdwg.mxu0
        %v1835 = vmul.f32 %v1832, 0.17677669
        %v1836 = vsel %vm1358, %v1835, -1e+30
        %v1837 = vsel %vm1470, %v1836, -inf
        %1838 = vmax.xlane.f32.xlu0 %v1837
        %v1839 = vpop.xlane.xlu0 %1838
        %v1840 = vsub.f32 %v1836, %v1839
        %v1841 = vmul.f32 %v1840, 1.442695
        %v1842 = vpow.pop %v1841
        %v1843 = vsel %vm1470, %v1842, 0.0
        %1844 = vadd.xlane.f32.xlu0 %v1843
        %v1845 = vpop.xlane.xlu0 %1844
        %v1846 = vpack.c.bf16 %v1842, %v1842
        %s1847 = scalar_lea.vmem [#allocation4], 16
        %v1848 = vld [vmem:[%s1847] sm:$0xf]
        %v1849 = vld [vmem:[%s1847 + $0x4] sm:$0xf]
        %v1852 = vunpack.c.l.b16 %v1848
        %v1853 = vunpack.c.l.b16 %v1849
        %v1854 = vpack.c.b16 %v1853, %v1852
        %v1857 = vsel %vm1470, %v1846, 0
        %1859 = vmatpush.bf16.msra.mxu0 0
        %1860 = vmatpush.bf16.msra.mxu0 0
        %1861 = vmatpush.bf16.msra.mxu0 0
        %1862 = vmatpush.bf16.msra.mxu0 0
        %1863 = vmatpush.bf16.msra.mxu0 0
        %1864 = vmatpush.bf16.msra.mxu0 0
        %1865 = vmatpush.bf16.msra.mxu0 0
        %1866 = vmatpush.bf16.msra.mxu0 %v1854
        %1867 = vmatmul.bf16.gmra.mxu0 %v1857
        %v1868 = vpop.f32.mrf.mxu0
        %v1869 = vadd.f32 0.0, %v1868
        %v1870 = vpop.f32.mrf.mxu0
        %1871 = vdwg.mxu0
        %v1872 = vrcp.pop %v1845
        %v1873 = vmul.f32 %v1869, %v1872
        %v1874 = vpack.c.bf16 %v1873, %v1873
        %s1875 = scalar_lea.vmem %s9, 32
        %v1876 = vld [vmem:[%s1875] sm:$0xf]
        %v1877 = vld [vmem:[%s1875 + $0x4] sm:$0xf]
        %v1878 = vld [vmem:[%s1875 + $0x8] sm:$0xf]
        %v1879 = vld [vmem:[%s1875 + $0xc] sm:$0xf]
        %v1884 = vunpack.c.l.b16 %v1876
        %v1885 = vunpack.c.l.b16 %v1877
        %v1886 = vunpack.c.l.b16 %v1878
        %v1887 = vunpack.c.l.b16 %v1879
        %v1888 = vpack.c.b16 %v1885, %v1884
        %v1889 = vpack.c.b16 %v1887, %v1886
        %v1893 = vsel %vm1448, %v1874, 0
        %1895 = vmatpush.bf16.msra.mxu0 0
        %1896 = vmatpush.bf16.msra.mxu0 0
        %1897 = vmatpush.bf16.msra.mxu0 0
        %1898 = vmatpush.bf16.msra.mxu0 0
        %1899 = vmatpush.bf16.msra.mxu0 0
        %1900 = vmatpush.bf16.msra.mxu0 0
        %1901 = vmatpush.bf16.msra.mxu0 %v1889
        %1902 = vmatpush.bf16.msra.mxu0 %v1888
        %1903 = vmatmul.bf16.gmra.mxu0 %v1893
        %v1904 = vpop.f32.mrf.mxu0
        %v1905 = vadd.f32 0.0, %v1904
        %v1906 = vpop.f32.mrf.mxu0
        %1907 = vdwg.mxu0
        %v1908 = vadd.f32 %v1721, %v1905
        %s1909 = scalar_lea.vmem %s3, 192
        %v1910 = vld [vmem:[%s1909] sm:$0xf]
        %v1911 = vld [vmem:[%s1909 + $0x4] sm:$0xf]
        %v1912 = vld [vmem:[%s1909 + $0x8] sm:$0xf]
        %v1913 = vld [vmem:[%s1909 + $0xc] sm:$0xf]
        %v1914 = vld [vmem:[%s1909 + $0x10] sm:$0xf]
        %v1915 = vld [vmem:[%s1909 + $0x14] sm:$0xf]
        %v1916 = vld [vmem:[%s1909 + $0x18] sm:$0xf]
        %v1917 = vld [vmem:[%s1909 + $0x1c] sm:$0xf]
        %v1918 = vld [vmem:[%s1909 + $0x20] sm:$0xf]
        %v1919 = vld [vmem:[%s1909 + $0x24] sm:$0xf]
        %v1920 = vld [vmem:[%s1909 + $0x28] sm:$0xf]
        %v1921 = vld [vmem:[%s1909 + $0x2c] sm:$0xf]
        %v1922 = vld [vmem:[%s1909 + $0x30] sm:$0xf]
        %v1923 = vld [vmem:[%s1909 + $0x34] sm:$0xf]
        %v1924 = vld [vmem:[%s1909 + $0x38] sm:$0xf]
        %v1925 = vld [vmem:[%s1909 + $0x3c] sm:$0xf]
        %s1926 = scalar_lea.vmem %s6, 3
        %v1927 = vld [vmem:[%s1926] sm:$0x1]
        %v1929 = vperm.slane %v1927, 0
        %v1947 = vunpack.c.l.b16 %v1910
        %v1948 = vunpack.c.l.b16 %v1911
        %v1949 = vunpack.c.l.b16 %v1912
        %v1950 = vunpack.c.l.b16 %v1913
        %v1951 = vunpack.c.l.b16 %v1914
        %v1952 = vunpack.c.l.b16 %v1915
        %v1953 = vunpack.c.l.b16 %v1916
        %v1954 = vunpack.c.l.b16 %v1917
        %v1955 = vunpack.c.l.b16 %v1918
        %v1956 = vunpack.c.l.b16 %v1919
        %v1957 = vunpack.c.l.b16 %v1920
        %v1958 = vunpack.c.l.b16 %v1921
        %v1959 = vunpack.c.l.b16 %v1922
        %v1960 = vunpack.c.l.b16 %v1923
        %v1961 = vunpack.c.l.b16 %v1924
        %v1962 = vunpack.c.l.b16 %v1925
        %v1963 = vpack.c.b16 %v1948, %v1947
        %v1964 = vpack.c.b16 %v1950, %v1949
        %v1965 = vpack.c.b16 %v1952, %v1951
        %v1966 = vpack.c.b16 %v1954, %v1953
        %v1967 = vpack.c.b16 %v1956, %v1955
        %v1968 = vpack.c.b16 %v1958, %v1957
        %v1969 = vpack.c.b16 %v1960, %v1959
        %v1970 = vpack.c.b16 %v1962, %v1961
        %1979 = vmatpush.bf16.msra.mxu0 %v1970
        %1980 = vmatpush.bf16.msra.mxu0 %v1969
        %1981 = vmatpush.bf16.msra.mxu0 %v1968
        %1982 = vmatpush.bf16.msra.mxu0 %v1967
        %1983 = vmatpush.bf16.msra.mxu0 %v1966
        %1984 = vmatpush.bf16.msra.mxu0 %v1965
        %1985 = vmatpush.bf16.msra.mxu0 %v1964
        %1986 = vmatpush.bf16.msra.mxu0 %v1963
        %1987 = vmatmul.bf16.gmra.mxu0 %v1351
        %v1988 = vpop.f32.mrf.mxu0
        %v1989 = vadd.f32 %v1929, %v1988
        %v1990 = vpop.f32.mrf.mxu0
        %1991 = vdwg.mxu0
        %v1992 = vpack.c.bf16 %v1989, %v1989
        %s1993 = scalar_lea.vmem [#allocation3], 24
        %v1994 = vld [vmem:[%s1993] sm:$0xf]
        %v1995 = vld [vmem:[%s1993 + $0x4] sm:$0xf]
        %v1998 = vunpack.c.l.b16 %v1994
        %v1999 = vunpack.c.l.b16 %v1995
        %v2000 = vpack.c.b16 %v1999, %v1998
        %v2002 = vsel %vm1448, %v1992, 0
        %v2005 = vsel %vm1448, %v2000, 0
        %2007 = vmatpush.bf16.xpose.msra.mxu0 0
        %2008 = vmatpush.bf16.xpose.msra.mxu0 0
        %2009 = vmatpush.bf16.xpose.msra.mxu0 0
        %2010 = vmatpush.bf16.xpose.msra.mxu0 0
        %2011 = vmatpush.bf16.xpose.msra.mxu0 0
        %2012 = vmatpush.bf16.xpose.msra.mxu0 0
        %2013 = vmatpush.bf16.xpose.msra.mxu0 0
        %2014 = vmatpush.bf16.xpose.msra.mxu0 %v2005
        %2015 = vmatmul.bf16.gmra.mxu0 %v2002
        %v2016 = vpop.f32.mrf.mxu0
        %v2017 = vadd.f32 0.0, %v2016
        %v2018 = vpop.f32.mrf.mxu0
        %2019 = vdwg.mxu0
        %v2020 = vmul.f32 %v2017, 0.17677669
        %v2021 = vsel %vm1358, %v2020, -1e+30
        %v2022 = vsel %vm1470, %v2021, -inf
        %2023 = vmax.xlane.f32.xlu0 %v2022
        %v2024 = vpop.xlane.xlu0 %2023
        %v2025 = vsub.f32 %v2021, %v2024
        %v2026 = vmul.f32 %v2025, 1.442695
        %v2027 = vpow.pop %v2026
        %v2028 = vsel %vm1470, %v2027, 0.0
        %2029 = vadd.xlane.f32.xlu0 %v2028
        %v2030 = vpop.xlane.xlu0 %2029
        %v2031 = vpack.c.bf16 %v2027, %v2027
        %s2032 = scalar_lea.vmem [#allocation4], 24
        %v2033 = vld [vmem:[%s2032] sm:$0xf]
        %v2034 = vld [vmem:[%s2032 + $0x4] sm:$0xf]
        %v2037 = vunpack.c.l.b16 %v2033
        %v2038 = vunpack.c.l.b16 %v2034
        %v2039 = vpack.c.b16 %v2038, %v2037
        %v2042 = vsel %vm1470, %v2031, 0
        %2044 = vmatpush.bf16.msra.mxu0 0
        %2045 = vmatpush.bf16.msra.mxu0 0
        %2046 = vmatpush.bf16.msra.mxu0 0
        %2047 = vmatpush.bf16.msra.mxu0 0
        %2048 = vmatpush.bf16.msra.mxu0 0
        %2049 = vmatpush.bf16.msra.mxu0 0
        %2050 = vmatpush.bf16.msra.mxu0 0
        %2051 = vmatpush.bf16.msra.mxu0 %v2039
        %2052 = vmatmul.bf16.gmra.mxu0 %v2042
        %v2053 = vpop.f32.mrf.mxu0
        %v2054 = vadd.f32 0.0, %v2053
        %v2055 = vpop.f32.mrf.mxu0
        %2056 = vdwg.mxu0
        %v2057 = vrcp.pop %v2030
        %v2058 = vmul.f32 %v2054, %v2057
        %v2059 = vpack.c.bf16 %v2058, %v2058
        %s2060 = scalar_lea.vmem %s9, 48
        %v2061 = vld [vmem:[%s2060] sm:$0xf]
        %v2062 = vld [vmem:[%s2060 + $0x4] sm:$0xf]
        %v2063 = vld [vmem:[%s2060 + $0x8] sm:$0xf]
        %v2064 = vld [vmem:[%s2060 + $0xc] sm:$0xf]
        %v2069 = vunpack.c.l.b16 %v2061
        %v2070 = vunpack.c.l.b16 %v2062
        %v2071 = vunpack.c.l.b16 %v2063
        %v2072 = vunpack.c.l.b16 %v2064
        %v2073 = vpack.c.b16 %v2070, %v2069
        %v2074 = vpack.c.b16 %v2072, %v2071
        %v2078 = vsel %vm1448, %v2059, 0
        %2080 = vmatpush.bf16.msra.mxu0 0
        %2081 = vmatpush.bf16.msra.mxu0 0
        %2082 = vmatpush.bf16.msra.mxu0 0
        %2083 = vmatpush.bf16.msra.mxu0 0
        %2084 = vmatpush.bf16.msra.mxu0 0
        %2085 = vmatpush.bf16.msra.mxu0 0
        %2086 = vmatpush.bf16.msra.mxu0 %v2074
        %2087 = vmatpush.bf16.msra.mxu0 %v2073
        %2088 = vmatmul.bf16.gmra.mxu0 %v2078
        %v2089 = vpop.f32.mrf.mxu0
        %v2090 = vadd.f32 0.0, %v2089
        %v2091 = vpop.f32.mrf.mxu0
        %2092 = vdwg.mxu0
        %v2093 = vadd.f32 %v1908, %v2090
        %v2094 = vld [vmem:[%s10] sm:$0x1]
        %v2096 = vperm.slane %v2094, 0
        %v2098 = vadd.f32 %v2093, %v2096
        %v2099 = vadd.f32 %v1346, %v2098
        %v2100 = vld [vmem:[%s11] sm:$0x1]
        %v2101 = vld [vmem:[%s12] sm:$0x1]
        %2102 = vadd.xlane.f32.xlu0 %v2099
        %v2103 = vpop.xlane.xlu0 %2102
        %v2104 = vrcp.pop 128.0
        %v2105 = vmul.f32 128.0, %v2104
        %v2106 = vsub.f32 1.0, %v2105
        %v2107 = vmul.f32 %v2104, %v2106
        %v2108 = vadd.f32 %v2104, %v2107
        %vm2109 = vweird.f32 %v2104
        %v2110 = vsel %vm2109, %v2104, %v2108
        %v2111 = vmul.f32 %v2103, %v2110
        %v2112 = vsub.f32 %v2099, %v2111
        %v2113 = vmul.f32 %v2112, %v2112
        %2114 = vadd.xlane.f32.xlu0 %v2113
        %v2115 = vpop.xlane.xlu0 %2114
        %v2116 = vmul.f32 %v2115, %v2110
        %v2117 = vadd.f32 %v2116, 1e-05
        %v2118 = vrsqrt.pop %v2117
        %v2119 = vmul.f32 %v2118, %v2117
        %v2120 = vmul.f32 %v2119, %v2118
        %v2121 = vmul.f32 0.5, %v2120
        %v2122 = vsub.f32 1.5, %v2121
        %v2123 = vmul.f32 %v2118, %v2122
        %vm2124 = vweird.f32 %v2117
        %vm2125 = vweird.f32 %v2118
        %vm2126 = vmor %vm2124, %vm2125
        %v2127 = vsel %vm2126, %v2118, %v2123
        %v2128 = vmul.f32 %v2112, %v2127
        %v2130 = vperm.slane %v2100, 0
        %v2132 = vmul.f32 %v2128, %v2130
        %v2134 = vperm.slane %v2101, 0
        %v2136 = vadd.f32 %v2132, %v2134
        %v2137 = vpack.c.bf16 %v2136, %v2136
        %v2138 = vld [vmem:[%s13] sm:$0xff]
        %v2139 = vld [vmem:[%s13 + $0x8] sm:$0xff]
        %v2140 = vld [vmem:[%s13 + $0x10] sm:$0xff]
        %v2141 = vld [vmem:[%s13 + $0x18] sm:$0xff]
        %v2142 = vld [vmem:[%s13 + $0x20] sm:$0xff]
        %v2143 = vld [vmem:[%s13 + $0x28] sm:$0xff]
        %v2144 = vld [vmem:[%s13 + $0x30] sm:$0xff]
        %v2145 = vld [vmem:[%s13 + $0x38] sm:$0xff]
        %v2146 = vld [vmem:[%s13 + $0x40] sm:$0xff]
        %v2147 = vld [vmem:[%s13 + $0x48] sm:$0xff]
        %v2148 = vld [vmem:[%s13 + $0x50] sm:$0xff]
        %v2149 = vld [vmem:[%s13 + $0x58] sm:$0xff]
        %v2150 = vld [vmem:[%s13 + $0x60] sm:$0xff]
        %v2151 = vld [vmem:[%s13 + $0x68] sm:$0xff]
        %v2152 = vld [vmem:[%s13 + $0x70] sm:$0xff]
        %v2153 = vld [vmem:[%s13 + $0x78] sm:$0xff]
        %v2154 = vld [vmem:[%s13 + $0x80] sm:$0xff]
        %v2155 = vld [vmem:[%s13 + $0x88] sm:$0xff]
        %v2156 = vld [vmem:[%s13 + $0x90] sm:$0xff]
        %v2157 = vld [vmem:[%s13 + $0x98] sm:$0xff]
        %v2158 = vld [vmem:[%s13 + $0xa0] sm:$0xff]
        %v2159 = vld [vmem:[%s13 + $0xa8] sm:$0xff]
        %v2160 = vld [vmem:[%s13 + $0xb0] sm:$0xff]
        %v2161 = vld [vmem:[%s13 + $0xb8] sm:$0xff]
        %v2162 = vld [vmem:[%s13 + $0xc0] sm:$0xff]
        %v2163 = vld [vmem:[%s13 + $0xc8] sm:$0xff]
        %v2164 = vld [vmem:[%s13 + $0xd0] sm:$0xff]
        %v2165 = vld [vmem:[%s13 + $0xd8] sm:$0xff]
        %v2166 = vld [vmem:[%s13 + $0xe0] sm:$0xff]
        %v2167 = vld [vmem:[%s13 + $0xe8] sm:$0xff]
        %v2168 = vld [vmem:[%s13 + $0xf0] sm:$0xff]
        %v2169 = vld [vmem:[%s13 + $0xf8] sm:$0xff]
        %v2170 = vld [vmem:[%s14] sm:$0xf]
        %v2172 = vperm.slane %v2170, 0
        %v2173 = vperm.slane %v2170, 1
        %v2174 = vperm.slane %v2170, 2
        %v2175 = vperm.slane %v2170, 3
        %v2212 = vunpack.c.l.b16 %v2138
        %v2213 = vunpack.c.h.b16 %v2138
        %v2214 = vunpack.c.l.b16 %v2139
        %v2215 = vunpack.c.h.b16 %v2139
        %v2216 = vunpack.c.l.b16 %v2140
        %v2217 = vunpack.c.h.b16 %v2140
        %v2218 = vunpack.c.l.b16 %v2141
        %v2219 = vunpack.c.h.b16 %v2141
        %v2220 = vunpack.c.l.b16 %v2142
        %v2221 = vunpack.c.h.b16 %v2142
        %v2222 = vunpack.c.l.b16 %v2143
        %v2223 = vunpack.c.h.b16 %v2143
        %v2224 = vunpack.c.l.b16 %v2144
        %v2225 = vunpack.c.h.b16 %v2144
        %v2226 = vunpack.c.l.b16 %v2145
        %v2227 = vunpack.c.h.b16 %v2145
        %v2228 = vunpack.c.l.b16 %v2146
        %v2229 = vunpack.c.h.b16 %v2146
        %v2230 = vunpack.c.l.b16 %v2147
        %v2231 = vunpack.c.h.b16 %v2147
        %v2232 = vunpack.c.l.b16 %v2148
        %v2233 = vunpack.c.h.b16 %v2148
        %v2234 = vunpack.c.l.b16 %v2149
        %v2235 = vunpack.c.h.b16 %v2149
        %v2236 = vunpack.c.l.b16 %v2150
        %v2237 = vunpack.c.h.b16 %v2150
        %v2238 = vunpack.c.l.b16 %v2151
        %v2239 = vunpack.c.h.b16 %v2151
        %v2240 = vunpack.c.l.b16 %v2152
        %v2241 = vunpack.c.h.b16 %v2152
        %v2242 = vunpack.c.l.b16 %v2153
        %v2243 = vunpack.c.h.b16 %v2153
        %v2244 = vunpack.c.l.b16 %v2154
        %v2245 = vunpack.c.h.b16 %v2154
        %v2246 = vunpack.c.l.b16 %v2155
        %v2247 = vunpack.c.h.b16 %v2155
        %v2248 = vunpack.c.l.b16 %v2156
        %v2249 = vunpack.c.h.b16 %v2156
        %v2250 = vunpack.c.l.b16 %v2157
        %v2251 = vunpack.c.h.b16 %v2157
        %v2252 = vunpack.c.l.b16 %v2158
        %v2253 = vunpack.c.h.b16 %v2158
        %v2254 = vunpack.c.l.b16 %v2159
        %v2255 = vunpack.c.h.b16 %v2159
        %v2256 = vunpack.c.l.b16 %v2160
        %v2257 = vunpack.c.h.b16 %v2160
        %v2258 = vunpack.c.l.b16 %v2161
        %v2259 = vunpack.c.h.b16 %v2161
        %v2260 = vunpack.c.l.b16 %v2162
        %v2261 = vunpack.c.h.b16 %v2162
        %v2262 = vunpack.c.l.b16 %v2163
        %v2263 = vunpack.c.h.b16 %v2163
        %v2264 = vunpack.c.l.b16 %v2164
        %v2265 = vunpack.c.h.b16 %v2164
        %v2266 = vunpack.c.l.b16 %v2165
        %v2267 = vunpack.c.h.b16 %v2165
        %v2268 = vunpack.c.l.b16 %v2166
        %v2269 = vunpack.c.h.b16 %v2166
        %v2270 = vunpack.c.l.b16 %v2167
        %v2271 = vunpack.c.h.b16 %v2167
        %v2272 = vunpack.c.l.b16 %v2168
        %v2273 = vunpack.c.h.b16 %v2168
        %v2274 = vunpack.c.l.b16 %v2169
        %v2275 = vunpack.c.h.b16 %v2169
        %v2276 = vpack.c.b16 %v2216, %v2212
        %v2277 = vpack.c.b16 %v2217, %v2213
        %v2278 = vpack.c.b16 %v2218, %v2214
        %v2279 = vpack.c.b16 %v2219, %v2215
        %v2280 = vpack.c.b16 %v2224, %v2220
        %v2281 = vpack.c.b16 %v2225, %v2221
        %v2282 = vpack.c.b16 %v2226, %v2222
        %v2283 = vpack.c.b16 %v2227, %v2223
        %v2284 = vpack.c.b16 %v2232, %v2228
        %v2285 = vpack.c.b16 %v2233, %v2229
        %v2286 = vpack.c.b16 %v2234, %v2230
        %v2287 = vpack.c.b16 %v2235, %v2231
        %v2288 = vpack.c.b16 %v2240, %v2236
        %v2289 = vpack.c.b16 %v2241, %v2237
        %v2290 = vpack.c.b16 %v2242, %v2238
        %v2291 = vpack.c.b16 %v2243, %v2239
        %v2292 = vpack.c.b16 %v2248, %v2244
        %v2293 = vpack.c.b16 %v2249, %v2245
        %v2294 = vpack.c.b16 %v2250, %v2246
        %v2295 = vpack.c.b16 %v2251, %v2247
        %v2296 = vpack.c.b16 %v2256, %v2252
        %v2297 = vpack.c.b16 %v2257, %v2253
        %v2298 = vpack.c.b16 %v2258, %v2254
        %v2299 = vpack.c.b16 %v2259, %v2255
        %v2300 = vpack.c.b16 %v2264, %v2260
        %v2301 = vpack.c.b16 %v2265, %v2261
        %v2302 = vpack.c.b16 %v2266, %v2262
        %v2303 = vpack.c.b16 %v2267, %v2263
        %v2304 = vpack.c.b16 %v2272, %v2268
        %v2305 = vpack.c.b16 %v2273, %v2269
        %v2306 = vpack.c.b16 %v2274, %v2270
        %v2307 = vpack.c.b16 %v2275, %v2271
        %2340 = vmatpush.bf16.msra.mxu0 %v2304
        %2341 = vmatpush.bf16.msra.mxu0 %v2300
        %2342 = vmatpush.bf16.msra.mxu0 %v2296
        %2343 = vmatpush.bf16.msra.mxu0 %v2292
        %2344 = vmatpush.bf16.msra.mxu0 %v2288
        %2345 = vmatpush.bf16.msra.mxu0 %v2284
        %2346 = vmatpush.bf16.msra.mxu0 %v2280
        %2347 = vmatpush.bf16.msra.mxu0 %v2276
        %2348 = vmatmul.bf16.gmra.mxu0 %v2137
        %v2349 = vpop.f32.mrf.mxu0
        %v2350 = vadd.f32 %v2172, %v2349
        %v2351 = vpop.f32.mrf.mxu0
        %2352 = vdwg.mxu0
        %2353 = vmatpush.bf16.msra.mxu0 %v2305
        %2354 = vmatpush.bf16.msra.mxu0 %v2301
        %2355 = vmatpush.bf16.msra.mxu0 %v2297
        %2356 = vmatpush.bf16.msra.mxu0 %v2293
        %2357 = vmatpush.bf16.msra.mxu0 %v2289
        %2358 = vmatpush.bf16.msra.mxu0 %v2285
        %2359 = vmatpush.bf16.msra.mxu0 %v2281
        %2360 = vmatpush.bf16.msra.mxu0 %v2277
        %2361 = vmatmul.bf16.gmra.mxu0 %v2137
        %v2362 = vpop.f32.mrf.mxu0
        %v2363 = vadd.f32 %v2173, %v2362
        %v2364 = vpop.f32.mrf.mxu0
        %2365 = vdwg.mxu0
        %2366 = vmatpush.bf16.msra.mxu0 %v2306
        %2367 = vmatpush.bf16.msra.mxu0 %v2302
        %2368 = vmatpush.bf16.msra.mxu0 %v2298
        %2369 = vmatpush.bf16.msra.mxu0 %v2294
        %2370 = vmatpush.bf16.msra.mxu0 %v2290
        %2371 = vmatpush.bf16.msra.mxu0 %v2286
        %2372 = vmatpush.bf16.msra.mxu0 %v2282
        %2373 = vmatpush.bf16.msra.mxu0 %v2278
        %2374 = vmatmul.bf16.gmra.mxu0 %v2137
        %v2375 = vpop.f32.mrf.mxu0
        %v2376 = vadd.f32 %v2174, %v2375
        %v2377 = vpop.f32.mrf.mxu0
        %2378 = vdwg.mxu0
        %2379 = vmatpush.bf16.msra.mxu0 %v2307
        %2380 = vmatpush.bf16.msra.mxu0 %v2303
        %2381 = vmatpush.bf16.msra.mxu0 %v2299
        %2382 = vmatpush.bf16.msra.mxu0 %v2295
        %2383 = vmatpush.bf16.msra.mxu0 %v2291
        %2384 = vmatpush.bf16.msra.mxu0 %v2287
        %2385 = vmatpush.bf16.msra.mxu0 %v2283
        %2386 = vmatpush.bf16.msra.mxu0 %v2279
        %2387 = vmatmul.bf16.gmra.mxu0 %v2137
        %v2388 = vpop.f32.mrf.mxu0
        %v2389 = vadd.f32 %v2175, %v2388
        %v2390 = vpop.f32.mrf.mxu0
        %2391 = vdwg.mxu0
        %v2392 = vmul.f32 %v2350, 0.5
        %v2393 = vmul.f32 %v2363, 0.5
        %v2394 = vmul.f32 %v2376, 0.5
        %v2395 = vmul.f32 %v2389, 0.5
        %v2396 = vmul.f32 %v2350, 0.044715
        %v2397 = vmul.f32 %v2363, 0.044715
        %v2398 = vmul.f32 %v2376, 0.044715
        %v2399 = vmul.f32 %v2389, 0.044715
        %v2400 = vmul.f32 %v2396, %v2350
        %v2401 = vmul.f32 %v2397, %v2363
        %v2402 = vmul.f32 %v2398, %v2376
        %v2403 = vmul.f32 %v2399, %v2389
        %v2404 = vmul.f32 %v2400, %v2350
        %v2405 = vmul.f32 %v2401, %v2363
        %v2406 = vmul.f32 %v2402, %v2376
        %v2407 = vmul.f32 %v2403, %v2389
        %v2408 = vadd.f32 %v2350, %v2404
        %v2409 = vadd.f32 %v2363, %v2405
        %v2410 = vadd.f32 %v2376, %v2406
        %v2411 = vadd.f32 %v2389, %v2407
        %v2412 = vmul.f32 %v2408, 0.7978846
        %v2413 = vmul.f32 %v2409, 0.7978846
        %v2414 = vmul.f32 %v2410, 0.7978846
        %v2415 = vmul.f32 %v2411, 0.7978846
        %v2416 = vtanh.pop %v2412
        %v2417 = vtanh.pop %v2413
        %v2418 = vtanh.pop %v2414
        %v2419 = vtanh.pop %v2415
        %v2420 = vadd.f32 %v2416, 1.0
        %v2421 = vadd.f32 %v2417, 1.0
        %v2422 = vadd.f32 %v2418, 1.0
        %v2423 = vadd.f32 %v2419, 1.0
        %v2424 = vmul.f32 %v2392, %v2420
        %v2425 = vmul.f32 %v2393, %v2421
        %v2426 = vmul.f32 %v2394, %v2422
        %v2427 = vmul.f32 %v2395, %v2423
        %v2428 = vpack.c.bf16 %v2424, %v2424
        %v2429 = vpack.c.bf16 %v2425, %v2425
        %v2430 = vpack.c.bf16 %v2426, %v2426
        %v2431 = vpack.c.bf16 %v2427, %v2427
        %v2432 = vld [vmem:[%s15] sm:$0xf]
        %v2433 = vld [vmem:[%s15 + $0x4] sm:$0xf]
        %v2434 = vld [vmem:[%s15 + $0x8] sm:$0xf]
        %v2435 = vld [vmem:[%s15 + $0xc] sm:$0xf]
        %v2436 = vld [vmem:[%s15 + $0x10] sm:$0xf]
        %v2437 = vld [vmem:[%s15 + $0x14] sm:$0xf]
        %v2438 = vld [vmem:[%s15 + $0x18] sm:$0xf]
        %v2439 = vld [vmem:[%s15 + $0x1c] sm:$0xf]
        %v2440 = vld [vmem:[%s15 + $0x20] sm:$0xf]
        %v2441 = vld [vmem:[%s15 + $0x24] sm:$0xf]
        %v2442 = vld [vmem:[%s15 + $0x28] sm:$0xf]
        %v2443 = vld [vmem:[%s15 + $0x2c] sm:$0xf]
        %v2444 = vld [vmem:[%s15 + $0x30] sm:$0xf]
        %v2445 = vld [vmem:[%s15 + $0x34] sm:$0xf]
        %v2446 = vld [vmem:[%s15 + $0x38] sm:$0xf]
        %v2447 = vld [vmem:[%s15 + $0x3c] sm:$0xf]
        %v2448 = vld [vmem:[%s15 + $0x40] sm:$0xf]
        %v2449 = vld [vmem:[%s15 + $0x44] sm:$0xf]
        %v2450 = vld [vmem:[%s15 + $0x48] sm:$0xf]
        %v2451 = vld [vmem:[%s15 + $0x4c] sm:$0xf]
        %v2452 = vld [vmem:[%s15 + $0x50] sm:$0xf]
        %v2453 = vld [vmem:[%s15 + $0x54] sm:$0xf]
        %v2454 = vld [vmem:[%s15 + $0x58] sm:$0xf]
        %v2455 = vld [vmem:[%s15 + $0x5c] sm:$0xf]
        %v2456 = vld [vmem:[%s15 + $0x60] sm:$0xf]
        %v2457 = vld [vmem:[%s15 + $0x64] sm:$0xf]
        %v2458 = vld [vmem:[%s15 + $0x68] sm:$0xf]
        %v2459 = vld [vmem:[%s15 + $0x6c] sm:$0xf]
        %v2460 = vld [vmem:[%s15 + $0x70] sm:$0xf]
        %v2461 = vld [vmem:[%s15 + $0x74] sm:$0xf]
        %v2462 = vld [vmem:[%s15 + $0x78] sm:$0xf]
        %v2463 = vld [vmem:[%s15 + $0x7c] sm:$0xf]
        %v2464 = vld [vmem:[%s15 + $0x80] sm:$0xf]
        %v2465 = vld [vmem:[%s15 + $0x84] sm:$0xf]
        %v2466 = vld [vmem:[%s15 + $0x88] sm:$0xf]
        %v2467 = vld [vmem:[%s15 + $0x8c] sm:$0xf]
        %v2468 = vld [vmem:[%s15 + $0x90] sm:$0xf]
        %v2469 = vld [vmem:[%s15 + $0x94] sm:$0xf]
        %v2470 = vld [vmem:[%s15 + $0x98] sm:$0xf]
        %v2471 = vld [vmem:[%s15 + $0x9c] sm:$0xf]
        %v2472 = vld [vmem:[%s15 + $0xa0] sm:$0xf]
        %v2473 = vld [vmem:[%s15 + $0xa4] sm:$0xf]
        %v2474 = vld [vmem:[%s15 + $0xa8] sm:$0xf]
        %v2475 = vld [vmem:[%s15 + $0xac] sm:$0xf]
        %v2476 = vld [vmem:[%s15 + $0xb0] sm:$0xf]
        %v2477 = vld [vmem:[%s15 + $0xb4] sm:$0xf]
        %v2478 = vld [vmem:[%s15 + $0xb8] sm:$0xf]
        %v2479 = vld [vmem:[%s15 + $0xbc] sm:$0xf]
        %v2480 = vld [vmem:[%s15 + $0xc0] sm:$0xf]
        %v2481 = vld [vmem:[%s15 + $0xc4] sm:$0xf]
        %v2482 = vld [vmem:[%s15 + $0xc8] sm:$0xf]
        %v2483 = vld [vmem:[%s15 + $0xcc] sm:$0xf]
        %v2484 = vld [vmem:[%s15 + $0xd0] sm:$0xf]
        %v2485 = vld [vmem:[%s15 + $0xd4] sm:$0xf]
        %v2486 = vld [vmem:[%s15 + $0xd8] sm:$0xf]
        %v2487 = vld [vmem:[%s15 + $0xdc] sm:$0xf]
        %v2488 = vld [vmem:[%s15 + $0xe0] sm:$0xf]
        %v2489 = vld [vmem:[%s15 + $0xe4] sm:$0xf]
        %v2490 = vld [vmem:[%s15 + $0xe8] sm:$0xf]
        %v2491 = vld [vmem:[%s15 + $0xec] sm:$0xf]
        %v2492 = vld [vmem:[%s15 + $0xf0] sm:$0xf]
        %v2493 = vld [vmem:[%s15 + $0xf4] sm:$0xf]
        %v2494 = vld [vmem:[%s15 + $0xf8] sm:$0xf]
        %v2495 = vld [vmem:[%s15 + $0xfc] sm:$0xf]
        %v2496 = vld [vmem:[%s16] sm:$0x1]
        %v2498 = vperm.slane %v2496, 0
        %v2564 = vunpack.c.l.b16 %v2432
        %v2565 = vunpack.c.l.b16 %v2433
        %v2566 = vunpack.c.l.b16 %v2434
        %v2567 = vunpack.c.l.b16 %v2435
        %v2568 = vunpack.c.l.b16 %v2436
        %v2569 = vunpack.c.l.b16 %v2437
        %v2570 = vunpack.c.l.b16 %v2438
        %v2571 = vunpack.c.l.b16 %v2439
        %v2572 = vunpack.c.l.b16 %v2440
        %v2573 = vunpack.c.l.b16 %v2441
        %v2574 = vunpack.c.l.b16 %v2442
        %v2575 = vunpack.c.l.b16 %v2443
        %v2576 = vunpack.c.l.b16 %v2444
        %v2577 = vunpack.c.l.b16 %v2445
        %v2578 = vunpack.c.l.b16 %v2446
        %v2579 = vunpack.c.l.b16 %v2447
        %v2580 = vunpack.c.l.b16 %v2448
        %v2581 = vunpack.c.l.b16 %v2449
        %v2582 = vunpack.c.l.b16 %v2450
        %v2583 = vunpack.c.l.b16 %v2451
        %v2584 = vunpack.c.l.b16 %v2452
        %v2585 = vunpack.c.l.b16 %v2453
        %v2586 = vunpack.c.l.b16 %v2454
        %v2587 = vunpack.c.l.b16 %v2455
        %v2588 = vunpack.c.l.b16 %v2456
        %v2589 = vunpack.c.l.b16 %v2457
        %v2590 = vunpack.c.l.b16 %v2458
        %v2591 = vunpack.c.l.b16 %v2459
        %v2592 = vunpack.c.l.b16 %v2460
        %v2593 = vunpack.c.l.b16 %v2461
        %v2594 = vunpack.c.l.b16 %v2462
        %v2595 = vunpack.c.l.b16 %v2463
        %v2596 = vunpack.c.l.b16 %v2464
        %v2597 = vunpack.c.l.b16 %v2465
        %v2598 = vunpack.c.l.b16 %v2466
        %v2599 = vunpack.c.l.b16 %v2467
        %v2600 = vunpack.c.l.b16 %v2468
        %v2601 = vunpack.c.l.b16 %v2469
        %v2602 = vunpack.c.l.b16 %v2470
        %v2603 = vunpack.c.l.b16 %v2471
        %v2604 = vunpack.c.l.b16 %v2472
        %v2605 = vunpack.c.l.b16 %v2473
        %v2606 = vunpack.c.l.b16 %v2474
        %v2607 = vunpack.c.l.b16 %v2475
        %v2608 = vunpack.c.l.b16 %v2476
        %v2609 = vunpack.c.l.b16 %v2477
        %v2610 = vunpack.c.l.b16 %v2478
        %v2611 = vunpack.c.l.b16 %v2479
        %v2612 = vunpack.c.l.b16 %v2480
        %v2613 = vunpack.c.l.b16 %v2481
        %v2614 = vunpack.c.l.b16 %v2482
        %v2615 = vunpack.c.l.b16 %v2483
        %v2616 = vunpack.c.l.b16 %v2484
        %v2617 = vunpack.c.l.b16 %v2485
        %v2618 = vunpack.c.l.b16 %v2486
        %v2619 = vunpack.c.l.b16 %v2487
        %v2620 = vunpack.c.l.b16 %v2488
        %v2621 = vunpack.c.l.b16 %v2489
        %v2622 = vunpack.c.l.b16 %v2490
        %v2623 = vunpack.c.l.b16 %v2491
        %v2624 = vunpack.c.l.b16 %v2492
        %v2625 = vunpack.c.l.b16 %v2493
        %v2626 = vunpack.c.l.b16 %v2494
        %v2627 = vunpack.c.l.b16 %v2495
        %v2628 = vpack.c.b16 %v2565, %v2564
        %v2629 = vpack.c.b16 %v2567, %v2566
        %v2630 = vpack.c.b16 %v2569, %v2568
        %v2631 = vpack.c.b16 %v2571, %v2570
        %v2632 = vpack.c.b16 %v2573, %v2572
        %v2633 = vpack.c.b16 %v2575, %v2574
        %v2634 = vpack.c.b16 %v2577, %v2576
        %v2635 = vpack.c.b16 %v2579, %v2578
        %v2636 = vpack.c.b16 %v2581, %v2580
        %v2637 = vpack.c.b16 %v2583, %v2582
        %v2638 = vpack.c.b16 %v2585, %v2584
        %v2639 = vpack.c.b16 %v2587, %v2586
        %v2640 = vpack.c.b16 %v2589, %v2588
        %v2641 = vpack.c.b16 %v2591, %v2590
        %v2642 = vpack.c.b16 %v2593, %v2592
        %v2643 = vpack.c.b16 %v2595, %v2594
        %v2644 = vpack.c.b16 %v2597, %v2596
        %v2645 = vpack.c.b16 %v2599, %v2598
        %v2646 = vpack.c.b16 %v2601, %v2600
        %v2647 = vpack.c.b16 %v2603, %v2602
        %v2648 = vpack.c.b16 %v2605, %v2604
        %v2649 = vpack.c.b16 %v2607, %v2606
        %v2650 = vpack.c.b16 %v2609, %v2608
        %v2651 = vpack.c.b16 %v2611, %v2610
        %v2652 = vpack.c.b16 %v2613, %v2612
        %v2653 = vpack.c.b16 %v2615, %v2614
        %v2654 = vpack.c.b16 %v2617, %v2616
        %v2655 = vpack.c.b16 %v2619, %v2618
        %v2656 = vpack.c.b16 %v2621, %v2620
        %v2657 = vpack.c.b16 %v2623, %v2622
        %v2658 = vpack.c.b16 %v2625, %v2624
        %v2659 = vpack.c.b16 %v2627, %v2626
        %2692 = vmatpush.bf16.msra.mxu0 %v2635
        %2693 = vmatpush.bf16.msra.mxu0 %v2634
        %2694 = vmatpush.bf16.msra.mxu0 %v2633
        %2695 = vmatpush.bf16.msra.mxu0 %v2632
        %2696 = vmatpush.bf16.msra.mxu0 %v2631
        %2697 = vmatpush.bf16.msra.mxu0 %v2630
        %2698 = vmatpush.bf16.msra.mxu0 %v2629
        %2699 = vmatpush.bf16.msra.mxu0 %v2628
        %2700 = vmatmul.bf16.gmra.mxu0 %v2428
        %v2701 = vpop.f32.mrf.mxu0
        %v2702 = vadd.f32 %v2498, %v2701
        %v2703 = vpop.f32.mrf.mxu0
        %2704 = vdwg.mxu0
        %2705 = vmatpush.bf16.msra.mxu0 %v2643
        %2706 = vmatpush.bf16.msra.mxu0 %v2642
        %2707 = vmatpush.bf16.msra.mxu0 %v2641
        %2708 = vmatpush.bf16.msra.mxu0 %v2640
        %2709 = vmatpush.bf16.msra.mxu0 %v2639
        %2710 = vmatpush.bf16.msra.mxu0 %v2638
        %2711 = vmatpush.bf16.msra.mxu0 %v2637
        %2712 = vmatpush.bf16.msra.mxu0 %v2636
        %2713 = vmatmul.bf16.gmra.mxu0 %v2429
        %v2714 = vpop.f32.mrf.mxu0
        %v2715 = vadd.f32 %v2702, %v2714
        %v2716 = vpop.f32.mrf.mxu0
        %2717 = vdwg.mxu0
        %2718 = vmatpush.bf16.msra.mxu0 %v2651
        %2719 = vmatpush.bf16.msra.mxu0 %v2650
        %2720 = vmatpush.bf16.msra.mxu0 %v2649
        %2721 = vmatpush.bf16.msra.mxu0 %v2648
        %2722 = vmatpush.bf16.msra.mxu0 %v2647
        %2723 = vmatpush.bf16.msra.mxu0 %v2646
        %2724 = vmatpush.bf16.msra.mxu0 %v2645
        %2725 = vmatpush.bf16.msra.mxu0 %v2644
        %2726 = vmatmul.bf16.gmra.mxu0 %v2430
        %v2727 = vpop.f32.mrf.mxu0
        %v2728 = vadd.f32 %v2715, %v2727
        %v2729 = vpop.f32.mrf.mxu0
        %2730 = vdwg.mxu0
        %2731 = vmatpush.bf16.msra.mxu0 %v2659
        %2732 = vmatpush.bf16.msra.mxu0 %v2658
        %2733 = vmatpush.bf16.msra.mxu0 %v2657
        %2734 = vmatpush.bf16.msra.mxu0 %v2656
        %2735 = vmatpush.bf16.msra.mxu0 %v2655
        %2736 = vmatpush.bf16.msra.mxu0 %v2654
        %2737 = vmatpush.bf16.msra.mxu0 %v2653
        %2738 = vmatpush.bf16.msra.mxu0 %v2652
        %2739 = vmatmul.bf16.gmra.mxu0 %v2431
        %v2740 = vpop.f32.mrf.mxu0
        %v2741 = vadd.f32 %v2728, %v2740
        %v2742 = vpop.f32.mrf.mxu0
        %2743 = vdwg.mxu0
        %v2744 = vadd.f32 %v2099, %v2741
        %2745 = vst [vmem:[%s555] sm:$0xff] %v2744
        %s2746 = sand.u32 %s415, 1
        %s2747 = scalar_lea.sflag [#allocation6], %s2746
        %s2748 = sand.u32 %s415, 1
        %s2749 = smul.addr %s2748, 8
        %s2750 = scalar_lea.vmem [#allocation5], %s2749
        // Predicated region
        $region93: #{tpu_custom_call.1} parent=87 // pred_check
          %p2751 = pneg %p425
        $region94: #{tpu_custom_call.1} parent=87 // pred_check_branch
          %2753 = sbr.rel (%p2751) target = $region96
        $region95: #{tpu_custom_call.1} parent=87 // pred_region
          %2755 = vsyncadd %s2747, 0
          %s2756 = smul.addr %s35, 2
          %s2757 = sadd.s32 %s36, %s2756
          %s2758 = smul.addr %s2757, 8
          %s2759 = scalar_lea.hbm %s17, %s2758
          %s2761 = sshll.u32 %s2750, 4
          %s2762 = int_to_ptr.vmem [resolvable:$true] %s2761
          %s2763 = sshll.u32 %s2759, 4
          %s2764 = int_to_ptr.hbm [resolvable:$true] %s2763
          %2766 = dma.vmem_to_hbm [thread:$0]  %s2762, 128, %s2764, %s2747
        $region96: #{tpu_custom_call.1} parent=87 // pred_fallthru
          _
      $region88: #{tpu_custom_call.1} parent=5 // pred_fallthru
        _
      %p2767 = scmp.le.s32.totalorder 2, %s26
      // Predicated region
      $region97: #{tpu_custom_call.1} parent=5 // pred_check
        %p2768 = pneg %p2767
      $region98: #{tpu_custom_call.1} parent=5 // pred_check_branch
        %2770 = sbr.rel (%p2768) target = $region100
      $region99: #{tpu_custom_call.1} parent=5 // pred_region
        %s2771 = ssub.s32 %s26, 2
        // Predicated region
        $region101: #{tpu_custom_call.1} parent=99 // pred_check
          %p2772 = pneg %p431
        $region102: #{tpu_custom_call.1} parent=99 // pred_check_branch
          %2774 = sbr.rel (%p2772) target = $region104
        $region103: #{tpu_custom_call.1} parent=99 // pred_region
          %s2775 = sand.u32 %s416, 1
          %s2776 = scalar_lea.sflag [#allocation6], %s2775
          %s2777 = sand.u32 %s416, 1
          %s2778 = smul.addr %s2777, 8
          %s2779 = scalar_lea.vmem [#allocation5], %s2778
          %2781 = dma.done %s2776, 128
        $region104: #{tpu_custom_call.1} parent=99 // pred_fallthru
          _
      $region100: #{tpu_custom_call.1} parent=5 // pred_fallthru
        _
    $region6: #{tpu_custom_call.1} parent=1 // loop_footer
      %s30 = sadd.s32 1, %s26
    $region7: #{tpu_custom_call.1} parent=1 // loop_footer_branch
      %25 = sbr.rel target = $region3
    $region8: #{tpu_custom_call.1} parent=1 // loop_exit
      _
    %2782 = vsyncpa [#allocation6], 1
    %s2783 = scalar_lea.sflag [#allocation6], 1
    %2784 = vsyncpa %s2783, 1

</llo_original>
